<compile_context>
chip_gen: v6e
topology: v6e:2x2x1
jax: 0.10.0
libtpu: 0.0.40
codegen_flags: <defaults>
</compile_context>

<pallas_src>
import functools
import math

import jax
import jax.numpy as jnp
from jax.experimental import pallas as pl
from jax.experimental.pallas import tpu as pltpu

EPS = 1e-6  # LayerNorm eps (makani uses 1e-6)


def _round_up(a, b):
    return (a + b - 1) // b * b


def _vmem_budget():
    """Scoped-VMEM budget per kernel, derived from physical VMEM of the part."""
    try:
        cap = int(pltpu.get_tpu_info().vmem_capacity_bytes)
    except Exception:
        cap = 64 * 1024 * 1024  # conservative fallback (v7x-sized)
    # ~half of physical: 64 MB on 128-MiB parts (v5e/v6e), 32 MB on 64-MiB (v7x).
    return int(min(max(cap // 2, 32 * 1024 * 1024), 96 * 1024 * 1024))


VMEM_BUDGET = _vmem_budget()


def _pick_row_tile(R, HW, budget):
    """Rows per LayerNorm block (full HW on lanes); keep ~6 row-copies in budget."""
    max_rows = max(1, budget // (6 * HW * 4))
    for cand in (1024, 512, 256, 128, 64, 32, 16, 8):
        if cand <= max_rows and R % cand == 0:
            return cand
    d = min(R, max_rows)
    while d > 1:
        if R % d == 0 and (d % 8 == 0 or d == R):
            return d
        d -= 1
    return R


def _pick_lane_tile(n, bytes_per_col, budget, max_tile=2048):
    """Lane tile (multiple of 128) for the HW / spectral-mode axis."""
    cap = max(128, budget // max(int(bytes_per_col), 1))
    t = min(max_tile, cap, _round_up(n, 128))
    return max(128, (t // 128) * 128)


def _const_spec(shape):
    """Grid-invariant operand (weights/biases): single-buffered to save VMEM."""
    return pl.BlockSpec(shape, lambda *_: (0,) * len(shape),
                        pipeline_mode=pl.Buffered(1))


def _block_diag(mats):
    """mats: (nb, r, c) -> (nb*r, nb*c) block diagonal."""
    nb, r, c = mats.shape
    eye = jnp.eye(nb, dtype=mats.dtype)
    return (eye[:, None, :, None] * mats[:, :, None, :]).reshape(nb * r, nb * c)


def _softshrink(x, lam):
    return jnp.where(x > lam, x - lam, jnp.where(x < -lam, x + lam, 0.0))


def _gelu_tanh(x):
    c = math.sqrt(2.0 / math.pi)
    return 0.5 * x * (1.0 + jnp.tanh(c * (x + 0.044715 * (x * x * x))))


# ----------------------------------------------------------------------------
# Kernel 1: LayerNorm over the (H, W) dims of an NCHW tensor.
#   rows = (B*C), lane axis = H*W.  Also emits per-row (mean, rstd) so the
#   skip kernel can re-apply norm1 without re-reading xn1 from HBM.
# ----------------------------------------------------------------------------
def _layernorm_kernel(x_ref, w_ref, b_ref, o_ref, st_ref):
    x = x_ref[...]                                        # (Tr, HW) f32
    mean = jnp.mean(x, axis=-1, keepdims=True)
    xc = x - mean
    var = jnp.mean(xc * xc, axis=-1, keepdims=True)
    rstd = jax.lax.rsqrt(var + EPS)
    o_ref[...] = xc * rstd * w_ref[...] + b_ref[...]
    st_ref[...] = jnp.concatenate([mean, rstd], axis=-1)  # (Tr, 2)


def layernorm_hw(x_rows, w_row, b_row):
    """x_rows: (R, HW) f32 -> (normalized (R, HW) f32, stats (R, 2) f32)."""
    R, HW = x_rows.shape
    tile_r = _pick_row_tile(R, HW, VMEM_BUDGET)
    grid = (R // tile_r,)
    return pl.pallas_call(
        _layernorm_kernel,
        out_shape=(jax.ShapeDtypeStruct((R, HW), jnp.float32),
                   jax.ShapeDtypeStruct((R, 2), jnp.float32)),
        grid=grid,
        in_specs=[pl.BlockSpec((tile_r, HW), lambda i: (i, 0)),
                  pl.BlockSpec((1, HW), lambda i: (0, 0)),
                  pl.BlockSpec((1, HW), lambda i: (0, 0))],
        out_specs=(pl.BlockSpec((tile_r, HW), lambda i: (i, 0)),
                   pl.BlockSpec((tile_r, 2), lambda i: (i, 0))),
        compiler_params=pltpu.CompilerParams(
            dimension_semantics=("parallel",),
            vmem_limit_bytes=VMEM_BUDGET),
    )(x_rows, w_row, b_row)


# ----------------------------------------------------------------------------
# Kernel 2: AFNO2D spectral mixing, all blocks merged into one matmul per step.
#   hr = BD(W1r^T) xr - BD(W1i^T) xi ; hi = BD(W1i^T) xr + BD(W1r^T) xi
#   packed as h = w1_re @ xr + w1_im @ xi ; ComplexReLU(cartesian,0) = relu(h);
#   yr = [BD2r,-BD2i] h ; yi = [BD2i,BD2r] h ; softshrink on each.
# ----------------------------------------------------------------------------
def _spectral_kernel(xr_ref, xi_ref, w1re_ref, w1im_ref, w2re_ref, w2im_ref,
                     yr_ref, yi_ref, *, lam):
    xr = xr_ref[0]                                        # (C, Tm) f32
    xi = xi_ref[0]
    h = (jnp.dot(w1re_ref[...], xr, preferred_element_type=jnp.float32)
         + jnp.dot(w1im_ref[...], xi, preferred_element_type=jnp.float32))
    h = jnp.maximum(h, 0.0)                               # ComplexReLU (cartesian)
    yr_ref[0] = _softshrink(
        jnp.dot(w2re_ref[...], h, preferred_element_type=jnp.float32), lam)
    yi_ref[0] = _softshrink(
        jnp.dot(w2im_ref[...], h, preferred_element_type=jnp.float32), lam)


def afno_spectral_mix(xf, w1, w2, num_blocks, lam):
    """xf: complex64 (B, C, H, Wf).  w1: (nb, bs, hid, 2).  w2: (nb, hid, bs, 2)."""
    B, C, H, Wf = xf.shape
    nb = num_blocks
    hid = w1.shape[2]
    nbh2 = 2 * nb * hid
    M = H * Wf

    # Block-diagonal real form of the complex block weights (tiny, built once).
    w1r_t = jnp.transpose(w1[..., 0], (0, 2, 1))          # (nb, hid, bs)
    w1i_t = jnp.transpose(w1[..., 1], (0, 2, 1))
    bd1r = _block_diag(w1r_t)                             # (nb*hid, C)
    bd1i = _block_diag(w1i_t)
    w1_re = jnp.concatenate([bd1r, bd1i], axis=0)         # (2*nb*hid, C)
    w1_im = jnp.concatenate([-bd1i, bd1r], axis=0)
    w2r_t = jnp.transpose(w2[..., 0], (0, 2, 1))          # (nb, bs, hid)
    w2i_t = jnp.transpose(w2[..., 1], (0, 2, 1))
    bd2r = _block_diag(w2r_t)                             # (C, nb*hid)
    bd2i = _block_diag(w2i_t)
    w2_re = jnp.concatenate([bd2r, -bd2i], axis=1)        # (C, 2*nb*hid)
    w2_im = jnp.concatenate([bd2i, bd2r], axis=1)

    # Real/imag stay separate (no packed HBM concat / output slices).
    xr = jnp.real(xf).reshape(B, C, M).astype(jnp.float32)
    xi = jnp.imag(xf).reshape(B, C, M).astype(jnp.float32)

    # Lane tile on the mode axis, padded to a multiple (zeros pass through as 0).
    per_col = 32 * C + 8 * nbh2                            # dbl-buffered acts + h
    wbytes = 4 * 4 * nbh2 * C
    tile_m = _pick_lane_tile(M, per_col,
                             max(VMEM_BUDGET - wbytes, VMEM_BUDGET // 4))
    M_pad = _round_up(M, tile_m)
    if M_pad != M:
        pad = ((0, 0), (0, 0), (0, M_pad - M))
        xr = jnp.pad(xr, pad)
        xi = jnp.pad(xi, pad)

    grid = (B, M_pad // tile_m)
    act_spec = pl.BlockSpec((1, C, tile_m), lambda b, m: (b, 0, m))

    flops = 8 * B * nbh2 * C * M_pad
    bytes_acc = 4 * B * C * M_pad * 4 + 4 * nbh2 * C * 4

    yr, yi = pl.pallas_call(
        functools.partial(_spectral_kernel, lam=lam),
        out_shape=(jax.ShapeDtypeStruct((B, C, M_pad), jnp.float32),
                   jax.ShapeDtypeStruct((B, C, M_pad), jnp.float32)),
        grid=grid,
        in_specs=[act_spec, act_spec,
                  _const_spec((nbh2, C)), _const_spec((nbh2, C)),
                  _const_spec((C, nbh2)), _const_spec((C, nbh2))],
        out_specs=(act_spec, act_spec),
        compiler_params=pltpu.CompilerParams(
            dimension_semantics=("parallel", "parallel"),
            vmem_limit_bytes=VMEM_BUDGET),
        cost_estimate=pl.CostEstimate(flops=flops, transcendentals=0,
                                      bytes_accessed=bytes_acc),
    )(xr, xi, w1_re, w1_im, w2_re, w2_im)

    yr = (yr if M_pad == M else yr[:, :, :M]).reshape(B, C, H, Wf)
    yi = (yi if M_pad == M else yi[:, :, :M]).reshape(B, C, H, Wf)
    return jax.lax.complex(yr, yi)


# ----------------------------------------------------------------------------
# Kernel 3: fused "ifft + afno_b1 + norm1(x) + Conv2d-1x1 skip" plus running
#   LayerNorm-2 sum / sum^2 per (b, c) (accumulated across the HW grid axis).
# ----------------------------------------------------------------------------
def _skip_ln2stats_kernel(x_ref, xif_ref, st1_ref, n1w_ref, n1b_ref,
                          w_ref, sb_ref, ab1_ref, xs_ref, st2_ref,
                          *, hw_valid, tile_hw):
    x = x_ref[0]                                          # (C, T) f32 residual
    st1 = st1_ref[0]                                      # (C, 2) [mean, rstd]
    mean1 = st1[:, 0:1]
    rstd1 = st1[:, 1:2]
    # Recompute norm1(x) from the residual already resident in VMEM.
    xn1 = (x - mean1) * rstd1 * n1w_ref[...] + n1b_ref[...]
    skip = jnp.dot(w_ref[...], x.astype(jnp.bfloat16),
                   preferred_element_type=jnp.float32)
    xs = xif_ref[0] + ab1_ref[...] + xn1 + skip + sb_ref[...]
    xs_ref[0] = xs.astype(xs_ref.dtype)                   # bf16 store

    # LayerNorm-2 statistics (f32, masked so padded columns don't contribute).
    m = pl.program_id(1)
    col = m * tile_hw + jax.lax.broadcasted_iota(jnp.int32, (1, tile_hw), 1)
    xs_v = jnp.where(col < hw_valid, xs, 0.0)
    s1 = jnp.sum(xs_v, axis=-1, keepdims=True)            # (C, 1)
    s2 = jnp.sum(xs_v * xs_v, axis=-1, keepdims=True)
    st = jnp.concatenate([s1, s2], axis=-1)               # (C, 2)

    @pl.when(m == 0)
    def _():
        st2_ref[0] = st

    @pl.when(m > 0)
    def _():
        st2_ref[0] = st2_ref[0] + st


# ----------------------------------------------------------------------------
# Kernel 4: norm2-normalize prologue + MLP (1x1 conv -> GELU -> 1x1 conv) +
#   outer residual.  Weight-on-left matmuls, bf16 operands, f32 accumulation.
# ----------------------------------------------------------------------------
def _ln2_mlp_kernel(xs_ref, res_ref, st2_ref, n2w_ref, n2b_ref,
                    w1_ref, b1_ref, w2_ref, b2_ref, o_ref, *, inv_hw):
    s = st2_ref[0]                                        # (C, 2) running sums
    mean = s[:, 0:1] * inv_hw
    var = s[:, 1:2] * inv_hw - mean * mean
    rstd = jax.lax.rsqrt(var + EPS)
    xn2 = (xs_ref[0].astype(jnp.float32) - mean) * rstd * n2w_ref[...] + n2b_ref[...]
    h = jnp.dot(w1_ref[...], xn2.astype(jnp.bfloat16),
                preferred_element_type=jnp.float32) + b1_ref[...]
    h = _gelu_tanh(h)
    o = jnp.dot(w2_ref[...], h.astype(jnp.bfloat16),
                preferred_element_type=jnp.float32) + b2_ref[...]
    o_ref[0] = (o + res_ref[0]).astype(o_ref.dtype)


# ----------------------------------------------------------------------------
# Block.forward (hard_thresholding_fraction == 1.0, skip_fno == 'linear',
#                nested_skip_fno == True, drop/drop_path == 0)
# ----------------------------------------------------------------------------
def block_forward(x, p, num_blocks, sparsity_threshold):
    B, C, H, W = x.shape
    HW = H * W
    out_dtype = x.dtype

    x_cs = x.astype(jnp.float32).reshape(B, C, HW)   # channel-major, lane-dense HW

    # --- norm1: LayerNorm over (H, W) per (b, c); also emits (mean, rstd) ---
    xn1_rows, st1_rows = layernorm_hw(x_cs.reshape(B * C, HW),
                                      p["norm1_w"].reshape(1, HW),
                                      p["norm1_b"].reshape(1, HW))
    st1 = st1_rows.reshape(B, C, 2)

    # --- AFNO2D filter ---
    # TODO(synk): rfft2/irfft2 have no Pallas TPU primitive; they stay in jnp.fft.
    xfreq = jnp.fft.rfft2(xn1_rows.reshape(B, C, H, W), axes=(-2, -1), norm="ortho")
    yfreq = afno_spectral_mix(xfreq, p["afno_w1"], p["afno_w2"],
                              num_blocks, sparsity_threshold)
    x_ifft = jnp.fft.irfft2(yfreq, s=(H, W), axes=(-2, -1),
                            norm="ortho").astype(jnp.float32).reshape(B, C, HW)

    # --- lane tile + zero padding for the skip / MLP kernels ---
    Hd = p["mlp_w1"].shape[0]
    wbytes = 2 * 2 * (Hd * C + C * Hd)                     # bf16 MLP weights (x2 headroom)
    tile_hw = _pick_lane_tile(HW, 24 * C + 8 * Hd,
                              max(VMEM_BUDGET - wbytes, VMEM_BUDGET // 4))
    HW_pad = _round_up(HW, tile_hw)

    def pad_cols(a):
        if HW_pad == HW:
            return a
        return jnp.pad(a, ((0, 0),) * (a.ndim - 1) + ((0, HW_pad - HW),))

    x_p = pad_cols(x_cs)
    xif_p = pad_cols(x_ifft)
    n1w = pad_cols(p["norm1_w"].reshape(1, HW))
    n1b = pad_cols(p["norm1_b"].reshape(1, HW))
    n2w = pad_cols(p["norm2_w"].reshape(1, HW))
    n2b = pad_cols(p["norm2_b"].reshape(1, HW))

    grid = (B, HW_pad // tile_hw)
    act_spec = pl.BlockSpec((1, C, tile_hw), lambda b, m: (b, 0, m))
    vec_spec = pl.BlockSpec((1, tile_hw), lambda b, m: (0, m))
    st_spec = pl.BlockSpec((1, C, 2), lambda b, m: (b, 0, 0))

    skip_w = p["skip_w"][:, :, 0, 0].astype(jnp.bfloat16)  # (Cout, Cin)
    skip_b = p["skip_b"].reshape(C, 1)
    afno_b1 = p["afno_b1"].reshape(C, 1)

    # --- fused: x_ifft + afno_b1 + norm1(x) + Conv2d1x1(x) ; LN2 stats accum ---
    xs, st2 = pl.pallas_call(
        functools.partial(_skip_ln2stats_kernel, hw_valid=HW, tile_hw=tile_hw),
        out_shape=(jax.ShapeDtypeStruct((B, C, HW_pad), jnp.bfloat16),
                   jax.ShapeDtypeStruct((B, C, 2), jnp.float32)),
        grid=grid,
        in_specs=[act_spec, act_spec, st_spec, vec_spec, vec_spec,
                  _const_spec((C, C)), _const_spec((C, 1)), _const_spec((C, 1))],
        out_specs=(act_spec, st_spec),
        compiler_params=pltpu.CompilerParams(
            dimension_semantics=("parallel", "arbitrary"),
            vmem_limit_bytes=VMEM_BUDGET),
        cost_estimate=pl.CostEstimate(
            flops=2 * B * HW_pad * C * C, transcendentals=0,
            bytes_accessed=B * C * HW_pad * (4 + 4 + 2) + skip_w.size * 2),
    )(x_p, xif_p, st1, n1w, n1b, skip_w, skip_b, afno_b1)

    # --- norm2 (fused as prologue) + MLP (conv1x1 -> GELU -> conv1x1) + residual ---
    w1 = p["mlp_w1"][:, :, 0, 0].astype(jnp.bfloat16)      # (Hd, C)
    b1 = p["mlp_b1"].reshape(Hd, 1)
    w2 = p["mlp_w2"][:, :, 0, 0].astype(jnp.bfloat16)      # (C, Hd)
    b2 = p["mlp_b2"].reshape(C, 1)

    out_p = pl.pallas_call(
        functools.partial(_ln2_mlp_kernel, inv_hw=1.0 / HW),
        out_shape=jax.ShapeDtypeStruct((B, C, HW_pad), out_dtype),
        grid=grid,
        in_specs=[act_spec, act_spec, st_spec, vec_spec, vec_spec,
                  _const_spec((Hd, C)), _const_spec((Hd, 1)),
                  _const_spec((C, Hd)), _const_spec((C, 1))],
        out_specs=act_spec,
        compiler_params=pltpu.CompilerParams(
            dimension_semantics=("parallel", "parallel"),
            vmem_limit_bytes=VMEM_BUDGET),
        cost_estimate=pl.CostEstimate(
            flops=4 * B * HW_pad * C * Hd, transcendentals=B * HW_pad * Hd,
            bytes_accessed=B * C * HW_pad * (2 + 4 + 4) + (w1.size + w2.size) * 2),
    )(xs, x_p, st2, n2w, n2b, w1, b1, w2, b2)

    out = out_p if HW_pad == HW else out_p[:, :, :HW]
    return out.reshape(B, C, H, W)


# ----------------------------------------------------------------------------
# pure-JAX f32 reference (mirrors the PyTorch Block.forward) for a sanity check
# ----------------------------------------------------------------------------
def reference_block(x, p, num_blocks, lam):
    B, C, H, W = x.shape
    HIGH = jax.lax.Precision.HIGHEST

    def ln(z, w, b):
        m = jnp.mean(z, axis=(-2, -1), keepdims=True)
        v = jnp.mean((z - m) ** 2, axis=(-2, -1), keepdims=True)
        return (z - m) / jnp.sqrt(v + EPS) * w + b

    residual = x
    xn1 = ln(x, p["norm1_w"], p["norm1_b"])
    xf = jnp.fft.rfft2(xn1, axes=(-2, -1), norm="ortho")
    bs = C // num_blocks
    Wf = W // 2 + 1
    xf = xf.reshape(B, num_blocks, bs, H, Wf)
    xr, xi = jnp.real(xf), jnp.imag(xf)
    w1r, w1i = p["afno_w1"][..., 0], p["afno_w1"][..., 1]
    w2r, w2i = p["afno_w2"][..., 0], p["afno_w2"][..., 1]
    ein = functools.partial(jnp.einsum, precision=HIGH)
    hr = ein("bkixy,kio->bkoxy", xr, w1r) - ein("bkixy,kio->bkoxy", xi, w1i)
    hi = ein("bkixy,kio->bkoxy", xr, w1i) + ein("bkixy,kio->bkoxy", xi, w1r)
    hr, hi = jnp.maximum(hr, 0.0), jnp.maximum(hi, 0.0)
    orr = ein("bkixy,kio->bkoxy", hr, w2r) - ein("bkixy,kio->bkoxy", hi, w2i)
    oii = ein("bkixy,kio->bkoxy", hr, w2i) + ein("bkixy,kio->bkoxy", hi, w2r)
    orr, oii = _softshrink(orr, lam), _softshrink(oii, lam)
    yc = (orr + 1j * oii).reshape(B, C, H, Wf)
    xif = jnp.fft.irfft2(yc, s=(H, W), axes=(-2, -1), norm="ortho")
    xfilt = xif + p["afno_b1"] + xn1
    skip = ein("oc,bchw->bohw", p["skip_w"][:, :, 0, 0], residual) \
        + p["skip_b"][None, :, None, None]
    xs = xfilt + skip
    xn2 = ln(xs, p["norm2_w"], p["norm2_b"])
    h = ein("oc,bchw->bohw", p["mlp_w1"][:, :, 0, 0], xn2) + p["mlp_b1"][None, :, None, None]
    h = 0.5 * h * (1.0 + jax.lax.erf(h / jnp.sqrt(2.0)))
    o = ein("oc,bchw->bohw", p["mlp_w2"][:, :, 0, 0], h) + p["mlp_b2"][None, :, None, None]
    return o + residual


# ----------------------------------------------------------------------------
if __name__ == "__main__":
    B, DIM, H, W = 2, 32, 16, 16
    NUM_BLOCKS = 8
    BLOCK_SIZE = DIM // NUM_BLOCKS
    HIDDEN_FACTOR = 1
    MLP_RATIO = 4.0
    MLP_HIDDEN = int(DIM * MLP_RATIO)
    SPARSITY = 0.01

    key = jax.random.PRNGKey(0)
    ks = jax.random.split(key, 16)
    f32 = jnp.float32
    params = {
        "norm1_w": 1.0 + 0.1 * jax.random.normal(ks[0], (H, W), f32),
        "norm1_b": 0.1 * jax.random.normal(ks[1], (H, W), f32),
        "norm2_w": 1.0 + 0.1 * jax.random.normal(ks[2], (H, W), f32),
        "norm2_b": 0.1 * jax.random.normal(ks[3], (H, W), f32),
        "afno_w1": 0.02 * jax.random.normal(
            ks[4], (NUM_BLOCKS, BLOCK_SIZE, BLOCK_SIZE * HIDDEN_FACTOR, 2), f32),
        "afno_b1": 0.02 * jax.random.normal(ks[5], (1, DIM, 1, 1), f32),
        "afno_w2": 0.02 * jax.random.normal(
            ks[6], (NUM_BLOCKS, BLOCK_SIZE * HIDDEN_FACTOR, BLOCK_SIZE, 2), f32),
        "skip_w": (1.0 / math.sqrt(DIM)) * jax.random.normal(ks[7], (DIM, DIM, 1, 1), f32),
        "skip_b": 0.02 * jax.random.normal(ks[8], (DIM,), f32),
        "mlp_w1": (1.0 / math.sqrt(DIM)) * jax.random.normal(ks[9], (MLP_HIDDEN, DIM, 1, 1), f32),
        "mlp_b1": 0.02 * jax.random.normal(ks[10], (MLP_HIDDEN,), f32),
        "mlp_w2": (1.0 / math.sqrt(MLP_HIDDEN)) * jax.random.normal(ks[11], (DIM, MLP_HIDDEN, 1, 1), f32),
        "mlp_b2": 0.02 * jax.random.normal(ks[12], (DIM,), f32),
    }

    x = jax.random.normal(ks[13], (B, DIM, H, W), f32)

    fwd = jax.jit(functools.partial(block_forward,
                                    num_blocks=NUM_BLOCKS,
                                    sparsity_threshold=SPARSITY))
    out = fwd(x, params)
    jax.block_until_ready(out)

    ref = reference_block(x, params, NUM_BLOCKS, SPARSITY)
    jax.block_until_ready(ref)

    err = jnp.abs(out - ref)
    max_err = float(jnp.max(err))
    mean_err = float(jnp.mean(err))
    assert out.shape == (B, DIM, H, W)
    assert out.dtype == x.dtype
    # bf16 xs storage + bf16 MXU operands (f32 accumulation) + tanh GELU
    # vs the exact-f32 / erf-GELU reference.
    assert max_err < 8e-2, f"max mismatch vs reference: {max_err}"
    assert mean_err < 1.5e-2, f"mean mismatch vs reference: {mean_err}"

    print("KERNEL_OK")
</pallas_src>

<mosaic_0001>
module attributes {stable_mosaic.version = 11 : i64} {
  func.func @_layernorm_kernel(%arg0: i32, %arg1: memref<64x256xf32, #tpu.memory_space<vmem>>, %arg2: memref<1x256xf32, #tpu.memory_space<vmem>>, %arg3: memref<1x256xf32, #tpu.memory_space<vmem>>, %arg4: memref<64x256xf32, #tpu.memory_space<vmem>>, %arg5: memref<64x2xf32, #tpu.memory_space<vmem>>) attributes {dimension_semantics = [#tpu.dimension_semantics<parallel>], iteration_bounds = array<i64: 1>, scalar_prefetch = 0 : i64, scratch_operands = 0 : i64, tpu.core_type = #tpu.core_type<tc>, window_params = [{transform_indices = @transform_0, window_bounds = array<i64: 64, 256>}, {pipeline_mode = #tpu.pipeline_mode<synchronous>, transform_indices = @transform_1, window_bounds = array<i64: 1, 256>}, {pipeline_mode = #tpu.pipeline_mode<synchronous>, transform_indices = @transform_2, window_bounds = array<i64: 1, 256>}, {transform_indices = @transform_3, window_bounds = array<i64: 64, 256>}, {transform_indices = @transform_4, window_bounds = array<i64: 64, 2>}]} {
    %c0 = arith.constant 0 : index
    %c0_0 = arith.constant 0 : index
    %0 = vector.load %arg1[%c0, %c0_0] : memref<64x256xf32, #tpu.memory_space<vmem>>, vector<64x256xf32>
    %cst = arith.constant dense<0.000000e+00> : vector<64xf32>
    %1 = vector.multi_reduction <add>, %0, %cst [1] : vector<64x256xf32> to vector<64xf32>
    %2 = vector.shape_cast %1 : vector<64xf32> to vector<64x1xf32>
    %cst_1 = arith.constant 2.560000e+02 : f32
    %3 = vector.broadcast %cst_1 : f32 to vector<64x1xf32>
    %4 = arith.divf %2, %3 : vector<64x1xf32>
    %5 = vector.broadcast %4 : vector<64x1xf32> to vector<64x256xf32>
    %6 = arith.subf %0, %5 : vector<64x256xf32>
    %7 = arith.mulf %6, %6 : vector<64x256xf32>
    %cst_2 = arith.constant dense<0.000000e+00> : vector<64xf32>
    %8 = vector.multi_reduction <add>, %7, %cst_2 [1] : vector<64x256xf32> to vector<64xf32>
    %9 = vector.shape_cast %8 : vector<64xf32> to vector<64x1xf32>
    %cst_3 = arith.constant 2.560000e+02 : f32
    %10 = vector.broadcast %cst_3 : f32 to vector<64x1xf32>
    %11 = arith.divf %9, %10 : vector<64x1xf32>
    %cst_4 = arith.constant 9.99999997E-7 : f32
    %12 = vector.broadcast %cst_4 : f32 to vector<64x1xf32>
    %13 = arith.addf %11, %12 : vector<64x1xf32>
    %14 = math.rsqrt %13 : vector<64x1xf32>
    %15 = vector.broadcast %14 : vector<64x1xf32> to vector<64x256xf32>
    %16 = arith.mulf %6, %15 : vector<64x256xf32>
    %c0_5 = arith.constant 0 : index
    %c0_6 = arith.constant 0 : index
    %17 = vector.load %arg2[%c0_5, %c0_6] : memref<1x256xf32, #tpu.memory_space<vmem>>, vector<1x256xf32>
    %18 = vector.broadcast %17 : vector<1x256xf32> to vector<64x256xf32>
    %19 = arith.mulf %16, %18 : vector<64x256xf32>
    %c0_7 = arith.constant 0 : index
    %c0_8 = arith.constant 0 : index
    %20 = vector.load %arg3[%c0_7, %c0_8] : memref<1x256xf32, #tpu.memory_space<vmem>>, vector<1x256xf32>
    %21 = vector.broadcast %20 : vector<1x256xf32> to vector<64x256xf32>
    %22 = arith.addf %19, %21 : vector<64x256xf32>
    %c0_9 = arith.constant 0 : index
    %c0_10 = arith.constant 0 : index
    %23 = vector.load %arg4[%c0_9, %c0_10] : memref<64x256xf32, #tpu.memory_space<vmem>>, vector<64x256xf32>
    tpu.vector_store %arg4[%c0_9, %c0_10], %22 {strides = array<i32>} : memref<64x256xf32, #tpu.memory_space<vmem>>, vector<64x256xf32>,
    %24 = tpu.concatenate %4, %14 in 1 : vector<64x1xf32>, vector<64x1xf32> -> vector<64x2xf32>
    %c0_11 = arith.constant 0 : index
    %c0_12 = arith.constant 0 : index
    %25 = vector.load %arg5[%c0_11, %c0_12] : memref<64x2xf32, #tpu.memory_space<vmem>>, vector<64x2xf32>
    tpu.vector_store %arg5[%c0_11, %c0_12], %24 {strides = array<i32>} : memref<64x2xf32, #tpu.memory_space<vmem>>, vector<64x2xf32>,
    return
  }
  func.func @transform_0(%arg0: i32) -> (i32, i32) {
    %c0_i32 = arith.constant 0 : i32
    %c0_i32_0 = arith.constant 0 : i32
    return %arg0, %c0_i32 : i32, i32
  }
  func.func @transform_1(%arg0: i32) -> (i32, i32) {
    %c0_i32 = arith.constant 0 : i32
    %c0_i32_0 = arith.constant 0 : i32
    %c0_i32_1 = arith.constant 0 : i32
    return %c0_i32, %c0_i32_0 : i32, i32
  }
  func.func @transform_2(%arg0: i32) -> (i32, i32) {
    %c0_i32 = arith.constant 0 : i32
    %c0_i32_0 = arith.constant 0 : i32
    %c0_i32_1 = arith.constant 0 : i32
    return %c0_i32, %c0_i32_0 : i32, i32
  }
  func.func @transform_3(%arg0: i32) -> (i32, i32) {
    %c0_i32 = arith.constant 0 : i32
    %c0_i32_0 = arith.constant 0 : i32
    return %arg0, %c0_i32 : i32, i32
  }
  func.func @transform_4(%arg0: i32) -> (i32, i32) {
    %c0_i32 = arith.constant 0 : i32
    %c0_i32_0 = arith.constant 0 : i32
    return %arg0, %c0_i32 : i32, i32
  }
}

module attributes {stable_mosaic.version = 11 : i64} {
  func.func @_spectral_kernel(%arg0: i32, %arg1: i32, %arg2: memref<1x32x256xf32, #tpu.memory_space<vmem>>, %arg3: memref<1x32x256xf32, #tpu.memory_space<vmem>>, %arg4: memref<64x32xf32, #tpu.memory_space<vmem>>, %arg5: memref<64x32xf32, #tpu.memory_space<vmem>>, %arg6: memref<32x64xf32, #tpu.memory_space<vmem>>, %arg7: memref<32x64xf32, #tpu.memory_space<vmem>>, %arg8: memref<1x32x256xf32, #tpu.memory_space<vmem>>, %arg9: memref<1x32x256xf32, #tpu.memory_space<vmem>>) attributes {dimension_semantics = [#tpu.dimension_semantics<parallel>, #tpu.dimension_semantics<parallel>], iteration_bounds = array<i64: 2, 1>, scalar_prefetch = 0 : i64, scratch_operands = 0 : i64, tpu.core_type = #tpu.core_type<tc>, window_params = [{transform_indices = @transform_0, window_bounds = array<i64: 1, 32, 256>}, {transform_indices = @transform_1, window_bounds = array<i64: 1, 32, 256>}, {pipeline_mode = #tpu.pipeline_mode<synchronous>, transform_indices = @transform_2, window_bounds = array<i64: 64, 32>}, {pipeline_mode = #tpu.pipeline_mode<synchronous>, transform_indices = @transform_3, window_bounds = array<i64: 64, 32>}, {pipeline_mode = #tpu.pipeline_mode<synchronous>, transform_indices = @transform_4, window_bounds = array<i64: 32, 64>}, {pipeline_mode = #tpu.pipeline_mode<synchronous>, transform_indices = @transform_5, window_bounds = array<i64: 32, 64>}, {transform_indices = @transform_6, window_bounds = array<i64: 1, 32, 256>}, {transform_indices = @transform_7, window_bounds = array<i64: 1, 32, 256>}]} {
    %c0 = arith.constant 0 : index
    %c0_0 = arith.constant 0 : index
    %c0_1 = arith.constant 0 : index
    %0 = vector.load %arg2[%c0, %c0_0, %c0_1] : memref<1x32x256xf32, #tpu.memory_space<vmem>>, vector<1x32x256xf32>
    %1 = vector.shape_cast %0 : vector<1x32x256xf32> to vector<32x256xf32>
    %c0_2 = arith.constant 0 : index
    %c0_3 = arith.constant 0 : index
    %c0_4 = arith.constant 0 : index
    %2 = vector.load %arg3[%c0_2, %c0_3, %c0_4] : memref<1x32x256xf32, #tpu.memory_space<vmem>>, vector<1x32x256xf32>
    %3 = vector.shape_cast %2 : vector<1x32x256xf32> to vector<32x256xf32>
    %c0_5 = arith.constant 0 : index
    %c0_6 = arith.constant 0 : index
    %4 = vector.load %arg4[%c0_5, %c0_6] : memref<64x32xf32, #tpu.memory_space<vmem>>, vector<64x32xf32>
    %cst = arith.constant dense<0.000000e+00> : vector<64x256xf32>
    %5 = tpu.matmul %4, %1, %cst {dimension_numbers = #tpu.dot_dimension_numbers<[1], [0], [0], [1], [0, 0, 1, 1], [], []>} : vector<64x32xf32>, vector<32x256xf32>, vector<64x256xf32> -> vector<64x256xf32>
    %c0_7 = arith.constant 0 : index
    %c0_8 = arith.constant 0 : index
    %6 = vector.load %arg5[%c0_7, %c0_8] : memref<64x32xf32, #tpu.memory_space<vmem>>, vector<64x32xf32>
    %cst_9 = arith.constant dense<0.000000e+00> : vector<64x256xf32>
    %7 = tpu.matmul %6, %3, %cst_9 {dimension_numbers = #tpu.dot_dimension_numbers<[1], [0], [0], [1], [0, 0, 1, 1], [], []>} : vector<64x32xf32>, vector<32x256xf32>, vector<64x256xf32> -> vector<64x256xf32>
    %8 = arith.addf %5, %7 : vector<64x256xf32>
    %cst_10 = arith.constant 0.000000e+00 : f32
    %9 = vector.broadcast %cst_10 : f32 to vector<64x256xf32>
    %10 = arith.maximumf %8, %9 : vector<64x256xf32>
    %c0_11 = arith.constant 0 : index
    %c0_12 = arith.constant 0 : index
    %11 = vector.load %arg6[%c0_11, %c0_12] : memref<32x64xf32, #tpu.memory_space<vmem>>, vector<32x64xf32>
    %cst_13 = arith.constant dense<0.000000e+00> : vector<32x256xf32>
    %12 = tpu.matmul %11, %10, %cst_13 {dimension_numbers = #tpu.dot_dimension_numbers<[1], [0], [0], [1], [0, 0, 1, 1], [], []>} : vector<32x64xf32>, vector<64x256xf32>, vector<32x256xf32> -> vector<32x256xf32>
    %cst_14 = arith.constant 0.00999999977 : f32
    %13 = vector.broadcast %cst_14 : f32 to vector<32x256xf32>
    %14 = arith.cmpf ogt, %12, %13 : vector<32x256xf32>
    %cst_15 = arith.constant 0.00999999977 : f32
    %15 = vector.broadcast %cst_15 : f32 to vector<32x256xf32>
    %16 = arith.subf %12, %15 : vector<32x256xf32>
    %cst_16 = arith.constant -0.00999999977 : f32
    %17 = vector.broadcast %cst_16 : f32 to vector<32x256xf32>
    %18 = arith.cmpf olt, %12, %17 : vector<32x256xf32>
    %cst_17 = arith.constant 0.00999999977 : f32
    %19 = vector.broadcast %cst_17 : f32 to vector<32x256xf32>
    %20 = arith.addf %12, %19 : vector<32x256xf32>
    %cst_18 = arith.constant 0.000000e+00 : f32
    %21 = vector.broadcast %cst_18 : f32 to vector<32x256xf32>
    %22 = arith.select %18, %20, %21 : vector<32x256xi1>, vector<32x256xf32>
    %23 = arith.select %14, %16, %22 : vector<32x256xi1>, vector<32x256xf32>
    %c0_19 = arith.constant 0 : index
    %c0_20 = arith.constant 0 : index
    %c0_21 = arith.constant 0 : index
    %24 = vector.load %arg8[%c0_19, %c0_20, %c0_21] : memref<1x32x256xf32, #tpu.memory_space<vmem>>, vector<1x32x256xf32>
    %25 = vector.shape_cast %24 : vector<1x32x256xf32> to vector<32x256xf32>
    %26 = vector.shape_cast %23 : vector<32x256xf32> to vector<1x32x256xf32>
    tpu.vector_store %arg8[%c0_19, %c0_20, %c0_21], %26 {strides = array<i32>} : memref<1x32x256xf32, #tpu.memory_space<vmem>>, vector<1x32x256xf32>,
    %c0_22 = arith.constant 0 : index
    %c0_23 = arith.constant 0 : index
    %27 = vector.load %arg7[%c0_22, %c0_23] : memref<32x64xf32, #tpu.memory_space<vmem>>, vector<32x64xf32>
    %cst_24 = arith.constant dense<0.000000e+00> : vector<32x256xf32>
    %28 = tpu.matmul %27, %10, %cst_24 {dimension_numbers = #tpu.dot_dimension_numbers<[1], [0], [0], [1], [0, 0, 1, 1], [], []>} : vector<32x64xf32>, vector<64x256xf32>, vector<32x256xf32> -> vector<32x256xf32>
    %cst_25 = arith.constant 0.00999999977 : f32
    %29 = vector.broadcast %cst_25 : f32 to vector<32x256xf32>
    %30 = arith.cmpf ogt, %28, %29 : vector<32x256xf32>
    %cst_26 = arith.constant 0.00999999977 : f32
    %31 = vector.broadcast %cst_26 : f32 to vector<32x256xf32>
    %32 = arith.subf %28, %31 : vector<32x256xf32>
    %cst_27 = arith.constant -0.00999999977 : f32
    %33 = vector.broadcast %cst_27 : f32 to vector<32x256xf32>
    %34 = arith.cmpf olt, %28, %33 : vector<32x256xf32>
    %cst_28 = arith.constant 0.00999999977 : f32
    %35 = vector.broadcast %cst_28 : f32 to vector<32x256xf32>
    %36 = arith.addf %28, %35 : vector<32x256xf32>
    %cst_29 = arith.constant 0.000000e+00 : f32
    %37 = vector.broadcast %cst_29 : f32 to vector<32x256xf32>
    %38 = arith.select %34, %36, %37 : vector<32x256xi1>, vector<32x256xf32>
    %39 = arith.select %30, %32, %38 : vector<32x256xi1>, vector<32x256xf32>
    %c0_30 = arith.constant 0 : index
    %c0_31 = arith.constant 0 : index
    %c0_32 = arith.constant 0 : index
    %40 = vector.load %arg9[%c0_30, %c0_31, %c0_32] : memref<1x32x256xf32, #tpu.memory_space<vmem>>, vector<1x32x256xf32>
    %41 = vector.shape_cast %40 : vector<1x32x256xf32> to vector<32x256xf32>
    %42 = vector.shape_cast %39 : vector<32x256xf32> to vector<1x32x256xf32>
    tpu.vector_store %arg9[%c0_30, %c0_31, %c0_32], %42 {strides = array<i32>} : memref<1x32x256xf32, #tpu.memory_space<vmem>>, vector<1x32x256xf32>,
    return
  }
  func.func @transform_0(%arg0: i32, %arg1: i32) -> (i32, i32, i32) {
    %c0_i32 = arith.constant 0 : i32
    %c0_i32_0 = arith.constant 0 : i32
    return %arg0, %c0_i32, %arg1 : i32, i32, i32
  }
  func.func @transform_1(%arg0: i32, %arg1: i32) -> (i32, i32, i32) {
    %c0_i32 = arith.constant 0 : i32
    %c0_i32_0 = arith.constant 0 : i32
    return %arg0, %c0_i32, %arg1 : i32, i32, i32
  }
  func.func @transform_2(%arg0: i32, %arg1: i32) -> (i32, i32) {
    %c0_i32 = arith.constant 0 : i32
    %c0_i32_0 = arith.constant 0 : i32
    %c0_i32_1 = arith.constant 0 : i32
    return %c0_i32, %c0_i32_0 : i32, i32
  }
  func.func @transform_3(%arg0: i32, %arg1: i32) -> (i32, i32) {
    %c0_i32 = arith.constant 0 : i32
    %c0_i32_0 = arith.constant 0 : i32
    %c0_i32_1 = arith.constant 0 : i32
    return %c0_i32, %c0_i32_0 : i32, i32
  }
  func.func @transform_4(%arg0: i32, %arg1: i32) -> (i32, i32) {
    %c0_i32 = arith.constant 0 : i32
    %c0_i32_0 = arith.constant 0 : i32
    %c0_i32_1 = arith.constant 0 : i32
    return %c0_i32, %c0_i32_0 : i32, i32
  }
  func.func @transform_5(%arg0: i32, %arg1: i32) -> (i32, i32) {
    %c0_i32 = arith.constant 0 : i32
    %c0_i32_0 = arith.constant 0 : i32
    %c0_i32_1 = arith.constant 0 : i32
    return %c0_i32, %c0_i32_0 : i32, i32
  }
  func.func @transform_6(%arg0: i32, %arg1: i32) -> (i32, i32, i32) {
    %c0_i32 = arith.constant 0 : i32
    %c0_i32_0 = arith.constant 0 : i32
    return %arg0, %c0_i32, %arg1 : i32, i32, i32
  }
  func.func @transform_7(%arg0: i32, %arg1: i32) -> (i32, i32, i32) {
    %c0_i32 = arith.constant 0 : i32
    %c0_i32_0 = arith.constant 0 : i32
    return %arg0, %c0_i32, %arg1 : i32, i32, i32
  }
}

module attributes {stable_mosaic.version = 11 : i64} {
  func.func @_skip_ln2stats_kernel(%arg0: i32, %arg1: i32, %arg2: memref<1x32x256xf32, #tpu.memory_space<vmem>>, %arg3: memref<1x32x256xf32, #tpu.memory_space<vmem>>, %arg4: memref<1x32x2xf32, #tpu.memory_space<vmem>>, %arg5: memref<1x256xf32, #tpu.memory_space<vmem>>, %arg6: memref<1x256xf32, #tpu.memory_space<vmem>>, %arg7: memref<32x32xbf16, #tpu.memory_space<vmem>>, %arg8: memref<32x1xf32, #tpu.memory_space<vmem>>, %arg9: memref<32x1xf32, #tpu.memory_space<vmem>>, %arg10: memref<1x32x256xbf16, #tpu.memory_space<vmem>>, %arg11: memref<1x32x2xf32, #tpu.memory_space<vmem>>) attributes {dimension_semantics = [#tpu.dimension_semantics<parallel>, #tpu.dimension_semantics<arbitrary>], iteration_bounds = array<i64: 2, 1>, scalar_prefetch = 0 : i64, scratch_operands = 0 : i64, tpu.core_type = #tpu.core_type<tc>, window_params = [{transform_indices = @transform_0, window_bounds = array<i64: 1, 32, 256>}, {transform_indices = @transform_1, window_bounds = array<i64: 1, 32, 256>}, {transform_indices = @transform_2, window_bounds = array<i64: 1, 32, 2>}, {transform_indices = @transform_3, window_bounds = array<i64: 1, 256>}, {transform_indices = @transform_4, window_bounds = array<i64: 1, 256>}, {pipeline_mode = #tpu.pipeline_mode<synchronous>, transform_indices = @transform_5, window_bounds = array<i64: 32, 32>}, {pipeline_mode = #tpu.pipeline_mode<synchronous>, transform_indices = @transform_6, window_bounds = array<i64: 32, 1>}, {pipeline_mode = #tpu.pipeline_mode<synchronous>, transform_indices = @transform_7, window_bounds = array<i64: 32, 1>}, {transform_indices = @transform_8, window_bounds = array<i64: 1, 32, 256>}, {transform_indices = @transform_9, window_bounds = array<i64: 1, 32, 2>}]} {
    %c0 = arith.constant 0 : index
    %c0_0 = arith.constant 0 : index
    %c0_1 = arith.constant 0 : index
    %0 = vector.load %arg2[%c0, %c0_0, %c0_1] : memref<1x32x256xf32, #tpu.memory_space<vmem>>, vector<1x32x256xf32>
    %1 = vector.shape_cast %0 : vector<1x32x256xf32> to vector<32x256xf32>
    %c0_2 = arith.constant 0 : index
    %c0_3 = arith.constant 0 : index
    %c0_4 = arith.constant 0 : index
    %2 = vector.load %arg4[%c0_2, %c0_3, %c0_4] : memref<1x32x2xf32, #tpu.memory_space<vmem>>, vector<1x32x2xf32>
    %3 = vector.shape_cast %2 : vector<1x32x2xf32> to vector<32x2xf32>
    %4 = vector.extract_strided_slice %3 {offsets = [0, 0], sizes = [32, 1], strides = [1, 1]} : vector<32x2xf32> to vector<32x1xf32>
    %5 = vector.extract_strided_slice %3 {offsets = [0, 1], sizes = [32, 1], strides = [1, 1]} : vector<32x2xf32> to vector<32x1xf32>
    %6 = vector.broadcast %4 : vector<32x1xf32> to vector<32x256xf32>
    %7 = arith.subf %1, %6 : vector<32x256xf32>
    %8 = vector.broadcast %5 : vector<32x1xf32> to vector<32x256xf32>
    %9 = arith.mulf %7, %8 : vector<32x256xf32>
    %c0_5 = arith.constant 0 : index
    %c0_6 = arith.constant 0 : index
    %10 = vector.load %arg5[%c0_5, %c0_6] : memref<1x256xf32, #tpu.memory_space<vmem>>, vector<1x256xf32>
    %11 = vector.broadcast %10 : vector<1x256xf32> to vector<32x256xf32>
    %12 = arith.mulf %9, %11 : vector<32x256xf32>
    %c0_7 = arith.constant 0 : index
    %c0_8 = arith.constant 0 : index
    %13 = vector.load %arg6[%c0_7, %c0_8] : memref<1x256xf32, #tpu.memory_space<vmem>>, vector<1x256xf32>
    %14 = vector.broadcast %13 : vector<1x256xf32> to vector<32x256xf32>
    %15 = arith.addf %12, %14 : vector<32x256xf32>
    %c0_9 = arith.constant 0 : index
    %c0_10 = arith.constant 0 : index
    %16 = vector.load %arg7[%c0_9, %c0_10] : memref<32x32xbf16, #tpu.memory_space<vmem>>, vector<32x32xbf16>
    %17 = arith.truncf %1 : vector<32x256xf32> to vector<32x256xbf16>
    %cst = arith.constant dense<0.000000e+00> : vector<32x256xf32>
    %18 = tpu.matmul %16, %17, %cst {dimension_numbers = #tpu.dot_dimension_numbers<[1], [0], [0], [1], [0, 0, 1, 1], [], []>} : vector<32x32xbf16>, vector<32x256xbf16>, vector<32x256xf32> -> vector<32x256xf32>
    %c0_11 = arith.constant 0 : index
    %c0_12 = arith.constant 0 : index
    %c0_13 = arith.constant 0 : index
    %19 = vector.load %arg3[%c0_11, %c0_12, %c0_13] : memref<1x32x256xf32, #tpu.memory_space<vmem>>, vector<1x32x256xf32>
    %20 = vector.shape_cast %19 : vector<1x32x256xf32> to vector<32x256xf32>
    %c0_14 = arith.constant 0 : index
    %c0_15 = arith.constant 0 : index
    %21 = vector.load %arg9[%c0_14, %c0_15] : memref<32x1xf32, #tpu.memory_space<vmem>>, vector<32x1xf32>
    %22 = vector.broadcast %21 : vector<32x1xf32> to vector<32x256xf32>
    %23 = arith.addf %20, %22 : vector<32x256xf32>
    %24 = arith.addf %23, %15 : vector<32x256xf32>
    %25 = arith.addf %24, %18 : vector<32x256xf32>
    %c0_16 = arith.constant 0 : index
    %c0_17 = arith.constant 0 : index
    %26 = vector.load %arg8[%c0_16, %c0_17] : memref<32x1xf32, #tpu.memory_space<vmem>>, vector<32x1xf32>
    %27 = vector.broadcast %26 : vector<32x1xf32> to vector<32x256xf32>
    %28 = arith.addf %25, %27 : vector<32x256xf32>
    %29 = arith.truncf %28 : vector<32x256xf32> to vector<32x256xbf16>
    %c0_18 = arith.constant 0 : index
    %c0_19 = arith.constant 0 : index
    %c0_20 = arith.constant 0 : index
    %30 = vector.load %arg10[%c0_18, %c0_19, %c0_20] : memref<1x32x256xbf16, #tpu.memory_space<vmem>>, vector<1x32x256xbf16>
    %31 = vector.shape_cast %30 : vector<1x32x256xbf16> to vector<32x256xbf16>
    %32 = vector.shape_cast %29 : vector<32x256xbf16> to vector<1x32x256xbf16>
    tpu.vector_store %arg10[%c0_18, %c0_19, %c0_20], %32 {strides = array<i32>} : memref<1x32x256xbf16, #tpu.memory_space<vmem>>, vector<1x32x256xbf16>,
    %c256_i32 = arith.constant 256 : i32
    %33 = arith.muli %arg1, %c256_i32 : i32
    %34 = tpu.iota {dimensions = array<i32: 1>} : vector<1x256xi32>
    %35 = vector.broadcast %33 : i32 to vector<1x256xi32>
    %36 = arith.addi %35, %34 : vector<1x256xi32>
    %c256_i32_21 = arith.constant 256 : i32
    %37 = vector.broadcast %c256_i32_21 : i32 to vector<1x256xi32>
    %38 = arith.cmpi slt, %36, %37 : vector<1x256xi32>
    %cst_22 = arith.constant 0.000000e+00 : f32
    %39 = vector.shape_cast %38 : vector<1x256xi1> to vector<1x256xi1>
    %40 = vector.broadcast %39 : vector<1x256xi1> to vector<32x256xi1>
    %41 = vector.broadcast %cst_22 : f32 to vector<32x256xf32>
    %42 = arith.select %40, %28, %41 : vector<32x256xi1>, vector<32x256xf32>
    %cst_23 = arith.constant dense<0.000000e+00> : vector<32xf32>
    %43 = vector.multi_reduction <add>, %42, %cst_23 [1] : vector<32x256xf32> to vector<32xf32>
    %44 = vector.shape_cast %43 : vector<32xf32> to vector<32x1xf32>
    %45 = arith.mulf %42, %42 : vector<32x256xf32>
    %cst_24 = arith.constant dense<0.000000e+00> : vector<32xf32>
    %46 = vector.multi_reduction <add>, %45, %cst_24 [1] : vector<32x256xf32> to vector<32xf32>
    %47 = vector.shape_cast %46 : vector<32xf32> to vector<32x1xf32>
    %48 = tpu.concatenate %44, %47 in 1 : vector<32x1xf32>, vector<32x1xf32> -> vector<32x2xf32>
    %c0_i32 = arith.constant 0 : i32
    %49 = arith.cmpi eq, %arg1, %c0_i32 : i32
    %50 = arith.extui %49 : i1 to i32
    %c0_i32_25 = arith.constant 0 : i32
    %51 = arith.cmpi ne, %50, %c0_i32_25 : i32
    scf.if %51 {
      %c0_28 = arith.constant 0 : index
      %c0_29 = arith.constant 0 : index
      %c0_30 = arith.constant 0 : index
      %55 = vector.load %arg11[%c0_28, %c0_29, %c0_30] : memref<1x32x2xf32, #tpu.memory_space<vmem>>, vector<1x32x2xf32>
      %56 = vector.shape_cast %55 : vector<1x32x2xf32> to vector<32x2xf32>
      %57 = vector.shape_cast %48 : vector<32x2xf32> to vector<1x32x2xf32>
      tpu.vector_store %arg11[%c0_28, %c0_29, %c0_30], %57 {strides = array<i32>} : memref<1x32x2xf32, #tpu.memory_space<vmem>>, vector<1x32x2xf32>,
    } else {
    }
    %c0_i32_26 = arith.constant 0 : i32
    %52 = arith.cmpi sgt, %arg1, %c0_i32_26 : i32
    %53 = arith.extui %52 : i1 to i32
    %c0_i32_27 = arith.constant 0 : i32
    %54 = arith.cmpi ne, %53, %c0_i32_27 : i32
    scf.if %54 {
      %c0_28 = arith.constant 0 : index
      %c0_29 = arith.constant 0 : index
      %c0_30 = arith.constant 0 : index
      %55 = vector.load %arg11[%c0_28, %c0_29, %c0_30] : memref<1x32x2xf32, #tpu.memory_space<vmem>>, vector<1x32x2xf32>
      %56 = vector.shape_cast %55 : vector<1x32x2xf32> to vector<32x2xf32>
      %57 = arith.addf %56, %48 : vector<32x2xf32>
      %c0_31 = arith.constant 0 : index
      %c0_32 = arith.constant 0 : index
      %c0_33 = arith.constant 0 : index
      %58 = vector.load %arg11[%c0_31, %c0_32, %c0_33] : memref<1x32x2xf32, #tpu.memory_space<vmem>>, vector<1x32x2xf32>
      %59 = vector.shape_cast %58 : vector<1x32x2xf32> to vector<32x2xf32>
      %60 = vector.shape_cast %57 : vector<32x2xf32> to vector<1x32x2xf32>
      tpu.vector_store %arg11[%c0_31, %c0_32, %c0_33], %60 {strides = array<i32>} : memref<1x32x2xf32, #tpu.memory_space<vmem>>, vector<1x32x2xf32>,
    } else {
    }
    return
  }
  func.func @transform_0(%arg0: i32, %arg1: i32) -> (i32, i32, i32) {
    %c0_i32 = arith.constant 0 : i32
    %c0_i32_0 = arith.constant 0 : i32
    return %arg0, %c0_i32, %arg1 : i32, i32, i32
  }
  func.func @transform_1(%arg0: i32, %arg1: i32) -> (i32, i32, i32) {
    %c0_i32 = arith.constant 0 : i32
    %c0_i32_0 = arith.constant 0 : i32
    return %arg0, %c0_i32, %arg1 : i32, i32, i32
  }
  func.func @transform_2(%arg0: i32, %arg1: i32) -> (i32, i32, i32) {
    %c0_i32 = arith.constant 0 : i32
    %c0_i32_0 = arith.constant 0 : i32
    %c0_i32_1 = arith.constant 0 : i32
    return %arg0, %c0_i32, %c0_i32_0 : i32, i32, i32
  }
  func.func @transform_3(%arg0: i32, %arg1: i32) -> (i32, i32) {
    %c0_i32 = arith.constant 0 : i32
    %c0_i32_0 = arith.constant 0 : i32
    return %c0_i32, %arg1 : i32, i32
  }
  func.func @transform_4(%arg0: i32, %arg1: i32) -> (i32, i32) {
    %c0_i32 = arith.constant 0 : i32
    %c0_i32_0 = arith.constant 0 : i32
    return %c0_i32, %arg1 : i32, i32
  }
  func.func @transform_5(%arg0: i32, %arg1: i32) -> (i32, i32) {
    %c0_i32 = arith.constant 0 : i32
    %c0_i32_0 = arith.constant 0 : i32
    %c0_i32_1 = arith.constant 0 : i32
    return %c0_i32, %c0_i32_0 : i32, i32
  }
  func.func @transform_6(%arg0: i32, %arg1: i32) -> (i32, i32) {
    %c0_i32 = arith.constant 0 : i32
    %c0_i32_0 = arith.constant 0 : i32
    %c0_i32_1 = arith.constant 0 : i32
    return %c0_i32, %c0_i32_0 : i32, i32
  }
  func.func @transform_7(%arg0: i32, %arg1: i32) -> (i32, i32) {
    %c0_i32 = arith.constant 0 : i32
    %c0_i32_0 = arith.constant 0 : i32
    %c0_i32_1 = arith.constant 0 : i32
    return %c0_i32, %c0_i32_0 : i32, i32
  }
  func.func @transform_8(%arg0: i32, %arg1: i32) -> (i32, i32, i32) {
    %c0_i32 = arith.constant 0 : i32
    %c0_i32_0 = arith.constant 0 : i32
    return %arg0, %c0_i32, %arg1 : i32, i32, i32
  }
  func.func @transform_9(%arg0: i32, %arg1: i32) -> (i32, i32, i32) {
    %c0_i32 = arith.constant 0 : i32
    %c0_i32_0 = arith.constant 0 : i32
    %c0_i32_1 = arith.constant 0 : i32
    return %arg0, %c0_i32, %c0_i32_0 : i32, i32, i32
  }
}

module attributes {stable_mosaic.version = 11 : i64} {
  func.func @_ln2_mlp_kernel(%arg0: i32, %arg1: i32, %arg2: memref<1x32x256xbf16, #tpu.memory_space<vmem>>, %arg3: memref<1x32x256xf32, #tpu.memory_space<vmem>>, %arg4: memref<1x32x2xf32, #tpu.memory_space<vmem>>, %arg5: memref<1x256xf32, #tpu.memory_space<vmem>>, %arg6: memref<1x256xf32, #tpu.memory_space<vmem>>, %arg7: memref<128x32xbf16, #tpu.memory_space<vmem>>, %arg8: memref<128x1xf32, #tpu.memory_space<vmem>>, %arg9: memref<32x128xbf16, #tpu.memory_space<vmem>>, %arg10: memref<32x1xf32, #tpu.memory_space<vmem>>, %arg11: memref<1x32x256xf32, #tpu.memory_space<vmem>>) attributes {dimension_semantics = [#tpu.dimension_semantics<parallel>, #tpu.dimension_semantics<parallel>], iteration_bounds = array<i64: 2, 1>, scalar_prefetch = 0 : i64, scratch_operands = 0 : i64, tpu.core_type = #tpu.core_type<tc>, window_params = [{transform_indices = @transform_0, window_bounds = array<i64: 1, 32, 256>}, {transform_indices = @transform_1, window_bounds = array<i64: 1, 32, 256>}, {transform_indices = @transform_2, window_bounds = array<i64: 1, 32, 2>}, {transform_indices = @transform_3, window_bounds = array<i64: 1, 256>}, {transform_indices = @transform_4, window_bounds = array<i64: 1, 256>}, {pipeline_mode = #tpu.pipeline_mode<synchronous>, transform_indices = @transform_5, window_bounds = array<i64: 128, 32>}, {pipeline_mode = #tpu.pipeline_mode<synchronous>, transform_indices = @transform_6, window_bounds = array<i64: 128, 1>}, {pipeline_mode = #tpu.pipeline_mode<synchronous>, transform_indices = @transform_7, window_bounds = array<i64: 32, 128>}, {pipeline_mode = #tpu.pipeline_mode<synchronous>, transform_indices = @transform_8, window_bounds = array<i64: 32, 1>}, {transform_indices = @transform_9, window_bounds = array<i64: 1, 32, 256>}]} {
    %c0 = arith.constant 0 : index
    %c0_0 = arith.constant 0 : index
    %c0_1 = arith.constant 0 : index
    %0 = vector.load %arg4[%c0, %c0_0, %c0_1] : memref<1x32x2xf32, #tpu.memory_space<vmem>>, vector<1x32x2xf32>
    %1 = vector.shape_cast %0 : vector<1x32x2xf32> to vector<32x2xf32>
    %2 = vector.extract_strided_slice %1 {offsets = [0, 0], sizes = [32, 1], strides = [1, 1]} : vector<32x2xf32> to vector<32x1xf32>
    %cst = arith.constant 3.906250e-03 : f32
    %3 = vector.broadcast %cst : f32 to vector<32x1xf32>
    %4 = arith.mulf %2, %3 : vector<32x1xf32>
    %5 = vector.extract_strided_slice %1 {offsets = [0, 1], sizes = [32, 1], strides = [1, 1]} : vector<32x2xf32> to vector<32x1xf32>
    %cst_2 = arith.constant 3.906250e-03 : f32
    %6 = vector.broadcast %cst_2 : f32 to vector<32x1xf32>
    %7 = arith.mulf %5, %6 : vector<32x1xf32>
    %8 = arith.mulf %4, %4 : vector<32x1xf32>
    %9 = arith.subf %7, %8 : vector<32x1xf32>
    %cst_3 = arith.constant 9.99999997E-7 : f32
    %10 = vector.broadcast %cst_3 : f32 to vector<32x1xf32>
    %11 = arith.addf %9, %10 : vector<32x1xf32>
    %12 = math.rsqrt %11 : vector<32x1xf32>
    %c0_4 = arith.constant 0 : index
    %c0_5 = arith.constant 0 : index
    %c0_6 = arith.constant 0 : index
    %13 = vector.load %arg2[%c0_4, %c0_5, %c0_6] : memref<1x32x256xbf16, #tpu.memory_space<vmem>>, vector<1x32x256xbf16>
    %14 = vector.shape_cast %13 : vector<1x32x256xbf16> to vector<32x256xbf16>
    %15 = arith.extf %14 : vector<32x256xbf16> to vector<32x256xf32>
    %16 = vector.broadcast %4 : vector<32x1xf32> to vector<32x256xf32>
    %17 = arith.subf %15, %16 : vector<32x256xf32>
    %18 = vector.broadcast %12 : vector<32x1xf32> to vector<32x256xf32>
    %19 = arith.mulf %17, %18 : vector<32x256xf32>
    %c0_7 = arith.constant 0 : index
    %c0_8 = arith.constant 0 : index
    %20 = vector.load %arg5[%c0_7, %c0_8] : memref<1x256xf32, #tpu.memory_space<vmem>>, vector<1x256xf32>
    %21 = vector.broadcast %20 : vector<1x256xf32> to vector<32x256xf32>
    %22 = arith.mulf %19, %21 : vector<32x256xf32>
    %c0_9 = arith.constant 0 : index
    %c0_10 = arith.constant 0 : index
    %23 = vector.load %arg6[%c0_9, %c0_10] : memref<1x256xf32, #tpu.memory_space<vmem>>, vector<1x256xf32>
    %24 = vector.broadcast %23 : vector<1x256xf32> to vector<32x256xf32>
    %25 = arith.addf %22, %24 : vector<32x256xf32>
    %c0_11 = arith.constant 0 : index
    %c0_12 = arith.constant 0 : index
    %26 = vector.load %arg7[%c0_11, %c0_12] : memref<128x32xbf16, #tpu.memory_space<vmem>>, vector<128x32xbf16>
    %27 = arith.truncf %25 : vector<32x256xf32> to vector<32x256xbf16>
    %cst_13 = arith.constant dense<0.000000e+00> : vector<128x256xf32>
    %28 = tpu.matmul %26, %27, %cst_13 {dimension_numbers = #tpu.dot_dimension_numbers<[1], [0], [0], [1], [0, 0, 1, 1], [], []>} : vector<128x32xbf16>, vector<32x256xbf16>, vector<128x256xf32> -> vector<128x256xf32>
    %c0_14 = arith.constant 0 : index
    %c0_15 = arith.constant 0 : index
    %29 = vector.load %arg8[%c0_14, %c0_15] : memref<128x1xf32, #tpu.memory_space<vmem>>, vector<128x1xf32>
    %30 = vector.broadcast %29 : vector<128x1xf32> to vector<128x256xf32>
    %31 = arith.addf %28, %30 : vector<128x256xf32>
    %cst_16 = arith.constant 5.000000e-01 : f32
    %32 = vector.broadcast %cst_16 : f32 to vector<128x256xf32>
    %33 = arith.mulf %32, %31 : vector<128x256xf32>
    %34 = arith.mulf %31, %31 : vector<128x256xf32>
    %35 = arith.mulf %34, %31 : vector<128x256xf32>
    %cst_17 = arith.constant 4.471500e-02 : f32
    %36 = vector.broadcast %cst_17 : f32 to vector<128x256xf32>
    %37 = arith.mulf %36, %35 : vector<128x256xf32>
    %38 = arith.addf %31, %37 : vector<128x256xf32>
    %cst_18 = arith.constant 0.797884583 : f32
    %39 = vector.broadcast %cst_18 : f32 to vector<128x256xf32>
    %40 = arith.mulf %39, %38 : vector<128x256xf32>
    %41 = math.tanh %40 : vector<128x256xf32>
    %cst_19 = arith.constant 1.000000e+00 : f32
    %42 = vector.broadcast %cst_19 : f32 to vector<128x256xf32>
    %43 = arith.addf %42, %41 : vector<128x256xf32>
    %44 = arith.mulf %33, %43 : vector<128x256xf32>
    %c0_20 = arith.constant 0 : index
    %c0_21 = arith.constant 0 : index
    %45 = vector.load %arg9[%c0_20, %c0_21] : memref<32x128xbf16, #tpu.memory_space<vmem>>, vector<32x128xbf16>
    %46 = arith.truncf %44 : vector<128x256xf32> to vector<128x256xbf16>
    %cst_22 = arith.constant dense<0.000000e+00> : vector<32x256xf32>
    %47 = tpu.matmul %45, %46, %cst_22 {dimension_numbers = #tpu.dot_dimension_numbers<[1], [0], [0], [1], [0, 0, 1, 1], [], []>} : vector<32x128xbf16>, vector<128x256xbf16>, vector<32x256xf32> -> vector<32x256xf32>
    %c0_23 = arith.constant 0 : index
    %c0_24 = arith.constant 0 : index
    %48 = vector.load %arg10[%c0_23, %c0_24] : memref<32x1xf32, #tpu.memory_space<vmem>>, vector<32x1xf32>
    %49 = vector.broadcast %48 : vector<32x1xf32> to vector<32x256xf32>
    %50 = arith.addf %47, %49 : vector<32x256xf32>
    %c0_25 = arith.constant 0 : index
    %c0_26 = arith.constant 0 : index
    %c0_27 = arith.constant 0 : index
    %51 = vector.load %arg3[%c0_25, %c0_26, %c0_27] : memref<1x32x256xf32, #tpu.memory_space<vmem>>, vector<1x32x256xf32>
    %52 = vector.shape_cast %51 : vector<1x32x256xf32> to vector<32x256xf32>
    %53 = arith.addf %50, %52 : vector<32x256xf32>
    %c0_28 = arith.constant 0 : index
    %c0_29 = arith.constant 0 : index
    %c0_30 = arith.constant 0 : index
    %54 = vector.load %arg11[%c0_28, %c0_29, %c0_30] : memref<1x32x256xf32, #tpu.memory_space<vmem>>, vector<1x32x256xf32>
    %55 = vector.shape_cast %54 : vector<1x32x256xf32> to vector<32x256xf32>
    %56 = vector.shape_cast %53 : vector<32x256xf32> to vector<1x32x256xf32>
    tpu.vector_store %arg11[%c0_28, %c0_29, %c0_30], %56 {strides = array<i32>} : memref<1x32x256xf32, #tpu.memory_space<vmem>>, vector<1x32x256xf32>,
    return
  }
  func.func @transform_0(%arg0: i32, %arg1: i32) -> (i32, i32, i32) {
    %c0_i32 = arith.constant 0 : i32
    %c0_i32_0 = arith.constant 0 : i32
    return %arg0, %c0_i32, %arg1 : i32, i32, i32
  }
  func.func @transform_1(%arg0: i32, %arg1: i32) -> (i32, i32, i32) {
    %c0_i32 = arith.constant 0 : i32
    %c0_i32_0 = arith.constant 0 : i32
    return %arg0, %c0_i32, %arg1 : i32, i32, i32
  }
  func.func @transform_2(%arg0: i32, %arg1: i32) -> (i32, i32, i32) {
    %c0_i32 = arith.constant 0 : i32
    %c0_i32_0 = arith.constant 0 : i32
    %c0_i32_1 = arith.constant 0 : i32
    return %arg0, %c0_i32, %c0_i32_0 : i32, i32, i32
  }
  func.func @transform_3(%arg0: i32, %arg1: i32) -> (i32, i32) {
    %c0_i32 = arith.constant 0 : i32
    %c0_i32_0 = arith.constant 0 : i32
    return %c0_i32, %arg1 : i32, i32
  }
  func.func @transform_4(%arg0: i32, %arg1: i32) -> (i32, i32) {
    %c0_i32 = arith.constant 0 : i32
    %c0_i32_0 = arith.constant 0 : i32
    return %c0_i32, %arg1 : i32, i32
  }
  func.func @transform_5(%arg0: i32, %arg1: i32) -> (i32, i32) {
    %c0_i32 = arith.constant 0 : i32
    %c0_i32_0 = arith.constant 0 : i32
    %c0_i32_1 = arith.constant 0 : i32
    return %c0_i32, %c0_i32_0 : i32, i32
  }
  func.func @transform_6(%arg0: i32, %arg1: i32) -> (i32, i32) {
    %c0_i32 = arith.constant 0 : i32
    %c0_i32_0 = arith.constant 0 : i32
    %c0_i32_1 = arith.constant 0 : i32
    return %c0_i32, %c0_i32_0 : i32, i32
  }
  func.func @transform_7(%arg0: i32, %arg1: i32) -> (i32, i32) {
    %c0_i32 = arith.constant 0 : i32
    %c0_i32_0 = arith.constant 0 : i32
    %c0_i32_1 = arith.constant 0 : i32
    return %c0_i32, %c0_i32_0 : i32, i32
  }
  func.func @transform_8(%arg0: i32, %arg1: i32) -> (i32, i32) {
    %c0_i32 = arith.constant 0 : i32
    %c0_i32_0 = arith.constant 0 : i32
    %c0_i32_1 = arith.constant 0 : i32
    return %c0_i32, %c0_i32_0 : i32, i32
  }
  func.func @transform_9(%arg0: i32, %arg1: i32) -> (i32, i32, i32) {
    %c0_i32 = arith.constant 0 : i32
    %c0_i32_0 = arith.constant 0 : i32
    return %arg0, %c0_i32, %arg1 : i32, i32, i32
  }
}

</mosaic_0001>

<llo_original>
// kernel: block_forward.4
$region0: #{block_forward.4}
  #allocation0 [shape = 'u32[]', space=smem, size = 0x4, offset = 0x4, fixed_abs, tag = 'smem constant byte address 0x4 - core index']
  #allocation1 [shape = 'u32[144,128]{1,0:T(1,128)}', space=vmem, size = 0x12000, scoped, tag = 'internal scratch']
  %s0 = inlined_call_operand.vmem [shape: f32[64,256], index: 0, kind: input, shape index: {}]
  %s1 = inlined_call_operand.vmem [shape: f32[1,256], index: 1, kind: input, shape index: {}]
  %s2 = inlined_call_operand.vmem [shape: f32[1,256], index: 2, kind: input, shape index: {}]
  %s3 = inlined_call_operand.vmem [shape: f32[64,256], index: 3, kind: output, shape index: {0}]
  %s4 = inlined_call_operand.vmem [shape: f32[64,2], index: 4, kind: output, shape index: {1}]
  %5 = xla_tuple %s3, %s4
  %s6 = sld [smem:[#allocation0]]
  $region30: #{block_forward.4} parent=0
    _
  %s8 = ssub.s32 1, %s6
  %s9 = scalar_select 0, %s8, %s6
  // Predicated region
  $region2: #{block_forward.4} parent=0 // pred_check
    _
  $region3: #{block_forward.4} parent=0 // pred_check_branch
    %11 = sbr.rel (0) target = $region5
  $region4: #{block_forward.4} parent=0 // pred_region
    _
  $region5: #{block_forward.4} parent=0 // pred_fallthru
    _
  // Predicated region
  $region6: #{block_forward.4} parent=0 // pred_check
    _
  $region7: #{block_forward.4} parent=0 // pred_check_branch
    %13 = sbr.rel (0) target = $region9
  $region8: #{block_forward.4} parent=0 // pred_region
    _
  $region9: #{block_forward.4} parent=0 // pred_fallthru
    _
  // Predicated region
  $region10: #{block_forward.4} parent=0 // pred_check
    _
  $region11: #{block_forward.4} parent=0 // pred_check_branch
    %15 = sbr.rel (0) target = $region13
  $region12: #{block_forward.4} parent=0 // pred_region
    _
  $region13: #{block_forward.4} parent=0 // pred_fallthru
    _
  %v16 = vld [vmem:[%s0] sm:$0xff]
  %v17 = vld [vmem:[%s0 + $0x8] sm:$0xff]
  %v18 = vld [vmem:[%s0 + $0x10] sm:$0xff]
  %v19 = vld [vmem:[%s0 + $0x18] sm:$0xff]
  %v20 = vld [vmem:[%s0 + $0x20] sm:$0xff]
  %v21 = vld [vmem:[%s0 + $0x28] sm:$0xff]
  %v22 = vld [vmem:[%s0 + $0x30] sm:$0xff]
  %v23 = vld [vmem:[%s0 + $0x38] sm:$0xff]
  %v24 = vld [vmem:[%s0 + $0x40] sm:$0xff]
  %v25 = vld [vmem:[%s0 + $0x48] sm:$0xff]
  %v26 = vld [vmem:[%s0 + $0x50] sm:$0xff]
  %v27 = vld [vmem:[%s0 + $0x58] sm:$0xff]
  %v28 = vld [vmem:[%s0 + $0x60] sm:$0xff]
  %v29 = vld [vmem:[%s0 + $0x68] sm:$0xff]
  %v30 = vld [vmem:[%s0 + $0x70] sm:$0xff]
  %v31 = vld [vmem:[%s0 + $0x78] sm:$0xff]
  %v32 = vadd.f32 %v16, %v17
  %33 = vadd.xlane.f32.xlu0 %v32
  %v34 = vpop.xlane.xlu0 %33
  %v35 = vadd.f32 %v18, %v19
  %36 = vadd.xlane.f32.xlu0 %v35
  %v37 = vpop.xlane.xlu0 %36
  %v38 = vadd.f32 %v20, %v21
  %39 = vadd.xlane.f32.xlu0 %v38
  %v40 = vpop.xlane.xlu0 %39
  %v41 = vadd.f32 %v22, %v23
  %42 = vadd.xlane.f32.xlu0 %v41
  %v43 = vpop.xlane.xlu0 %42
  %v44 = vadd.f32 %v24, %v25
  %45 = vadd.xlane.f32.xlu0 %v44
  %v46 = vpop.xlane.xlu0 %45
  %v47 = vadd.f32 %v26, %v27
  %48 = vadd.xlane.f32.xlu0 %v47
  %v49 = vpop.xlane.xlu0 %48
  %v50 = vadd.f32 %v28, %v29
  %51 = vadd.xlane.f32.xlu0 %v50
  %v52 = vpop.xlane.xlu0 %51
  %v53 = vadd.f32 %v30, %v31
  %54 = vadd.xlane.f32.xlu0 %v53
  %v55 = vpop.xlane.xlu0 %54
  %v56 = vrcp.pop 256.0
  %v57 = vmul.f32 %v34, %v56
  %v58 = vmul.f32 %v37, %v56
  %v59 = vmul.f32 %v40, %v56
  %v60 = vmul.f32 %v43, %v56
  %v61 = vmul.f32 %v46, %v56
  %v62 = vmul.f32 %v49, %v56
  %v63 = vmul.f32 %v52, %v56
  %v64 = vmul.f32 %v55, %v56
  %v65 = vsub.f32 %v16, %v57
  %v66 = vsub.f32 %v17, %v57
  %v67 = vsub.f32 %v18, %v58
  %v68 = vsub.f32 %v19, %v58
  %v69 = vsub.f32 %v20, %v59
  %v70 = vsub.f32 %v21, %v59
  %v71 = vsub.f32 %v22, %v60
  %v72 = vsub.f32 %v23, %v60
  %v73 = vsub.f32 %v24, %v61
  %v74 = vsub.f32 %v25, %v61
  %v75 = vsub.f32 %v26, %v62
  %v76 = vsub.f32 %v27, %v62
  %v77 = vsub.f32 %v28, %v63
  %v78 = vsub.f32 %v29, %v63
  %v79 = vsub.f32 %v30, %v64
  %v80 = vsub.f32 %v31, %v64
  %v81 = vmul.f32 %v65, %v65
  %v82 = vmul.f32 %v66, %v66
  %v83 = vmul.f32 %v67, %v67
  %v84 = vmul.f32 %v68, %v68
  %v85 = vmul.f32 %v69, %v69
  %v86 = vmul.f32 %v70, %v70
  %v87 = vmul.f32 %v71, %v71
  %v88 = vmul.f32 %v72, %v72
  %v89 = vmul.f32 %v73, %v73
  %v90 = vmul.f32 %v74, %v74
  %v91 = vmul.f32 %v75, %v75
  %v92 = vmul.f32 %v76, %v76
  %v93 = vmul.f32 %v77, %v77
  %v94 = vmul.f32 %v78, %v78
  %v95 = vmul.f32 %v79, %v79
  %v96 = vmul.f32 %v80, %v80
  %v97 = vadd.f32 %v81, %v82
  %98 = vadd.xlane.f32.xlu0 %v97
  %v99 = vpop.xlane.xlu0 %98
  %v100 = vadd.f32 %v83, %v84
  %101 = vadd.xlane.f32.xlu0 %v100
  %v102 = vpop.xlane.xlu0 %101
  %v103 = vadd.f32 %v85, %v86
  %104 = vadd.xlane.f32.xlu0 %v103
  %v105 = vpop.xlane.xlu0 %104
  %v106 = vadd.f32 %v87, %v88
  %107 = vadd.xlane.f32.xlu0 %v106
  %v108 = vpop.xlane.xlu0 %107
  %v109 = vadd.f32 %v89, %v90
  %110 = vadd.xlane.f32.xlu0 %v109
  %v111 = vpop.xlane.xlu0 %110
  %v112 = vadd.f32 %v91, %v92
  %113 = vadd.xlane.f32.xlu0 %v112
  %v114 = vpop.xlane.xlu0 %113
  %v115 = vadd.f32 %v93, %v94
  %116 = vadd.xlane.f32.xlu0 %v115
  %v117 = vpop.xlane.xlu0 %116
  %v118 = vadd.f32 %v95, %v96
  %119 = vadd.xlane.f32.xlu0 %v118
  %v120 = vpop.xlane.xlu0 %119
  %v121 = vmul.f32 %v99, %v56
  %v122 = vmul.f32 %v102, %v56
  %v123 = vmul.f32 %v105, %v56
  %v124 = vmul.f32 %v108, %v56
  %v125 = vmul.f32 %v111, %v56
  %v126 = vmul.f32 %v114, %v56
  %v127 = vmul.f32 %v117, %v56
  %v128 = vmul.f32 %v120, %v56
  %v129 = vadd.f32 %v121, 1e-06
  %v130 = vadd.f32 %v122, 1e-06
  %v131 = vadd.f32 %v123, 1e-06
  %v132 = vadd.f32 %v124, 1e-06
  %v133 = vadd.f32 %v125, 1e-06
  %v134 = vadd.f32 %v126, 1e-06
  %v135 = vadd.f32 %v127, 1e-06
  %v136 = vadd.f32 %v128, 1e-06
  %v137 = vrsqrt.pop %v129
  %v138 = vrsqrt.pop %v130
  %v139 = vrsqrt.pop %v131
  %v140 = vrsqrt.pop %v132
  %v141 = vrsqrt.pop %v133
  %v142 = vrsqrt.pop %v134
  %v143 = vrsqrt.pop %v135
  %v144 = vrsqrt.pop %v136
  %v145 = vmul.f32 %v65, %v137
  %v146 = vmul.f32 %v66, %v137
  %v147 = vmul.f32 %v67, %v138
  %v148 = vmul.f32 %v68, %v138
  %v149 = vmul.f32 %v69, %v139
  %v150 = vmul.f32 %v70, %v139
  %v151 = vmul.f32 %v71, %v140
  %v152 = vmul.f32 %v72, %v140
  %v153 = vmul.f32 %v73, %v141
  %v154 = vmul.f32 %v74, %v141
  %v155 = vmul.f32 %v75, %v142
  %v156 = vmul.f32 %v76, %v142
  %v157 = vmul.f32 %v77, %v143
  %v158 = vmul.f32 %v78, %v143
  %v159 = vmul.f32 %v79, %v144
  %v160 = vmul.f32 %v80, %v144
  %v161 = vld [vmem:[%s1] sm:$0x3]
  %v163 = vlaneseq
  %v164 = vshrl.u32 %v163, 7
  %v165 = vsub.s32 0, %v164
  %v166 = vrot.slane %v161, %v165
  %v167 = vlaneseq
  %v168 = vshrl.u32 %v167, 7
  %v169 = vsub.s32 1, %v168
  %v170 = vrot.slane %v161, %v169
  %v173 = vmul.f32 %v145, %v166
  %v174 = vmul.f32 %v146, %v170
  %v175 = vmul.f32 %v147, %v166
  %v176 = vmul.f32 %v148, %v170
  %v177 = vmul.f32 %v149, %v166
  %v178 = vmul.f32 %v150, %v170
  %v179 = vmul.f32 %v151, %v166
  %v180 = vmul.f32 %v152, %v170
  %v181 = vmul.f32 %v153, %v166
  %v182 = vmul.f32 %v154, %v170
  %v183 = vmul.f32 %v155, %v166
  %v184 = vmul.f32 %v156, %v170
  %v185 = vmul.f32 %v157, %v166
  %v186 = vmul.f32 %v158, %v170
  %v187 = vmul.f32 %v159, %v166
  %v188 = vmul.f32 %v160, %v170
  %v189 = vld [vmem:[%s2] sm:$0x3]
  %v191 = vlaneseq
  %v192 = vshrl.u32 %v191, 7
  %v193 = vsub.s32 0, %v192
  %v194 = vrot.slane %v189, %v193
  %v195 = vlaneseq
  %v196 = vshrl.u32 %v195, 7
  %v197 = vsub.s32 1, %v196
  %v198 = vrot.slane %v189, %v197
  %v201 = vadd.f32 %v173, %v194
  %v202 = vadd.f32 %v174, %v198
  %v203 = vadd.f32 %v175, %v194
  %v204 = vadd.f32 %v176, %v198
  %v205 = vadd.f32 %v177, %v194
  %v206 = vadd.f32 %v178, %v198
  %v207 = vadd.f32 %v179, %v194
  %v208 = vadd.f32 %v180, %v198
  %v209 = vadd.f32 %v181, %v194
  %v210 = vadd.f32 %v182, %v198
  %v211 = vadd.f32 %v183, %v194
  %v212 = vadd.f32 %v184, %v198
  %v213 = vadd.f32 %v185, %v194
  %v214 = vadd.f32 %v186, %v198
  %v215 = vadd.f32 %v187, %v194
  %v216 = vadd.f32 %v188, %v198
  %217 = vst [vmem:[%s3] sm:$0xff] %v201
  %218 = vst [vmem:[%s3 + $0x8] sm:$0xff] %v202
  %219 = vst [vmem:[%s3 + $0x10] sm:$0xff] %v203
  %220 = vst [vmem:[%s3 + $0x18] sm:$0xff] %v204
  %221 = vst [vmem:[%s3 + $0x20] sm:$0xff] %v205
  %222 = vst [vmem:[%s3 + $0x28] sm:$0xff] %v206
  %223 = vst [vmem:[%s3 + $0x30] sm:$0xff] %v207
  %224 = vst [vmem:[%s3 + $0x38] sm:$0xff] %v208
  %225 = vst [vmem:[%s3 + $0x40] sm:$0xff] %v209
  %226 = vst [vmem:[%s3 + $0x48] sm:$0xff] %v210
  %227 = vst [vmem:[%s3 + $0x50] sm:$0xff] %v211
  %228 = vst [vmem:[%s3 + $0x58] sm:$0xff] %v212
  %229 = vst [vmem:[%s3 + $0x60] sm:$0xff] %v213
  %230 = vst [vmem:[%s3 + $0x68] sm:$0xff] %v214
  %231 = vst [vmem:[%s3 + $0x70] sm:$0xff] %v215
  %232 = vst [vmem:[%s3 + $0x78] sm:$0xff] %v216
  %vm233 = vcmask 7168
  %v234 = vsel %vm233, %v57, %v137
  %v235 = vsel %vm233, %v58, %v138
  %v236 = vsel %vm233, %v59, %v139
  %v237 = vsel %vm233, %v60, %v140
  %v238 = vsel %vm233, %v61, %v141
  %v239 = vsel %vm233, %v62, %v142
  %v240 = vsel %vm233, %v63, %v143
  %v241 = vsel %vm233, %v64, %v144
  %vm242 = vcmask 15360
  %243 = vst.msk [vmem:[%s4] sm:$0xff] %vm242, %v234
  %244 = vst.msk [vmem:[%s4 + $0x8] sm:$0xff] %vm242, %v235
  %245 = vst.msk [vmem:[%s4 + $0x10] sm:$0xff] %vm242, %v236
  %246 = vst.msk [vmem:[%s4 + $0x18] sm:$0xff] %vm242, %v237
  %247 = vst.msk [vmem:[%s4 + $0x20] sm:$0xff] %vm242, %v238
  %248 = vst.msk [vmem:[%s4 + $0x28] sm:$0xff] %vm242, %v239
  %249 = vst.msk [vmem:[%s4 + $0x30] sm:$0xff] %vm242, %v240
  %250 = vst.msk [vmem:[%s4 + $0x38] sm:$0xff] %vm242, %v241
  // Predicated region
  $region14: #{block_forward.4} parent=0 // pred_check
    _
  $region15: #{block_forward.4} parent=0 // pred_check_branch
    %252 = sbr.rel (0) target = $region17
  $region16: #{block_forward.4} parent=0 // pred_region
    _
  $region17: #{block_forward.4} parent=0 // pred_fallthru
    _
  // Predicated region
  $region18: #{block_forward.4} parent=0 // pred_check
    _
  $region19: #{block_forward.4} parent=0 // pred_check_branch
    %254 = sbr.rel (0) target = $region21
  $region20: #{block_forward.4} parent=0 // pred_region
    _
  $region21: #{block_forward.4} parent=0 // pred_fallthru
    _
  // Predicated region
  $region22: #{block_forward.4} parent=0 // pred_check
    _
  $region23: #{block_forward.4} parent=0 // pred_check_branch
    %256 = sbr.rel (0) target = $region25
  $region24: #{block_forward.4} parent=0 // pred_region
    _
  $region25: #{block_forward.4} parent=0 // pred_fallthru
    _
  // Predicated region
  $region26: #{block_forward.4} parent=0 // pred_check
    _
  $region27: #{block_forward.4} parent=0 // pred_check_branch
    %258 = sbr.rel (0) target = $region29
  $region28: #{block_forward.4} parent=0 // pred_region
    _
  $region29: #{block_forward.4} parent=0 // pred_fallthru
    _

// kernel: neg.2
$region0: #{neg.2}
  #allocation0 [shape = 's32[1]{0}', space=sflag, size = 0x4, scoped, tag = 'scoped memory for neg.2']
  %s0 = inlined_call_operand.vmem [shape: f32[32,32], index: 0, kind: input, shape index: {}]
  %s1 = inlined_call_operand.vmem [shape: f32[32,32], index: 1, kind: output, shape index: {}]
  %v2 = vld [vmem:[%s0] sm:$0xff]
  %3 = xla_tuple %v2
  %4 = xla_tuple %3
  %v5 = vxor.u32 %v2, 2147483648
  %6 = xla_tuple %v5
  %7 = vst [vmem:[%s1] sm:$0xff] %v5
  %s8 = scalar_lea.vmem %s0, 8
  %v9 = vld [vmem:[%s8] sm:$0xff]
  %10 = xla_tuple %v9
  %11 = xla_tuple %10
  %v12 = vxor.u32 %v9, 2147483648
  %13 = xla_tuple %v12
  %s14 = scalar_lea.vmem %s1, 8
  %15 = vst [vmem:[%s14] sm:$0xff] %v12
  %s16 = scalar_lea.vmem %s0, 16
  %v17 = vld [vmem:[%s16] sm:$0xff]
  %18 = xla_tuple %v17
  %19 = xla_tuple %18
  %v20 = vxor.u32 %v17, 2147483648
  %21 = xla_tuple %v20
  %s22 = scalar_lea.vmem %s1, 16
  %23 = vst [vmem:[%s22] sm:$0xff] %v20
  %s24 = scalar_lea.vmem %s0, 24
  %v25 = vld [vmem:[%s24] sm:$0xff]
  %26 = xla_tuple %v25
  %27 = xla_tuple %26
  %v28 = vxor.u32 %v25, 2147483648
  %29 = xla_tuple %v28
  %s30 = scalar_lea.vmem %s1, 24
  %31 = vst [vmem:[%s30] sm:$0xff] %v28

// kernel: block_forward.5
$region0: #{block_forward.5}
  #allocation0 [shape = 'u32[]', space=smem, size = 0x4, offset = 0x4, fixed_abs, tag = 'smem constant byte address 0x4 - core index']
  #allocation1 [shape = 'u32[144,128]{1,0:T(1,128)}', space=vmem, size = 0x12000, scoped, tag = 'internal scratch']
  %s0 = inlined_call_operand.vmem [shape: f32[2,32,256], index: 0, kind: input, shape index: {}]
  %s1 = inlined_call_operand.vmem [shape: f32[2,32,256], index: 1, kind: input, shape index: {}]
  %s2 = inlined_call_operand.vmem [shape: f32[64,32], index: 2, kind: input, shape index: {}]
  %s3 = inlined_call_operand.vmem [shape: f32[64,32], index: 3, kind: input, shape index: {}]
  %s4 = inlined_call_operand.vmem [shape: f32[32,64], index: 4, kind: input, shape index: {}]
  %s5 = inlined_call_operand.vmem [shape: f32[32,64], index: 5, kind: input, shape index: {}]
  %s6 = inlined_call_operand.vmem [shape: f32[2,32,256], index: 6, kind: output, shape index: {0}]
  %s7 = inlined_call_operand.vmem [shape: f32[2,32,256], index: 7, kind: output, shape index: {1}]
  %8 = xla_tuple %s6, %s7
  %s9 = sld [smem:[#allocation0]]
  $region65: #{block_forward.5} parent=0
    _
  %s11 = ssub.s32 1, %s9
  %s12 = scalar_select 0, %s11, %s9
  loop: start=0, step=1, limit=4
  $region2: #{block_forward.5} parent=0 // loop_pre_header
    _
  $region3: #{block_forward.5} parent=0 // loop_header
    %s14 = sphi 0, %s18
    %p15 = scmp.ge.s32.totalorder %s14, 4
    %s21 = sphi 0, %s33
    %s22 = sphi 0, %s29
    %s23 = sphi 0, %s21
    %s24 = sphi 0, %s22
    %s25 = sphi 0, %s23
    %s26 = sphi 0, %s24
    %s38 = sphi 0, %s40
    %s41 = sphi 0, %s38
    %s42 = sphi 0, %s41
    %s58 = sphi 0, %s42
    %s66 = sphi 0, %s68
    %s69 = sphi 0, %s66
    %s70 = sphi 0, %s69
    %s86 = sphi 0, %s70
    %s90 = sphi 0, %s90
    %s92 = sphi 0, %s90
    %s93 = sphi 0, %s92
    %s107 = sphi 0, %s93
    %s111 = sphi 0, %s111
    %s113 = sphi 0, %s111
    %s114 = sphi 0, %s113
    %s128 = sphi 0, %s114
    %s132 = sphi 0, %s132
    %s134 = sphi 0, %s132
    %s135 = sphi 0, %s134
    %s149 = sphi 0, %s135
    %s153 = sphi 0, %s153
    %s155 = sphi 0, %s153
    %s156 = sphi 0, %s155
    %s170 = sphi 0, %s156
    %s178 = sphi 0, %s180
    %s181 = sphi 0, %s178
    %s182 = sphi 0, %s181
    %s198 = sphi 0, %s182
    %s206 = sphi 0, %s208
    %s209 = sphi 0, %s206
    %s210 = sphi 0, %s209
    %s226 = sphi 0, %s210
  $region4: #{block_forward.5} parent=0 // loop_header_branch
    %17 = sbr.rel (%p15) target = $region8
  $region5: #{block_forward.5} parent=0 // loop_body
    %s19 = ssub.s32 %s14, 1
    %s20 = ssub.s32 %s14, 2
    %s27 = sadd.s32 1, %s22
    %p28 = scmp.ge.s32.totalorder %s27, 1
    %s29 = scalar_select %p28, 0, %s27
    %s30 = sadd.s32 1, %s21
    %s31 = scalar_select %p28, %s30, %s21
    %p32 = scmp.ge.s32.totalorder %s31, 2
    %s33 = scalar_select %p32, 0, %s31
    %s34 = ssub.s32 %s21, %s33
    %s35 = ssub.s32 %s22, %s29
    %s36 = sor.u32 %s34, %s35
    %p37 = scmp.eq.s32.totalorder %s36, 0
    %s39 = sadd.s32 %s38, 1
    %s40 = scalar_select %p37, %s38, %s39
    %p43 = pneg %p37
    %p44 = scmp.eq.s32.totalorder %s14, 1
    %p45 = por %p43, %p44
    %p46 = scmp.ne.s32.totalorder %s38, %s41
    %p47 = scmp.eq.s32.totalorder %s14, 0
    %p48 = por %p46, %p47
    %p49 = scmp.ne.s32.totalorder %s38, %s41
    %p50 = scmp.eq.s32.totalorder %s19, 1
    %p51 = por %p49, %p50
    %p52 = scmp.ne.s32.totalorder %s41, %s42
    %p53 = scmp.eq.s32.totalorder %s19, 0
    %p54 = por %p52, %p53
    %p55 = scmp.ne.s32.totalorder %s41, %s42
    %p56 = scmp.eq.s32.totalorder %s20, 1
    %p57 = por %p55, %p56
    %p59 = scmp.ne.s32.totalorder %s42, %s58
    %p60 = scmp.eq.s32.totalorder %s20, 0
    %p61 = por %p59, %p60
    %s62 = ssub.s32 %s21, %s33
    %s63 = ssub.s32 %s22, %s29
    %s64 = sor.u32 %s62, %s63
    %p65 = scmp.eq.s32.totalorder %s64, 0
    %s67 = sadd.s32 %s66, 1
    %s68 = scalar_select %p65, %s66, %s67
    %p71 = pneg %p65
    %p72 = scmp.eq.s32.totalorder %s14, 1
    %p73 = por %p71, %p72
    %p74 = scmp.ne.s32.totalorder %s66, %s69
    %p75 = scmp.eq.s32.totalorder %s14, 0
    %p76 = por %p74, %p75
    %p77 = scmp.ne.s32.totalorder %s66, %s69
    %p78 = scmp.eq.s32.totalorder %s19, 1
    %p79 = por %p77, %p78
    %p80 = scmp.ne.s32.totalorder %s69, %s70
    %p81 = scmp.eq.s32.totalorder %s19, 0
    %p82 = por %p80, %p81
    %p83 = scmp.ne.s32.totalorder %s69, %s70
    %p84 = scmp.eq.s32.totalorder %s20, 1
    %p85 = por %p83, %p84
    %p87 = scmp.ne.s32.totalorder %s70, %s86
    %p88 = scmp.eq.s32.totalorder %s20, 0
    %p89 = por %p87, %p88
    %s91 = sadd.s32 %s90, 1
    %p94 = scmp.eq.s32.totalorder %s14, 1
    %p95 = scmp.ne.s32.totalorder %s90, %s92
    %p96 = scmp.eq.s32.totalorder %s14, 0
    %p97 = por %p95, %p96
    %p98 = scmp.ne.s32.totalorder %s90, %s92
    %p99 = scmp.eq.s32.totalorder %s19, 1
    %p100 = por %p98, %p99
    %p101 = scmp.ne.s32.totalorder %s92, %s93
    %p102 = scmp.eq.s32.totalorder %s19, 0
    %p103 = por %p101, %p102
    %p104 = scmp.ne.s32.totalorder %s92, %s93
    %p105 = scmp.eq.s32.totalorder %s20, 1
    %p106 = por %p104, %p105
    %p108 = scmp.ne.s32.totalorder %s93, %s107
    %p109 = scmp.eq.s32.totalorder %s20, 0
    %p110 = por %p108, %p109
    %s112 = sadd.s32 %s111, 1
    %p115 = scmp.eq.s32.totalorder %s14, 1
    %p116 = scmp.ne.s32.totalorder %s111, %s113
    %p117 = scmp.eq.s32.totalorder %s14, 0
    %p118 = por %p116, %p117
    %p119 = scmp.ne.s32.totalorder %s111, %s113
    %p120 = scmp.eq.s32.totalorder %s19, 1
    %p121 = por %p119, %p120
    %p122 = scmp.ne.s32.totalorder %s113, %s114
    %p123 = scmp.eq.s32.totalorder %s19, 0
    %p124 = por %p122, %p123
    %p125 = scmp.ne.s32.totalorder %s113, %s114
    %p126 = scmp.eq.s32.totalorder %s20, 1
    %p127 = por %p125, %p126
    %p129 = scmp.ne.s32.totalorder %s114, %s128
    %p130 = scmp.eq.s32.totalorder %s20, 0
    %p131 = por %p129, %p130
    %s133 = sadd.s32 %s132, 1
    %p136 = scmp.eq.s32.totalorder %s14, 1
    %p137 = scmp.ne.s32.totalorder %s132, %s134
    %p138 = scmp.eq.s32.totalorder %s14, 0
    %p139 = por %p137, %p138
    %p140 = scmp.ne.s32.totalorder %s132, %s134
    %p141 = scmp.eq.s32.totalorder %s19, 1
    %p142 = por %p140, %p141
    %p143 = scmp.ne.s32.totalorder %s134, %s135
    %p144 = scmp.eq.s32.totalorder %s19, 0
    %p145 = por %p143, %p144
    %p146 = scmp.ne.s32.totalorder %s134, %s135
    %p147 = scmp.eq.s32.totalorder %s20, 1
    %p148 = por %p146, %p147
    %p150 = scmp.ne.s32.totalorder %s135, %s149
    %p151 = scmp.eq.s32.totalorder %s20, 0
    %p152 = por %p150, %p151
    %s154 = sadd.s32 %s153, 1
    %p157 = scmp.eq.s32.totalorder %s14, 1
    %p158 = scmp.ne.s32.totalorder %s153, %s155
    %p159 = scmp.eq.s32.totalorder %s14, 0
    %p160 = por %p158, %p159
    %p161 = scmp.ne.s32.totalorder %s153, %s155
    %p162 = scmp.eq.s32.totalorder %s19, 1
    %p163 = por %p161, %p162
    %p164 = scmp.ne.s32.totalorder %s155, %s156
    %p165 = scmp.eq.s32.totalorder %s19, 0
    %p166 = por %p164, %p165
    %p167 = scmp.ne.s32.totalorder %s155, %s156
    %p168 = scmp.eq.s32.totalorder %s20, 1
    %p169 = por %p167, %p168
    %p171 = scmp.ne.s32.totalorder %s156, %s170
    %p172 = scmp.eq.s32.totalorder %s20, 0
    %p173 = por %p171, %p172
    %s174 = ssub.s32 %s21, %s33
    %s175 = ssub.s32 %s22, %s29
    %s176 = sor.u32 %s174, %s175
    %p177 = scmp.eq.s32.totalorder %s176, 0
    %s179 = sadd.s32 %s178, 1
    %s180 = scalar_select %p177, %s178, %s179
    %p183 = pneg %p177
    %p184 = scmp.eq.s32.totalorder %s14, 1
    %p185 = por %p183, %p184
    %p186 = scmp.ne.s32.totalorder %s178, %s181
    %p187 = scmp.eq.s32.totalorder %s14, 0
    %p188 = por %p186, %p187
    %p189 = scmp.ne.s32.totalorder %s178, %s181
    %p190 = scmp.eq.s32.totalorder %s19, 1
    %p191 = por %p189, %p190
    %p192 = scmp.ne.s32.totalorder %s181, %s182
    %p193 = scmp.eq.s32.totalorder %s19, 0
    %p194 = por %p192, %p193
    %p195 = scmp.ne.s32.totalorder %s181, %s182
    %p196 = scmp.eq.s32.totalorder %s20, 1
    %p197 = por %p195, %p196
    %p199 = scmp.ne.s32.totalorder %s182, %s198
    %p200 = scmp.eq.s32.totalorder %s20, 0
    %p201 = por %p199, %p200
    %s202 = ssub.s32 %s21, %s33
    %s203 = ssub.s32 %s22, %s29
    %s204 = sor.u32 %s202, %s203
    %p205 = scmp.eq.s32.totalorder %s204, 0
    %s207 = sadd.s32 %s206, 1
    %s208 = scalar_select %p205, %s206, %s207
    %p211 = pneg %p205
    %p212 = scmp.eq.s32.totalorder %s14, 1
    %p213 = por %p211, %p212
    %p214 = scmp.ne.s32.totalorder %s206, %s209
    %p215 = scmp.eq.s32.totalorder %s14, 0
    %p216 = por %p214, %p215
    %p217 = scmp.ne.s32.totalorder %s206, %s209
    %p218 = scmp.eq.s32.totalorder %s19, 1
    %p219 = por %p217, %p218
    %p220 = scmp.ne.s32.totalorder %s209, %s210
    %p221 = scmp.eq.s32.totalorder %s19, 0
    %p222 = por %p220, %p221
    %p223 = scmp.ne.s32.totalorder %s209, %s210
    %p224 = scmp.eq.s32.totalorder %s20, 1
    %p225 = por %p223, %p224
    %p227 = scmp.ne.s32.totalorder %s210, %s226
    %p228 = scmp.eq.s32.totalorder %s20, 0
    %p229 = por %p227, %p228
    %p230 = scmp.le.s32.totalorder 1, %s14
    %p231 = scmp.lt.s32.totalorder %s14, 3
    %p232 = pnand %p230, %p231
    %p233 = pneg %p232
    // Predicated region
    $region9: #{block_forward.5} parent=5 // pred_check
      _
    $region10: #{block_forward.5} parent=5 // pred_check_branch
      %235 = sbr.rel (%p232) target = $region12
    $region11: #{block_forward.5} parent=5 // pred_region
      %s236 = ssub.s32 %s14, 1
      // Predicated region
      $region13: #{block_forward.5} parent=11 // pred_check
        %p237 = pneg %p103
      $region14: #{block_forward.5} parent=11 // pred_check_branch
        %239 = sbr.rel (%p237) target = $region16
      $region15: #{block_forward.5} parent=11 // pred_region
        _
      $region16: #{block_forward.5} parent=11 // pred_fallthru
        _
      // Predicated region
      $region17: #{block_forward.5} parent=11 // pred_check
        %p240 = pneg %p124
      $region18: #{block_forward.5} parent=11 // pred_check_branch
        %242 = sbr.rel (%p240) target = $region20
      $region19: #{block_forward.5} parent=11 // pred_region
        _
      $region20: #{block_forward.5} parent=11 // pred_fallthru
        _
      // Predicated region
      $region21: #{block_forward.5} parent=11 // pred_check
        %p243 = pneg %p145
      $region22: #{block_forward.5} parent=11 // pred_check_branch
        %245 = sbr.rel (%p243) target = $region24
      $region23: #{block_forward.5} parent=11 // pred_region
        _
      $region24: #{block_forward.5} parent=11 // pred_fallthru
        _
      // Predicated region
      $region25: #{block_forward.5} parent=11 // pred_check
        %p246 = pneg %p166
      $region26: #{block_forward.5} parent=11 // pred_check_branch
        %248 = sbr.rel (%p246) target = $region28
      $region27: #{block_forward.5} parent=11 // pred_region
        _
      $region28: #{block_forward.5} parent=11 // pred_fallthru
        _
    $region12: #{block_forward.5} parent=5 // pred_fallthru
      _
    %p249 = scmp.lt.s32.totalorder %s14, 2
    // Predicated region
    $region29: #{block_forward.5} parent=5 // pred_check
      %p250 = pneg %p249
    $region30: #{block_forward.5} parent=5 // pred_check_branch
      %252 = sbr.rel (%p250) target = $region32
    $region31: #{block_forward.5} parent=5 // pred_region
      // Predicated region
      $region33: #{block_forward.5} parent=31 // pred_check
        %p253 = pneg %p48
      $region34: #{block_forward.5} parent=31 // pred_check_branch
        %255 = sbr.rel (%p253) target = $region36
      $region35: #{block_forward.5} parent=31 // pred_region
        %s256 = smul.u32 2, %s22
        %p257 = scmp.lt.s32.totalorder %s21, 1
        %s258 = scalar_select %p257, %s21, 1
        %p259 = scmp.lt.s32.totalorder %s256, 1
        %s260 = scalar_select %p259, %s256, 1
        %s261 = smul.addr %s258, 8
        %s262 = sadd.s32 %s260, %s261
        %s263 = smul.addr %s262, 8
        %s264 = scalar_lea.vmem %s0, %s263
        %s265 = smul.u32 2, %s22
      $region36: #{block_forward.5} parent=31 // pred_fallthru
        _
      // Predicated region
      $region37: #{block_forward.5} parent=31 // pred_check
        %p266 = pneg %p76
      $region38: #{block_forward.5} parent=31 // pred_check_branch
        %268 = sbr.rel (%p266) target = $region40
      $region39: #{block_forward.5} parent=31 // pred_region
        %s269 = smul.u32 2, %s22
        %p270 = scmp.lt.s32.totalorder %s21, 1
        %s271 = scalar_select %p270, %s21, 1
        %p272 = scmp.lt.s32.totalorder %s269, 1
        %s273 = scalar_select %p272, %s269, 1
        %s274 = smul.addr %s271, 8
        %s275 = sadd.s32 %s273, %s274
        %s276 = smul.addr %s275, 8
        %s277 = scalar_lea.vmem %s1, %s276
        %s278 = smul.u32 2, %s22
      $region40: #{block_forward.5} parent=31 // pred_fallthru
        _
    $region32: #{block_forward.5} parent=5 // pred_fallthru
      _
    %p279 = scmp.le.s32.totalorder 1, %s14
    %p280 = scmp.lt.s32.totalorder %s14, 3
    %p281 = pnand %p279, %p280
    %p282 = pneg %p281
    // Predicated region
    $region41: #{block_forward.5} parent=5 // pred_check
      _
    $region42: #{block_forward.5} parent=5 // pred_check_branch
      %284 = sbr.rel (%p281) target = $region44
    $region43: #{block_forward.5} parent=5 // pred_region
      %s285 = ssub.s32 %s14, 1
      %s286 = smul.u32 2, %s24
      %p287 = scmp.lt.s32.totalorder %s23, 1
      %s288 = scalar_select %p287, %s23, 1
      %p289 = scmp.lt.s32.totalorder %s286, 1
      %s290 = scalar_select %p289, %s286, 1
      %s291 = smul.addr %s288, 8
      %s292 = sadd.s32 %s290, %s291
      %s293 = smul.addr %s292, 8
      %s294 = scalar_lea.vmem %s0, %s293
      %p295 = pneg %p54
      %p296 = pneg %p51
      %s297 = smul.u32 2, %s24
      %p298 = scmp.lt.s32.totalorder %s23, 1
      %s299 = scalar_select %p298, %s23, 1
      %p300 = scmp.lt.s32.totalorder %s297, 1
      %s301 = scalar_select %p300, %s297, 1
      %s302 = smul.addr %s299, 8
      %s303 = sadd.s32 %s301, %s302
      %s304 = smul.addr %s303, 8
      %s305 = scalar_lea.vmem %s1, %s304
      %p306 = pneg %p82
      %p307 = pneg %p79
      %p308 = pneg %p103
      %p309 = pneg %p100
      %p310 = pneg %p124
      %p311 = pneg %p121
      %p312 = pneg %p145
      %p313 = pneg %p142
      %p314 = pneg %p166
      %p315 = pneg %p163
      %p316 = pneg %p194
      %p317 = pneg %p191
      %s318 = smul.u32 2, %s24
      %p319 = scmp.lt.s32.totalorder %s23, 1
      %s320 = scalar_select %p319, %s23, 1
      %p321 = scmp.lt.s32.totalorder %s318, 1
      %s322 = scalar_select %p321, %s318, 1
      %s323 = smul.addr %s320, 8
      %s324 = sadd.s32 %s322, %s323
      %s325 = smul.addr %s324, 8
      %s326 = scalar_lea.vmem %s6, %s325
      %p327 = pneg %p222
      %p328 = pneg %p219
      %s329 = smul.u32 2, %s24
      %p330 = scmp.lt.s32.totalorder %s23, 1
      %s331 = scalar_select %p330, %s23, 1
      %p332 = scmp.lt.s32.totalorder %s329, 1
      %s333 = scalar_select %p332, %s329, 1
      %s334 = smul.addr %s331, 8
      %s335 = sadd.s32 %s333, %s334
      %s336 = smul.addr %s335, 8
      %s337 = scalar_lea.vmem %s7, %s336
      %s338 = smul.u32 2, %s24
      %p339 = scmp.lt.s32.totalorder %s23, 1
      %s340 = scalar_select %p339, %s23, 1
      %p341 = scmp.lt.s32.totalorder %s338, 1
      %s342 = scalar_select %p341, %s338, 1
      %s343 = smul.addr %s340, 8
      %s344 = sadd.s32 %s342, %s343
      %s345 = smul.addr %s344, 8
      %s346 = scalar_lea.vmem %s0, %s345
      %s347 = smul.u32 2, %s24
      %s348 = smul.u32 2, %s24
      %p349 = scmp.lt.s32.totalorder %s23, 1
      %s350 = scalar_select %p349, %s23, 1
      %p351 = scmp.lt.s32.totalorder %s348, 1
      %s352 = scalar_select %p351, %s348, 1
      %s353 = smul.addr %s350, 8
      %s354 = sadd.s32 %s352, %s353
      %s355 = smul.addr %s354, 8
      %s356 = scalar_lea.vmem %s1, %s355
      %s357 = smul.u32 2, %s24
      %s358 = smul.u32 2, %s24
      %p359 = scmp.lt.s32.totalorder %s23, 1
      %s360 = scalar_select %p359, %s23, 1
      %p361 = scmp.lt.s32.totalorder %s358, 1
      %s362 = scalar_select %p361, %s358, 1
      %s363 = smul.addr %s360, 8
      %s364 = sadd.s32 %s362, %s363
      %s365 = smul.addr %s364, 8
      %s366 = scalar_lea.vmem %s6, %s365
      %s367 = smul.u32 2, %s24
      %s368 = smul.u32 2, %s24
      %p369 = scmp.lt.s32.totalorder %s23, 1
      %s370 = scalar_select %p369, %s23, 1
      %p371 = scmp.lt.s32.totalorder %s368, 1
      %s372 = scalar_select %p371, %s368, 1
      %s373 = smul.addr %s370, 8
      %s374 = sadd.s32 %s372, %s373
      %s375 = smul.addr %s374, 8
      %s376 = scalar_lea.vmem %s7, %s375
      %s377 = smul.u32 2, %s24
      %v378 = vld [vmem:[%s346] sm:$0xff]
      %v379 = vld [vmem:[%s346 + $0x8] sm:$0xff]
      %v380 = vld [vmem:[%s346 + $0x10] sm:$0xff]
      %v381 = vld [vmem:[%s346 + $0x18] sm:$0xff]
      %v382 = vld [vmem:[%s346 + $0x20] sm:$0xff]
      %v383 = vld [vmem:[%s346 + $0x28] sm:$0xff]
      %v384 = vld [vmem:[%s346 + $0x30] sm:$0xff]
      %v385 = vld [vmem:[%s346 + $0x38] sm:$0xff]
      %v386 = vld [vmem:[%s356] sm:$0xff]
      %v387 = vld [vmem:[%s356 + $0x8] sm:$0xff]
      %v388 = vld [vmem:[%s356 + $0x10] sm:$0xff]
      %v389 = vld [vmem:[%s356 + $0x18] sm:$0xff]
      %v390 = vld [vmem:[%s356 + $0x20] sm:$0xff]
      %v391 = vld [vmem:[%s356 + $0x28] sm:$0xff]
      %v392 = vld [vmem:[%s356 + $0x30] sm:$0xff]
      %v393 = vld [vmem:[%s356 + $0x38] sm:$0xff]
      %v394 = vld [vmem:[%s2] sm:$0xff]
      %v395 = vld [vmem:[%s2 + $0x8] sm:$0xff]
      %v396 = vld [vmem:[%s2 + $0x10] sm:$0xff]
      %v397 = vld [vmem:[%s2 + $0x18] sm:$0xff]
      %v398 = vld [vmem:[%s2 + $0x20] sm:$0xff]
      %v399 = vld [vmem:[%s2 + $0x28] sm:$0xff]
      %v400 = vld [vmem:[%s2 + $0x30] sm:$0xff]
      %v401 = vld [vmem:[%s2 + $0x38] sm:$0xff]
      %v402 = vld [vmem:[%s3] sm:$0xff]
      %v403 = vld [vmem:[%s3 + $0x8] sm:$0xff]
      %v404 = vld [vmem:[%s3 + $0x10] sm:$0xff]
      %v405 = vld [vmem:[%s3 + $0x18] sm:$0xff]
      %v406 = vld [vmem:[%s3 + $0x20] sm:$0xff]
      %v407 = vld [vmem:[%s3 + $0x28] sm:$0xff]
      %v408 = vld [vmem:[%s3 + $0x30] sm:$0xff]
      %v409 = vld [vmem:[%s3 + $0x38] sm:$0xff]
      %vm410 = vcmask 261120
      %v412 = vsel %vm410, %v402, 0
      %v415 = vsel %vm410, %v403, 0
      %v418 = vsel %vm410, %v404, 0
      %v421 = vsel %vm410, %v405, 0
      %v424 = vsel %vm410, %v406, 0
      %v427 = vsel %vm410, %v407, 0
      %v430 = vsel %vm410, %v408, 0
      %v433 = vsel %vm410, %v409, 0
      %435 = vmatprep.subr.mxu0 0.0
      %436 = vmatpush1.msra.mxu0 0.0
      %437 = vmatprep.subr.mxu0 0.0
      %438 = vmatpush1.msra.mxu0 0.0
      %439 = vmatprep.subr.mxu0 0.0
      %440 = vmatpush1.msra.mxu0 0.0
      %441 = vmatprep.subr.mxu0 0.0
      %442 = vmatpush1.msra.mxu0 0.0
      %443 = vmatprep.subr.mxu0 0.0
      %444 = vmatpush1.msra.mxu0 0.0
      %445 = vmatprep.subr.mxu0 0.0
      %446 = vmatpush1.msra.mxu0 0.0
      %447 = vmatprep.subr.mxu0 0.0
      %448 = vmatpush1.msra.mxu0 0.0
      %449 = vmatprep.subr.mxu0 0.0
      %450 = vmatpush1.msra.mxu0 0.0
      %451 = vmatprep.subr.mxu0 0.0
      %452 = vmatpush1.msra.mxu0 0.0
      %453 = vmatprep.subr.mxu0 0.0
      %454 = vmatpush1.msra.mxu0 0.0
      %455 = vmatprep.subr.mxu0 0.0
      %456 = vmatpush1.msra.mxu0 0.0
      %457 = vmatprep.subr.mxu0 0.0
      %458 = vmatpush1.msra.mxu0 0.0
      %459 = vmatprep.subr.mxu0 %v393
      %460 = vmatpush1.msra.mxu0 %v392
      %461 = vmatprep.subr.mxu0 %v391
      %462 = vmatpush1.msra.mxu0 %v390
      %463 = vmatprep.subr.mxu0 %v389
      %464 = vmatpush1.msra.mxu0 %v388
      %465 = vmatprep.subr.mxu0 %v387
      %466 = vmatpush1.msra.mxu0 %v386
      %467 = vmatprep.subr.mxu0 0.0
      %468 = vmatpush2.msra.mxu0 0.0
      %469 = vmatprep.subr.mxu0 0.0
      %470 = vmatpush2.msra.mxu0 0.0
      %471 = vmatprep.subr.mxu0 0.0
      %472 = vmatpush2.msra.mxu0 0.0
      %473 = vmatprep.subr.mxu0 0.0
      %474 = vmatpush2.msra.mxu0 0.0
      %475 = vmatprep.subr.mxu0 0.0
      %476 = vmatpush2.msra.mxu0 0.0
      %477 = vmatprep.subr.mxu0 0.0
      %478 = vmatpush2.msra.mxu0 0.0
      %479 = vmatprep.subr.mxu0 0.0
      %480 = vmatpush2.msra.mxu0 0.0
      %481 = vmatprep.subr.mxu0 0.0
      %482 = vmatpush2.msra.mxu0 0.0
      %483 = vmatprep.subr.mxu0 0.0
      %484 = vmatpush2.msra.mxu0 0.0
      %485 = vmatprep.subr.mxu0 0.0
      %486 = vmatpush2.msra.mxu0 0.0
      %487 = vmatprep.subr.mxu0 0.0
      %488 = vmatpush2.msra.mxu0 0.0
      %489 = vmatprep.subr.mxu0 0.0
      %490 = vmatpush2.msra.mxu0 0.0
      %491 = vmatprep.subr.mxu0 0.0
      %492 = vmatpush2.msra.mxu0 0.0
      %493 = vmatprep.subr.mxu0 0.0
      %494 = vmatpush2.msra.mxu0 0.0
      %495 = vmatprep.subr.mxu0 0.0
      %496 = vmatpush2.msra.mxu0 0.0
      %497 = vmatprep.subr.mxu0 0.0
      %498 = vmatpush2.msra.mxu0 0.0
      %499 = vmatprep.mubr.f32.mxu0 0.0
      %500 = vmatmul.mubr.f32.gmra.mxu0 %v412
      %v501 = vpop.f32.mrf.mxu0
      %v502 = vadd.f32 0.0, %v501
      %v503 = vpop.f32.mrf.mxu0
      %v504 = vadd.f32 0.0, %v503
      %505 = vmatprep.mubr.f32.mxu0 0.0
      %506 = vmatmul.mubr.f32.gmra.mxu0 %v415
      %v507 = vpop.f32.mrf.mxu0
      %v508 = vadd.f32 0.0, %v507
      %v509 = vpop.f32.mrf.mxu0
      %v510 = vadd.f32 0.0, %v509
      %511 = vmatprep.mubr.f32.mxu0 0.0
      %512 = vmatmul.mubr.f32.gmra.mxu0 %v418
      %v513 = vpop.f32.mrf.mxu0
      %v514 = vadd.f32 0.0, %v513
      %v515 = vpop.f32.mrf.mxu0
      %v516 = vadd.f32 0.0, %v515
      %517 = vmatprep.mubr.f32.mxu0 0.0
      %518 = vmatmul.mubr.f32.gmra.mxu0 %v421
      %v519 = vpop.f32.mrf.mxu0
      %v520 = vadd.f32 0.0, %v519
      %v521 = vpop.f32.mrf.mxu0
      %v522 = vadd.f32 0.0, %v521
      %523 = vmatprep.mubr.f32.mxu0 0.0
      %524 = vmatmul.mubr.f32.gmra.mxu0 %v424
      %v525 = vpop.f32.mrf.mxu0
      %v526 = vadd.f32 0.0, %v525
      %v527 = vpop.f32.mrf.mxu0
      %v528 = vadd.f32 0.0, %v527
      %529 = vmatprep.mubr.f32.mxu0 0.0
      %530 = vmatmul.mubr.f32.gmra.mxu0 %v427
      %v531 = vpop.f32.mrf.mxu0
      %v532 = vadd.f32 0.0, %v531
      %v533 = vpop.f32.mrf.mxu0
      %v534 = vadd.f32 0.0, %v533
      %535 = vmatprep.mubr.f32.mxu0 0.0
      %536 = vmatmul.mubr.f32.gmra.mxu0 %v430
      %v537 = vpop.f32.mrf.mxu0
      %v538 = vadd.f32 0.0, %v537
      %v539 = vpop.f32.mrf.mxu0
      %v540 = vadd.f32 0.0, %v539
      %541 = vmatprep.mubr.f32.mxu0 0.0
      %542 = vmatmul.mubr.f32.gmra.mxu0 %v433
      %v543 = vpop.f32.mrf.mxu0
      %v544 = vadd.f32 0.0, %v543
      %v545 = vpop.f32.mrf.mxu0
      %v546 = vadd.f32 0.0, %v545
      %547 = vdwg.mxu0
      %v549 = vsel %vm410, %v394, 0
      %v552 = vsel %vm410, %v395, 0
      %v555 = vsel %vm410, %v396, 0
      %v558 = vsel %vm410, %v397, 0
      %v561 = vsel %vm410, %v398, 0
      %v564 = vsel %vm410, %v399, 0
      %v567 = vsel %vm410, %v400, 0
      %v570 = vsel %vm410, %v401, 0
      %572 = vmatprep.subr.mxu0 0.0
      %573 = vmatpush1.msra.mxu0 0.0
      %574 = vmatprep.subr.mxu0 0.0
      %575 = vmatpush1.msra.mxu0 0.0
      %576 = vmatprep.subr.mxu0 0.0
      %577 = vmatpush1.msra.mxu0 0.0
      %578 = vmatprep.subr.mxu0 0.0
      %579 = vmatpush1.msra.mxu0 0.0
      %580 = vmatprep.subr.mxu0 0.0
      %581 = vmatpush1.msra.mxu0 0.0
      %582 = vmatprep.subr.mxu0 0.0
      %583 = vmatpush1.msra.mxu0 0.0
      %584 = vmatprep.subr.mxu0 0.0
      %585 = vmatpush1.msra.mxu0 0.0
      %586 = vmatprep.subr.mxu0 0.0
      %587 = vmatpush1.msra.mxu0 0.0
      %588 = vmatprep.subr.mxu0 0.0
      %589 = vmatpush1.msra.mxu0 0.0
      %590 = vmatprep.subr.mxu0 0.0
      %591 = vmatpush1.msra.mxu0 0.0
      %592 = vmatprep.subr.mxu0 0.0
      %593 = vmatpush1.msra.mxu0 0.0
      %594 = vmatprep.subr.mxu0 0.0
      %595 = vmatpush1.msra.mxu0 0.0
      %596 = vmatprep.subr.mxu0 %v385
      %597 = vmatpush1.msra.mxu0 %v384
      %598 = vmatprep.subr.mxu0 %v383
      %599 = vmatpush1.msra.mxu0 %v382
      %600 = vmatprep.subr.mxu0 %v381
      %601 = vmatpush1.msra.mxu0 %v380
      %602 = vmatprep.subr.mxu0 %v379
      %603 = vmatpush1.msra.mxu0 %v378
      %604 = vmatprep.subr.mxu0 0.0
      %605 = vmatpush2.msra.mxu0 0.0
      %606 = vmatprep.subr.mxu0 0.0
      %607 = vmatpush2.msra.mxu0 0.0
      %608 = vmatprep.subr.mxu0 0.0
      %609 = vmatpush2.msra.mxu0 0.0
      %610 = vmatprep.subr.mxu0 0.0
      %611 = vmatpush2.msra.mxu0 0.0
      %612 = vmatprep.subr.mxu0 0.0
      %613 = vmatpush2.msra.mxu0 0.0
      %614 = vmatprep.subr.mxu0 0.0
      %615 = vmatpush2.msra.mxu0 0.0
      %616 = vmatprep.subr.mxu0 0.0
      %617 = vmatpush2.msra.mxu0 0.0
      %618 = vmatprep.subr.mxu0 0.0
      %619 = vmatpush2.msra.mxu0 0.0
      %620 = vmatprep.subr.mxu0 0.0
      %621 = vmatpush2.msra.mxu0 0.0
      %622 = vmatprep.subr.mxu0 0.0
      %623 = vmatpush2.msra.mxu0 0.0
      %624 = vmatprep.subr.mxu0 0.0
      %625 = vmatpush2.msra.mxu0 0.0
      %626 = vmatprep.subr.mxu0 0.0
      %627 = vmatpush2.msra.mxu0 0.0
      %628 = vmatprep.subr.mxu0 0.0
      %629 = vmatpush2.msra.mxu0 0.0
      %630 = vmatprep.subr.mxu0 0.0
      %631 = vmatpush2.msra.mxu0 0.0
      %632 = vmatprep.subr.mxu0 0.0
      %633 = vmatpush2.msra.mxu0 0.0
      %634 = vmatprep.subr.mxu0 0.0
      %635 = vmatpush2.msra.mxu0 0.0
      %636 = vmatprep.mubr.f32.mxu0 0.0
      %637 = vmatmul.mubr.f32.gmra.mxu0 %v549
      %v638 = vpop.f32.mrf.mxu0
      %v639 = vadd.f32 %v502, %v638
      %v640 = vpop.f32.mrf.mxu0
      %v641 = vadd.f32 %v504, %v640
      %642 = vmatprep.mubr.f32.mxu0 0.0
      %643 = vmatmul.mubr.f32.gmra.mxu0 %v552
      %v644 = vpop.f32.mrf.mxu0
      %v645 = vadd.f32 %v508, %v644
      %v646 = vpop.f32.mrf.mxu0
      %v647 = vadd.f32 %v510, %v646
      %648 = vmatprep.mubr.f32.mxu0 0.0
      %649 = vmatmul.mubr.f32.gmra.mxu0 %v555
      %v650 = vpop.f32.mrf.mxu0
      %v651 = vadd.f32 %v514, %v650
      %v652 = vpop.f32.mrf.mxu0
      %v653 = vadd.f32 %v516, %v652
      %654 = vmatprep.mubr.f32.mxu0 0.0
      %655 = vmatmul.mubr.f32.gmra.mxu0 %v558
      %v656 = vpop.f32.mrf.mxu0
      %v657 = vadd.f32 %v520, %v656
      %v658 = vpop.f32.mrf.mxu0
      %v659 = vadd.f32 %v522, %v658
      %660 = vmatprep.mubr.f32.mxu0 0.0
      %661 = vmatmul.mubr.f32.gmra.mxu0 %v561
      %v662 = vpop.f32.mrf.mxu0
      %v663 = vadd.f32 %v526, %v662
      %v664 = vpop.f32.mrf.mxu0
      %v665 = vadd.f32 %v528, %v664
      %666 = vmatprep.mubr.f32.mxu0 0.0
      %667 = vmatmul.mubr.f32.gmra.mxu0 %v564
      %v668 = vpop.f32.mrf.mxu0
      %v669 = vadd.f32 %v532, %v668
      %v670 = vpop.f32.mrf.mxu0
      %v671 = vadd.f32 %v534, %v670
      %672 = vmatprep.mubr.f32.mxu0 0.0
      %673 = vmatmul.mubr.f32.gmra.mxu0 %v567
      %v674 = vpop.f32.mrf.mxu0
      %v675 = vadd.f32 %v538, %v674
      %v676 = vpop.f32.mrf.mxu0
      %v677 = vadd.f32 %v540, %v676
      %678 = vmatprep.mubr.f32.mxu0 0.0
      %679 = vmatmul.mubr.f32.gmra.mxu0 %v570
      %v680 = vpop.f32.mrf.mxu0
      %v681 = vadd.f32 %v544, %v680
      %v682 = vpop.f32.mrf.mxu0
      %v683 = vadd.f32 %v546, %v682
      %684 = vdwg.mxu0
      %v685 = vmax.f32 %v639, 0.0
      %v686 = vmax.f32 %v641, 0.0
      %v687 = vmax.f32 %v645, 0.0
      %v688 = vmax.f32 %v647, 0.0
      %v689 = vmax.f32 %v651, 0.0
      %v690 = vmax.f32 %v653, 0.0
      %v691 = vmax.f32 %v657, 0.0
      %v692 = vmax.f32 %v659, 0.0
      %v693 = vmax.f32 %v663, 0.0
      %v694 = vmax.f32 %v665, 0.0
      %v695 = vmax.f32 %v669, 0.0
      %v696 = vmax.f32 %v671, 0.0
      %v697 = vmax.f32 %v675, 0.0
      %v698 = vmax.f32 %v677, 0.0
      %v699 = vmax.f32 %v681, 0.0
      %v700 = vmax.f32 %v683, 0.0
      %v701 = vld [vmem:[%s4] sm:$0xff]
      %v702 = vld [vmem:[%s4 + $0x8] sm:$0xff]
      %v703 = vld [vmem:[%s4 + $0x10] sm:$0xff]
      %v704 = vld [vmem:[%s4 + $0x18] sm:$0xff]
      %vm705 = vcmask 523264
      %v707 = vsel %vm705, %v701, 0
      %v710 = vsel %vm705, %v702, 0
      %v713 = vsel %vm705, %v703, 0
      %v716 = vsel %vm705, %v704, 0
      %718 = vmatprep.subr.mxu0 0.0
      %719 = vmatpush1.msra.mxu0 0.0
      %720 = vmatprep.subr.mxu0 0.0
      %721 = vmatpush1.msra.mxu0 0.0
      %722 = vmatprep.subr.mxu0 0.0
      %723 = vmatpush1.msra.mxu0 0.0
      %724 = vmatprep.subr.mxu0 0.0
      %725 = vmatpush1.msra.mxu0 0.0
      %726 = vmatprep.subr.mxu0 0.0
      %727 = vmatpush1.msra.mxu0 0.0
      %728 = vmatprep.subr.mxu0 0.0
      %729 = vmatpush1.msra.mxu0 0.0
      %730 = vmatprep.subr.mxu0 0.0
      %731 = vmatpush1.msra.mxu0 0.0
      %732 = vmatprep.subr.mxu0 0.0
      %733 = vmatpush1.msra.mxu0 0.0
      %734 = vmatprep.subr.mxu0 %v700
      %735 = vmatpush1.msra.mxu0 %v699
      %736 = vmatprep.subr.mxu0 %v698
      %737 = vmatpush1.msra.mxu0 %v697
      %738 = vmatprep.subr.mxu0 %v696
      %739 = vmatpush1.msra.mxu0 %v695
      %740 = vmatprep.subr.mxu0 %v694
      %741 = vmatpush1.msra.mxu0 %v693
      %742 = vmatprep.subr.mxu0 %v692
      %743 = vmatpush1.msra.mxu0 %v691
      %744 = vmatprep.subr.mxu0 %v690
      %745 = vmatpush1.msra.mxu0 %v689
      %746 = vmatprep.subr.mxu0 %v688
      %747 = vmatpush1.msra.mxu0 %v687
      %748 = vmatprep.subr.mxu0 %v686
      %749 = vmatpush1.msra.mxu0 %v685
      %750 = vmatprep.subr.mxu0 0.0
      %751 = vmatpush2.msra.mxu0 0.0
      %752 = vmatprep.subr.mxu0 0.0
      %753 = vmatpush2.msra.mxu0 0.0
      %754 = vmatprep.subr.mxu0 0.0
      %755 = vmatpush2.msra.mxu0 0.0
      %756 = vmatprep.subr.mxu0 0.0
      %757 = vmatpush2.msra.mxu0 0.0
      %758 = vmatprep.subr.mxu0 0.0
      %759 = vmatpush2.msra.mxu0 0.0
      %760 = vmatprep.subr.mxu0 0.0
      %761 = vmatpush2.msra.mxu0 0.0
      %762 = vmatprep.subr.mxu0 0.0
      %763 = vmatpush2.msra.mxu0 0.0
      %764 = vmatprep.subr.mxu0 0.0
      %765 = vmatpush2.msra.mxu0 0.0
      %766 = vmatprep.subr.mxu0 0.0
      %767 = vmatpush2.msra.mxu0 0.0
      %768 = vmatprep.subr.mxu0 0.0
      %769 = vmatpush2.msra.mxu0 0.0
      %770 = vmatprep.subr.mxu0 0.0
      %771 = vmatpush2.msra.mxu0 0.0
      %772 = vmatprep.subr.mxu0 0.0
      %773 = vmatpush2.msra.mxu0 0.0
      %774 = vmatprep.subr.mxu0 0.0
      %775 = vmatpush2.msra.mxu0 0.0
      %776 = vmatprep.subr.mxu0 0.0
      %777 = vmatpush2.msra.mxu0 0.0
      %778 = vmatprep.subr.mxu0 0.0
      %779 = vmatpush2.msra.mxu0 0.0
      %780 = vmatprep.subr.mxu0 0.0
      %781 = vmatpush2.msra.mxu0 0.0
      %782 = vmatprep.mubr.f32.mxu0 0.0
      %783 = vmatmul.mubr.f32.gmra.mxu0 %v707
      %v784 = vpop.f32.mrf.mxu0
      %v785 = vadd.f32 0.0, %v784
      %v786 = vpop.f32.mrf.mxu0
      %v787 = vadd.f32 0.0, %v786
      %788 = vmatprep.mubr.f32.mxu0 0.0
      %789 = vmatmul.mubr.f32.gmra.mxu0 %v710
      %v790 = vpop.f32.mrf.mxu0
      %v791 = vadd.f32 0.0, %v790
      %v792 = vpop.f32.mrf.mxu0
      %v793 = vadd.f32 0.0, %v792
      %794 = vmatprep.mubr.f32.mxu0 0.0
      %795 = vmatmul.mubr.f32.gmra.mxu0 %v713
      %v796 = vpop.f32.mrf.mxu0
      %v797 = vadd.f32 0.0, %v796
      %v798 = vpop.f32.mrf.mxu0
      %v799 = vadd.f32 0.0, %v798
      %800 = vmatprep.mubr.f32.mxu0 0.0
      %801 = vmatmul.mubr.f32.gmra.mxu0 %v716
      %v802 = vpop.f32.mrf.mxu0
      %v803 = vadd.f32 0.0, %v802
      %v804 = vpop.f32.mrf.mxu0
      %v805 = vadd.f32 0.0, %v804
      %806 = vdwg.mxu0
      %vm807 = vcmp.gt.f32.partialorder %v785, 0.01
      %vm808 = vcmp.gt.f32.partialorder %v787, 0.01
      %vm809 = vcmp.gt.f32.partialorder %v791, 0.01
      %vm810 = vcmp.gt.f32.partialorder %v793, 0.01
      %vm811 = vcmp.gt.f32.partialorder %v797, 0.01
      %vm812 = vcmp.gt.f32.partialorder %v799, 0.01
      %vm813 = vcmp.gt.f32.partialorder %v803, 0.01
      %vm814 = vcmp.gt.f32.partialorder %v805, 0.01
      %v815 = vsub.f32 %v785, 0.01
      %v816 = vsub.f32 %v787, 0.01
      %v817 = vsub.f32 %v791, 0.01
      %v818 = vsub.f32 %v793, 0.01
      %v819 = vsub.f32 %v797, 0.01
      %v820 = vsub.f32 %v799, 0.01
      %v821 = vsub.f32 %v803, 0.01
      %v822 = vsub.f32 %v805, 0.01
      %vm823 = vcmp.lt.f32.partialorder %v785, -0.01
      %vm824 = vcmp.lt.f32.partialorder %v787, -0.01
      %vm825 = vcmp.lt.f32.partialorder %v791, -0.01
      %vm826 = vcmp.lt.f32.partialorder %v793, -0.01
      %vm827 = vcmp.lt.f32.partialorder %v797, -0.01
      %vm828 = vcmp.lt.f32.partialorder %v799, -0.01
      %vm829 = vcmp.lt.f32.partialorder %v803, -0.01
      %vm830 = vcmp.lt.f32.partialorder %v805, -0.01
      %v831 = vadd.f32 %v785, 0.01
      %v832 = vadd.f32 %v787, 0.01
      %v833 = vadd.f32 %v791, 0.01
      %v834 = vadd.f32 %v793, 0.01
      %v835 = vadd.f32 %v797, 0.01
      %v836 = vadd.f32 %v799, 0.01
      %v837 = vadd.f32 %v803, 0.01
      %v838 = vadd.f32 %v805, 0.01
      %v839 = vsel %vm823, %v831, 0.0
      %v840 = vsel %vm824, %v832, 0.0
      %v841 = vsel %vm825, %v833, 0.0
      %v842 = vsel %vm826, %v834, 0.0
      %v843 = vsel %vm827, %v835, 0.0
      %v844 = vsel %vm828, %v836, 0.0
      %v845 = vsel %vm829, %v837, 0.0
      %v846 = vsel %vm830, %v838, 0.0
      %v847 = vsel %vm807, %v815, %v839
      %v848 = vsel %vm808, %v816, %v840
      %v849 = vsel %vm809, %v817, %v841
      %v850 = vsel %vm810, %v818, %v842
      %v851 = vsel %vm811, %v819, %v843
      %v852 = vsel %vm812, %v820, %v844
      %v853 = vsel %vm813, %v821, %v845
      %v854 = vsel %vm814, %v822, %v846
      %855 = vst [vmem:[%s366] sm:$0xff] %v847
      %856 = vst [vmem:[%s366 + $0x8] sm:$0xff] %v848
      %857 = vst [vmem:[%s366 + $0x10] sm:$0xff] %v849
      %858 = vst [vmem:[%s366 + $0x18] sm:$0xff] %v850
      %859 = vst [vmem:[%s366 + $0x20] sm:$0xff] %v851
      %860 = vst [vmem:[%s366 + $0x28] sm:$0xff] %v852
      %861 = vst [vmem:[%s366 + $0x30] sm:$0xff] %v853
      %862 = vst [vmem:[%s366 + $0x38] sm:$0xff] %v854
      %v863 = vld [vmem:[%s5] sm:$0xff]
      %v864 = vld [vmem:[%s5 + $0x8] sm:$0xff]
      %v865 = vld [vmem:[%s5 + $0x10] sm:$0xff]
      %v866 = vld [vmem:[%s5 + $0x18] sm:$0xff]
      %v868 = vsel %vm705, %v863, 0
      %v871 = vsel %vm705, %v864, 0
      %v874 = vsel %vm705, %v865, 0
      %v877 = vsel %vm705, %v866, 0
      %879 = vmatprep.subr.mxu0 0.0
      %880 = vmatpush1.msra.mxu0 0.0
      %881 = vmatprep.subr.mxu0 0.0
      %882 = vmatpush1.msra.mxu0 0.0
      %883 = vmatprep.subr.mxu0 0.0
      %884 = vmatpush1.msra.mxu0 0.0
      %885 = vmatprep.subr.mxu0 0.0
      %886 = vmatpush1.msra.mxu0 0.0
      %887 = vmatprep.subr.mxu0 0.0
      %888 = vmatpush1.msra.mxu0 0.0
      %889 = vmatprep.subr.mxu0 0.0
      %890 = vmatpush1.msra.mxu0 0.0
      %891 = vmatprep.subr.mxu0 0.0
      %892 = vmatpush1.msra.mxu0 0.0
      %893 = vmatprep.subr.mxu0 0.0
      %894 = vmatpush1.msra.mxu0 0.0
      %895 = vmatprep.subr.mxu0 %v700
      %896 = vmatpush1.msra.mxu0 %v699
      %897 = vmatprep.subr.mxu0 %v698
      %898 = vmatpush1.msra.mxu0 %v697
      %899 = vmatprep.subr.mxu0 %v696
      %900 = vmatpush1.msra.mxu0 %v695
      %901 = vmatprep.subr.mxu0 %v694
      %902 = vmatpush1.msra.mxu0 %v693
      %903 = vmatprep.subr.mxu0 %v692
      %904 = vmatpush1.msra.mxu0 %v691
      %905 = vmatprep.subr.mxu0 %v690
      %906 = vmatpush1.msra.mxu0 %v689
      %907 = vmatprep.subr.mxu0 %v688
      %908 = vmatpush1.msra.mxu0 %v687
      %909 = vmatprep.subr.mxu0 %v686
      %910 = vmatpush1.msra.mxu0 %v685
      %911 = vmatprep.subr.mxu0 0.0
      %912 = vmatpush2.msra.mxu0 0.0
      %913 = vmatprep.subr.mxu0 0.0
      %914 = vmatpush2.msra.mxu0 0.0
      %915 = vmatprep.subr.mxu0 0.0
      %916 = vmatpush2.msra.mxu0 0.0
      %917 = vmatprep.subr.mxu0 0.0
      %918 = vmatpush2.msra.mxu0 0.0
      %919 = vmatprep.subr.mxu0 0.0
      %920 = vmatpush2.msra.mxu0 0.0
      %921 = vmatprep.subr.mxu0 0.0
      %922 = vmatpush2.msra.mxu0 0.0
      %923 = vmatprep.subr.mxu0 0.0
      %924 = vmatpush2.msra.mxu0 0.0
      %925 = vmatprep.subr.mxu0 0.0
      %926 = vmatpush2.msra.mxu0 0.0
      %927 = vmatprep.subr.mxu0 0.0
      %928 = vmatpush2.msra.mxu0 0.0
      %929 = vmatprep.subr.mxu0 0.0
      %930 = vmatpush2.msra.mxu0 0.0
      %931 = vmatprep.subr.mxu0 0.0
      %932 = vmatpush2.msra.mxu0 0.0
      %933 = vmatprep.subr.mxu0 0.0
      %934 = vmatpush2.msra.mxu0 0.0
      %935 = vmatprep.subr.mxu0 0.0
      %936 = vmatpush2.msra.mxu0 0.0
      %937 = vmatprep.subr.mxu0 0.0
      %938 = vmatpush2.msra.mxu0 0.0
      %939 = vmatprep.subr.mxu0 0.0
      %940 = vmatpush2.msra.mxu0 0.0
      %941 = vmatprep.subr.mxu0 0.0
      %942 = vmatpush2.msra.mxu0 0.0
      %943 = vmatprep.mubr.f32.mxu0 0.0
      %944 = vmatmul.mubr.f32.gmra.mxu0 %v868
      %v945 = vpop.f32.mrf.mxu0
      %v946 = vadd.f32 0.0, %v945
      %v947 = vpop.f32.mrf.mxu0
      %v948 = vadd.f32 0.0, %v947
      %949 = vmatprep.mubr.f32.mxu0 0.0
      %950 = vmatmul.mubr.f32.gmra.mxu0 %v871
      %v951 = vpop.f32.mrf.mxu0
      %v952 = vadd.f32 0.0, %v951
      %v953 = vpop.f32.mrf.mxu0
      %v954 = vadd.f32 0.0, %v953
      %955 = vmatprep.mubr.f32.mxu0 0.0
      %956 = vmatmul.mubr.f32.gmra.mxu0 %v874
      %v957 = vpop.f32.mrf.mxu0
      %v958 = vadd.f32 0.0, %v957
      %v959 = vpop.f32.mrf.mxu0
      %v960 = vadd.f32 0.0, %v959
      %961 = vmatprep.mubr.f32.mxu0 0.0
      %962 = vmatmul.mubr.f32.gmra.mxu0 %v877
      %v963 = vpop.f32.mrf.mxu0
      %v964 = vadd.f32 0.0, %v963
      %v965 = vpop.f32.mrf.mxu0
      %v966 = vadd.f32 0.0, %v965
      %967 = vdwg.mxu0
      %vm968 = vcmp.gt.f32.partialorder %v946, 0.01
      %vm969 = vcmp.gt.f32.partialorder %v948, 0.01
      %vm970 = vcmp.gt.f32.partialorder %v952, 0.01
      %vm971 = vcmp.gt.f32.partialorder %v954, 0.01
      %vm972 = vcmp.gt.f32.partialorder %v958, 0.01
      %vm973 = vcmp.gt.f32.partialorder %v960, 0.01
      %vm974 = vcmp.gt.f32.partialorder %v964, 0.01
      %vm975 = vcmp.gt.f32.partialorder %v966, 0.01
      %v976 = vsub.f32 %v946, 0.01
      %v977 = vsub.f32 %v948, 0.01
      %v978 = vsub.f32 %v952, 0.01
      %v979 = vsub.f32 %v954, 0.01
      %v980 = vsub.f32 %v958, 0.01
      %v981 = vsub.f32 %v960, 0.01
      %v982 = vsub.f32 %v964, 0.01
      %v983 = vsub.f32 %v966, 0.01
      %vm984 = vcmp.lt.f32.partialorder %v946, -0.01
      %vm985 = vcmp.lt.f32.partialorder %v948, -0.01
      %vm986 = vcmp.lt.f32.partialorder %v952, -0.01
      %vm987 = vcmp.lt.f32.partialorder %v954, -0.01
      %vm988 = vcmp.lt.f32.partialorder %v958, -0.01
      %vm989 = vcmp.lt.f32.partialorder %v960, -0.01
      %vm990 = vcmp.lt.f32.partialorder %v964, -0.01
      %vm991 = vcmp.lt.f32.partialorder %v966, -0.01
      %v992 = vadd.f32 %v946, 0.01
      %v993 = vadd.f32 %v948, 0.01
      %v994 = vadd.f32 %v952, 0.01
      %v995 = vadd.f32 %v954, 0.01
      %v996 = vadd.f32 %v958, 0.01
      %v997 = vadd.f32 %v960, 0.01
      %v998 = vadd.f32 %v964, 0.01
      %v999 = vadd.f32 %v966, 0.01
      %v1000 = vsel %vm984, %v992, 0.0
      %v1001 = vsel %vm985, %v993, 0.0
      %v1002 = vsel %vm986, %v994, 0.0
      %v1003 = vsel %vm987, %v995, 0.0
      %v1004 = vsel %vm988, %v996, 0.0
      %v1005 = vsel %vm989, %v997, 0.0
      %v1006 = vsel %vm990, %v998, 0.0
      %v1007 = vsel %vm991, %v999, 0.0
      %v1008 = vsel %vm968, %v976, %v1000
      %v1009 = vsel %vm969, %v977, %v1001
      %v1010 = vsel %vm970, %v978, %v1002
      %v1011 = vsel %vm971, %v979, %v1003
      %v1012 = vsel %vm972, %v980, %v1004
      %v1013 = vsel %vm973, %v981, %v1005
      %v1014 = vsel %vm974, %v982, %v1006
      %v1015 = vsel %vm975, %v983, %v1007
      %1016 = vst [vmem:[%s376] sm:$0xff] %v1008
      %1017 = vst [vmem:[%s376 + $0x8] sm:$0xff] %v1009
      %1018 = vst [vmem:[%s376 + $0x10] sm:$0xff] %v1010
      %1019 = vst [vmem:[%s376 + $0x18] sm:$0xff] %v1011
      %1020 = vst [vmem:[%s376 + $0x20] sm:$0xff] %v1012
      %1021 = vst [vmem:[%s376 + $0x28] sm:$0xff] %v1013
      %1022 = vst [vmem:[%s376 + $0x30] sm:$0xff] %v1014
      %1023 = vst [vmem:[%s376 + $0x38] sm:$0xff] %v1015
      %s1024 = smul.u32 2, %s24
      %p1025 = scmp.lt.s32.totalorder %s23, 1
      %s1026 = scalar_select %p1025, %s23, 1
      %p1027 = scmp.lt.s32.totalorder %s1024, 1
      %s1028 = scalar_select %p1027, %s1024, 1
      %s1029 = smul.addr %s1026, 8
      %s1030 = sadd.s32 %s1028, %s1029
      %s1031 = smul.addr %s1030, 8
      %s1032 = scalar_lea.vmem %s6, %s1031
      %s1033 = smul.u32 2, %s24
      %p1034 = scmp.lt.s32.totalorder %s23, 1
      %s1035 = scalar_select %p1034, %s23, 1
      %p1036 = scmp.lt.s32.totalorder %s1033, 1
      %s1037 = scalar_select %p1036, %s1033, 1
      %s1038 = smul.addr %s1035, 8
      %s1039 = sadd.s32 %s1037, %s1038
      %s1040 = smul.addr %s1039, 8
      %s1041 = scalar_lea.vmem %s7, %s1040
      // Predicated region
      $region45: #{block_forward.5} parent=43 // pred_check
        %p1042 = pneg %p191
      $region46: #{block_forward.5} parent=43 // pred_check_branch
        %1044 = sbr.rel (%p1042) target = $region48
      $region47: #{block_forward.5} parent=43 // pred_region
        %s1045 = smul.u32 2, %s24
      $region48: #{block_forward.5} parent=43 // pred_fallthru
        _
      // Predicated region
      $region49: #{block_forward.5} parent=43 // pred_check
        %p1046 = pneg %p219
      $region50: #{block_forward.5} parent=43 // pred_check_branch
        %1048 = sbr.rel (%p1046) target = $region52
      $region51: #{block_forward.5} parent=43 // pred_region
        %s1049 = smul.u32 2, %s24
      $region52: #{block_forward.5} parent=43 // pred_fallthru
        _
    $region44: #{block_forward.5} parent=5 // pred_fallthru
      _
    %p1050 = scmp.le.s32.totalorder 2, %s14
    // Predicated region
    $region53: #{block_forward.5} parent=5 // pred_check
      %p1051 = pneg %p1050
    $region54: #{block_forward.5} parent=5 // pred_check_branch
      %1053 = sbr.rel (%p1051) target = $region56
    $region55: #{block_forward.5} parent=5 // pred_region
      %s1054 = ssub.s32 %s14, 2
      // Predicated region
      $region57: #{block_forward.5} parent=55 // pred_check
        %p1055 = pneg %p197
      $region58: #{block_forward.5} parent=55 // pred_check_branch
        %1057 = sbr.rel (%p1055) target = $region60
      $region59: #{block_forward.5} parent=55 // pred_region
        %s1058 = smul.u32 2, %s26
        %p1059 = scmp.lt.s32.totalorder %s25, 1
        %s1060 = scalar_select %p1059, %s25, 1
        %p1061 = scmp.lt.s32.totalorder %s1058, 1
        %s1062 = scalar_select %p1061, %s1058, 1
        %s1063 = smul.addr %s1060, 8
        %s1064 = sadd.s32 %s1062, %s1063
        %s1065 = smul.addr %s1064, 8
        %s1066 = scalar_lea.vmem %s6, %s1065
      $region60: #{block_forward.5} parent=55 // pred_fallthru
        _
      // Predicated region
      $region61: #{block_forward.5} parent=55 // pred_check
        %p1067 = pneg %p225
      $region62: #{block_forward.5} parent=55 // pred_check_branch
        %1069 = sbr.rel (%p1067) target = $region64
      $region63: #{block_forward.5} parent=55 // pred_region
        %s1070 = smul.u32 2, %s26
        %p1071 = scmp.lt.s32.totalorder %s25, 1
        %s1072 = scalar_select %p1071, %s25, 1
        %p1073 = scmp.lt.s32.totalorder %s1070, 1
        %s1074 = scalar_select %p1073, %s1070, 1
        %s1075 = smul.addr %s1072, 8
        %s1076 = sadd.s32 %s1074, %s1075
        %s1077 = smul.addr %s1076, 8
        %s1078 = scalar_lea.vmem %s7, %s1077
      $region64: #{block_forward.5} parent=55 // pred_fallthru
        _
    $region56: #{block_forward.5} parent=5 // pred_fallthru
      _
  $region6: #{block_forward.5} parent=0 // loop_footer
    %s18 = sadd.s32 1, %s14
  $region7: #{block_forward.5} parent=0 // loop_footer_branch
    %13 = sbr.rel target = $region3
  $region8: #{block_forward.5} parent=0 // loop_exit
    _

// kernel: reverse.1
$region0: #{reverse.1}
  #allocation0 [shape = 's32[1]{0}', space=sflag, size = 0x4, scoped, tag = 'scoped memory for reverse.1']
  %s0 = inlined_call_operand.vmem [shape: f32[2,32,16,7], index: 0, kind: input, shape index: {}]
  %s1 = inlined_call_operand.vmem [shape: f32[2,32,16,7], index: 1, kind: output, shape index: {}]
  %s2 = scalar_lea.vmem %s0, 96
  %v3 = vld [vmem:[%s2] sm:$0xff]
  %4 = vst [vmem:[%s1] sm:$0xff] %v3
  %s5 = scalar_lea.vmem %s0, 208
  %v6 = vld [vmem:[%s5] sm:$0xff]
  %s7 = scalar_lea.vmem %s1, 112
  %8 = vst [vmem:[%s7] sm:$0xff] %v6
  %s9 = scalar_lea.vmem %s0, 80
  %v10 = vld [vmem:[%s9] sm:$0xff]
  %s11 = scalar_lea.vmem %s1, 16
  %12 = vst [vmem:[%s11] sm:$0xff] %v10
  %s13 = scalar_lea.vmem %s0, 192
  %v14 = vld [vmem:[%s13] sm:$0xff]
  %s15 = scalar_lea.vmem %s1, 128
  %16 = vst [vmem:[%s15] sm:$0xff] %v14
  %s17 = scalar_lea.vmem %s0, 64
  %v18 = vld [vmem:[%s17] sm:$0xff]
  %s19 = scalar_lea.vmem %s1, 32
  %20 = vst [vmem:[%s19] sm:$0xff] %v18
  %s21 = scalar_lea.vmem %s0, 176
  %v22 = vld [vmem:[%s21] sm:$0xff]
  %s23 = scalar_lea.vmem %s1, 144
  %24 = vst [vmem:[%s23] sm:$0xff] %v22
  %s25 = scalar_lea.vmem %s0, 48
  %v26 = vld [vmem:[%s25] sm:$0xff]
  %s27 = scalar_lea.vmem %s1, 48
  %28 = vst [vmem:[%s27] sm:$0xff] %v26
  %s29 = scalar_lea.vmem %s0, 160
  %v30 = vld [vmem:[%s29] sm:$0xff]
  %s31 = scalar_lea.vmem %s1, 160
  %32 = vst [vmem:[%s31] sm:$0xff] %v30
  %s33 = scalar_lea.vmem %s0, 32
  %v34 = vld [vmem:[%s33] sm:$0xff]
  %s35 = scalar_lea.vmem %s1, 64
  %36 = vst [vmem:[%s35] sm:$0xff] %v34
  %s37 = scalar_lea.vmem %s0, 144
  %v38 = vld [vmem:[%s37] sm:$0xff]
  %s39 = scalar_lea.vmem %s1, 176
  %40 = vst [vmem:[%s39] sm:$0xff] %v38
  %s41 = scalar_lea.vmem %s0, 16
  %v42 = vld [vmem:[%s41] sm:$0xff]
  %s43 = scalar_lea.vmem %s1, 80
  %44 = vst [vmem:[%s43] sm:$0xff] %v42
  %s45 = scalar_lea.vmem %s0, 128
  %v46 = vld [vmem:[%s45] sm:$0xff]
  %s47 = scalar_lea.vmem %s1, 192
  %48 = vst [vmem:[%s47] sm:$0xff] %v46
  %v49 = vld [vmem:[%s0] sm:$0xff]
  %s50 = scalar_lea.vmem %s1, 96
  %51 = vst [vmem:[%s50] sm:$0xff] %v49
  %s52 = scalar_lea.vmem %s0, 112
  %v53 = vld [vmem:[%s52] sm:$0xff]
  %s54 = scalar_lea.vmem %s1, 208
  %55 = vst [vmem:[%s54] sm:$0xff] %v53
  %s56 = scalar_lea.vmem %s0, 104
  %v57 = vld [vmem:[%s56] sm:$0xff]
  %s58 = scalar_lea.vmem %s1, 8
  %59 = vst [vmem:[%s58] sm:$0xff] %v57
  %s60 = scalar_lea.vmem %s0, 216
  %v61 = vld [vmem:[%s60] sm:$0xff]
  %s62 = scalar_lea.vmem %s1, 120
  %63 = vst [vmem:[%s62] sm:$0xff] %v61
  %s64 = scalar_lea.vmem %s0, 88
  %v65 = vld [vmem:[%s64] sm:$0xff]
  %s66 = scalar_lea.vmem %s1, 24
  %67 = vst [vmem:[%s66] sm:$0xff] %v65
  %s68 = scalar_lea.vmem %s0, 200
  %v69 = vld [vmem:[%s68] sm:$0xff]
  %s70 = scalar_lea.vmem %s1, 136
  %71 = vst [vmem:[%s70] sm:$0xff] %v69
  %s72 = scalar_lea.vmem %s0, 72
  %v73 = vld [vmem:[%s72] sm:$0xff]
  %s74 = scalar_lea.vmem %s1, 40
  %75 = vst [vmem:[%s74] sm:$0xff] %v73
  %s76 = scalar_lea.vmem %s0, 184
  %v77 = vld [vmem:[%s76] sm:$0xff]
  %s78 = scalar_lea.vmem %s1, 152
  %79 = vst [vmem:[%s78] sm:$0xff] %v77
  %s80 = scalar_lea.vmem %s0, 56
  %v81 = vld [vmem:[%s80] sm:$0xff]
  %s82 = scalar_lea.vmem %s1, 56
  %83 = vst [vmem:[%s82] sm:$0xff] %v81
  %s84 = scalar_lea.vmem %s0, 168
  %v85 = vld [vmem:[%s84] sm:$0xff]
  %s86 = scalar_lea.vmem %s1, 168
  %87 = vst [vmem:[%s86] sm:$0xff] %v85
  %s88 = scalar_lea.vmem %s0, 40
  %v89 = vld [vmem:[%s88] sm:$0xff]
  %s90 = scalar_lea.vmem %s1, 72
  %91 = vst [vmem:[%s90] sm:$0xff] %v89
  %s92 = scalar_lea.vmem %s0, 152
  %v93 = vld [vmem:[%s92] sm:$0xff]
  %s94 = scalar_lea.vmem %s1, 184
  %95 = vst [vmem:[%s94] sm:$0xff] %v93
  %s96 = scalar_lea.vmem %s0, 24
  %v97 = vld [vmem:[%s96] sm:$0xff]
  %s98 = scalar_lea.vmem %s1, 88
  %99 = vst [vmem:[%s98] sm:$0xff] %v97
  %s100 = scalar_lea.vmem %s0, 136
  %v101 = vld [vmem:[%s100] sm:$0xff]
  %s102 = scalar_lea.vmem %s1, 200
  %103 = vst [vmem:[%s102] sm:$0xff] %v101
  %s104 = scalar_lea.vmem %s0, 8
  %v105 = vld [vmem:[%s104] sm:$0xff]
  %s106 = scalar_lea.vmem %s1, 104
  %107 = vst [vmem:[%s106] sm:$0xff] %v105
  %s108 = scalar_lea.vmem %s0, 120
  %v109 = vld [vmem:[%s108] sm:$0xff]
  %s110 = scalar_lea.vmem %s1, 216
  %111 = vst [vmem:[%s110] sm:$0xff] %v109

// kernel: block_forward.6
$region0: #{block_forward.6}
  #allocation0 [shape = 'u32[]', space=smem, size = 0x4, offset = 0x4, fixed_abs, tag = 'smem constant byte address 0x4 - core index']
  #allocation1 [shape = 'u32[144,128]{1,0:T(1,128)}', space=vmem, size = 0x12000, scoped, tag = 'internal scratch']
  %s0 = inlined_call_operand.vmem [shape: f32[2,32,256], index: 0, kind: input, shape index: {}]
  %s1 = inlined_call_operand.vmem [shape: f32[2,32,256], index: 1, kind: input, shape index: {}]
  %s2 = inlined_call_operand.vmem [shape: f32[2,32,2], index: 2, kind: input, shape index: {}]
  %s3 = inlined_call_operand.vmem [shape: f32[1,256], index: 3, kind: input, shape index: {}]
  %s4 = inlined_call_operand.vmem [shape: f32[1,256], index: 4, kind: input, shape index: {}]
  %s5 = inlined_call_operand.vmem [shape: bf16[32,32], index: 5, kind: input, shape index: {}]
  %s6 = inlined_call_operand.vmem [shape: f32[32,1], index: 6, kind: input, shape index: {}]
  %s7 = inlined_call_operand.vmem [shape: f32[32,1], index: 7, kind: input, shape index: {}]
  %s8 = inlined_call_operand.vmem [shape: bf16[2,32,256], index: 8, kind: output, shape index: {0}]
  %s9 = inlined_call_operand.vmem [shape: f32[2,32,2], index: 9, kind: output, shape index: {1}]
  %10 = xla_tuple %s8, %s9
  %s11 = sld [smem:[#allocation0]]
  $region81: #{block_forward.6} parent=0
    _
  %s13 = ssub.s32 1, %s11
  %s14 = scalar_select 0, %s13, %s11
  loop: start=0, step=1, limit=4
  $region2: #{block_forward.6} parent=0 // loop_pre_header
    _
  $region3: #{block_forward.6} parent=0 // loop_header
    %s16 = sphi 0, %s20
    %p17 = scmp.ge.s32.totalorder %s16, 4
    %s23 = sphi 0, %s35
    %s24 = sphi 0, %s31
    %s25 = sphi 0, %s23
    %s26 = sphi 0, %s24
    %s27 = sphi 0, %s25
    %s28 = sphi 0, %s26
    %s40 = sphi 0, %s42
    %s43 = sphi 0, %s40
    %s44 = sphi 0, %s43
    %s60 = sphi 0, %s44
    %s68 = sphi 0, %s70
    %s71 = sphi 0, %s68
    %s72 = sphi 0, %s71
    %s88 = sphi 0, %s72
    %s94 = sphi 0, %s96
    %s97 = sphi 0, %s94
    %s98 = sphi 0, %s97
    %s114 = sphi 0, %s98
    %s120 = sphi 0, %s122
    %s123 = sphi 0, %s120
    %s124 = sphi 0, %s123
    %s140 = sphi 0, %s124
    %s146 = sphi 0, %s148
    %s149 = sphi 0, %s146
    %s150 = sphi 0, %s149
    %s166 = sphi 0, %s150
    %s170 = sphi 0, %s170
    %s172 = sphi 0, %s170
    %s173 = sphi 0, %s172
    %s187 = sphi 0, %s173
    %s191 = sphi 0, %s191
    %s193 = sphi 0, %s191
    %s194 = sphi 0, %s193
    %s208 = sphi 0, %s194
    %s212 = sphi 0, %s212
    %s214 = sphi 0, %s212
    %s215 = sphi 0, %s214
    %s229 = sphi 0, %s215
    %s237 = sphi 0, %s239
    %s240 = sphi 0, %s237
    %s241 = sphi 0, %s240
    %s257 = sphi 0, %s241
    %s263 = sphi 0, %s265
    %s266 = sphi 0, %s263
    %s267 = sphi 0, %s266
    %s283 = sphi 0, %s267
  $region4: #{block_forward.6} parent=0 // loop_header_branch
    %19 = sbr.rel (%p17) target = $region8
  $region5: #{block_forward.6} parent=0 // loop_body
    %s21 = ssub.s32 %s16, 1
    %s22 = ssub.s32 %s16, 2
    %s29 = sadd.s32 1, %s24
    %p30 = scmp.ge.s32.totalorder %s29, 1
    %s31 = scalar_select %p30, 0, %s29
    %s32 = sadd.s32 1, %s23
    %s33 = scalar_select %p30, %s32, %s23
    %p34 = scmp.ge.s32.totalorder %s33, 2
    %s35 = scalar_select %p34, 0, %s33
    %s36 = ssub.s32 %s23, %s35
    %s37 = ssub.s32 %s24, %s31
    %s38 = sor.u32 %s36, %s37
    %p39 = scmp.eq.s32.totalorder %s38, 0
    %s41 = sadd.s32 %s40, 1
    %s42 = scalar_select %p39, %s40, %s41
    %p45 = pneg %p39
    %p46 = scmp.eq.s32.totalorder %s16, 1
    %p47 = por %p45, %p46
    %p48 = scmp.ne.s32.totalorder %s40, %s43
    %p49 = scmp.eq.s32.totalorder %s16, 0
    %p50 = por %p48, %p49
    %p51 = scmp.ne.s32.totalorder %s40, %s43
    %p52 = scmp.eq.s32.totalorder %s21, 1
    %p53 = por %p51, %p52
    %p54 = scmp.ne.s32.totalorder %s43, %s44
    %p55 = scmp.eq.s32.totalorder %s21, 0
    %p56 = por %p54, %p55
    %p57 = scmp.ne.s32.totalorder %s43, %s44
    %p58 = scmp.eq.s32.totalorder %s22, 1
    %p59 = por %p57, %p58
    %p61 = scmp.ne.s32.totalorder %s44, %s60
    %p62 = scmp.eq.s32.totalorder %s22, 0
    %p63 = por %p61, %p62
    %s64 = ssub.s32 %s23, %s35
    %s65 = ssub.s32 %s24, %s31
    %s66 = sor.u32 %s64, %s65
    %p67 = scmp.eq.s32.totalorder %s66, 0
    %s69 = sadd.s32 %s68, 1
    %s70 = scalar_select %p67, %s68, %s69
    %p73 = pneg %p67
    %p74 = scmp.eq.s32.totalorder %s16, 1
    %p75 = por %p73, %p74
    %p76 = scmp.ne.s32.totalorder %s68, %s71
    %p77 = scmp.eq.s32.totalorder %s16, 0
    %p78 = por %p76, %p77
    %p79 = scmp.ne.s32.totalorder %s68, %s71
    %p80 = scmp.eq.s32.totalorder %s21, 1
    %p81 = por %p79, %p80
    %p82 = scmp.ne.s32.totalorder %s71, %s72
    %p83 = scmp.eq.s32.totalorder %s21, 0
    %p84 = por %p82, %p83
    %p85 = scmp.ne.s32.totalorder %s71, %s72
    %p86 = scmp.eq.s32.totalorder %s22, 1
    %p87 = por %p85, %p86
    %p89 = scmp.ne.s32.totalorder %s72, %s88
    %p90 = scmp.eq.s32.totalorder %s22, 0
    %p91 = por %p89, %p90
    %s92 = ssub.s32 %s23, %s35
    %p93 = scmp.eq.s32.totalorder %s92, 0
    %s95 = sadd.s32 %s94, 1
    %s96 = scalar_select %p93, %s94, %s95
    %p99 = pneg %p93
    %p100 = scmp.eq.s32.totalorder %s16, 1
    %p101 = por %p99, %p100
    %p102 = scmp.ne.s32.totalorder %s94, %s97
    %p103 = scmp.eq.s32.totalorder %s16, 0
    %p104 = por %p102, %p103
    %p105 = scmp.ne.s32.totalorder %s94, %s97
    %p106 = scmp.eq.s32.totalorder %s21, 1
    %p107 = por %p105, %p106
    %p108 = scmp.ne.s32.totalorder %s97, %s98
    %p109 = scmp.eq.s32.totalorder %s21, 0
    %p110 = por %p108, %p109
    %p111 = scmp.ne.s32.totalorder %s97, %s98
    %p112 = scmp.eq.s32.totalorder %s22, 1
    %p113 = por %p111, %p112
    %p115 = scmp.ne.s32.totalorder %s98, %s114
    %p116 = scmp.eq.s32.totalorder %s22, 0
    %p117 = por %p115, %p116
    %s118 = ssub.s32 %s24, %s31
    %p119 = scmp.eq.s32.totalorder %s118, 0
    %s121 = sadd.s32 %s120, 1
    %s122 = scalar_select %p119, %s120, %s121
    %p125 = pneg %p119
    %p126 = scmp.eq.s32.totalorder %s16, 1
    %p127 = por %p125, %p126
    %p128 = scmp.ne.s32.totalorder %s120, %s123
    %p129 = scmp.eq.s32.totalorder %s16, 0
    %p130 = por %p128, %p129
    %p131 = scmp.ne.s32.totalorder %s120, %s123
    %p132 = scmp.eq.s32.totalorder %s21, 1
    %p133 = por %p131, %p132
    %p134 = scmp.ne.s32.totalorder %s123, %s124
    %p135 = scmp.eq.s32.totalorder %s21, 0
    %p136 = por %p134, %p135
    %p137 = scmp.ne.s32.totalorder %s123, %s124
    %p138 = scmp.eq.s32.totalorder %s22, 1
    %p139 = por %p137, %p138
    %p141 = scmp.ne.s32.totalorder %s124, %s140
    %p142 = scmp.eq.s32.totalorder %s22, 0
    %p143 = por %p141, %p142
    %s144 = ssub.s32 %s24, %s31
    %p145 = scmp.eq.s32.totalorder %s144, 0
    %s147 = sadd.s32 %s146, 1
    %s148 = scalar_select %p145, %s146, %s147
    %p151 = pneg %p145
    %p152 = scmp.eq.s32.totalorder %s16, 1
    %p153 = por %p151, %p152
    %p154 = scmp.ne.s32.totalorder %s146, %s149
    %p155 = scmp.eq.s32.totalorder %s16, 0
    %p156 = por %p154, %p155
    %p157 = scmp.ne.s32.totalorder %s146, %s149
    %p158 = scmp.eq.s32.totalorder %s21, 1
    %p159 = por %p157, %p158
    %p160 = scmp.ne.s32.totalorder %s149, %s150
    %p161 = scmp.eq.s32.totalorder %s21, 0
    %p162 = por %p160, %p161
    %p163 = scmp.ne.s32.totalorder %s149, %s150
    %p164 = scmp.eq.s32.totalorder %s22, 1
    %p165 = por %p163, %p164
    %p167 = scmp.ne.s32.totalorder %s150, %s166
    %p168 = scmp.eq.s32.totalorder %s22, 0
    %p169 = por %p167, %p168
    %s171 = sadd.s32 %s170, 1
    %p174 = scmp.eq.s32.totalorder %s16, 1
    %p175 = scmp.ne.s32.totalorder %s170, %s172
    %p176 = scmp.eq.s32.totalorder %s16, 0
    %p177 = por %p175, %p176
    %p178 = scmp.ne.s32.totalorder %s170, %s172
    %p179 = scmp.eq.s32.totalorder %s21, 1
    %p180 = por %p178, %p179
    %p181 = scmp.ne.s32.totalorder %s172, %s173
    %p182 = scmp.eq.s32.totalorder %s21, 0
    %p183 = por %p181, %p182
    %p184 = scmp.ne.s32.totalorder %s172, %s173
    %p185 = scmp.eq.s32.totalorder %s22, 1
    %p186 = por %p184, %p185
    %p188 = scmp.ne.s32.totalorder %s173, %s187
    %p189 = scmp.eq.s32.totalorder %s22, 0
    %p190 = por %p188, %p189
    %s192 = sadd.s32 %s191, 1
    %p195 = scmp.eq.s32.totalorder %s16, 1
    %p196 = scmp.ne.s32.totalorder %s191, %s193
    %p197 = scmp.eq.s32.totalorder %s16, 0
    %p198 = por %p196, %p197
    %p199 = scmp.ne.s32.totalorder %s191, %s193
    %p200 = scmp.eq.s32.totalorder %s21, 1
    %p201 = por %p199, %p200
    %p202 = scmp.ne.s32.totalorder %s193, %s194
    %p203 = scmp.eq.s32.totalorder %s21, 0
    %p204 = por %p202, %p203
    %p205 = scmp.ne.s32.totalorder %s193, %s194
    %p206 = scmp.eq.s32.totalorder %s22, 1
    %p207 = por %p205, %p206
    %p209 = scmp.ne.s32.totalorder %s194, %s208
    %p210 = scmp.eq.s32.totalorder %s22, 0
    %p211 = por %p209, %p210
    %s213 = sadd.s32 %s212, 1
    %p216 = scmp.eq.s32.totalorder %s16, 1
    %p217 = scmp.ne.s32.totalorder %s212, %s214
    %p218 = scmp.eq.s32.totalorder %s16, 0
    %p219 = por %p217, %p218
    %p220 = scmp.ne.s32.totalorder %s212, %s214
    %p221 = scmp.eq.s32.totalorder %s21, 1
    %p222 = por %p220, %p221
    %p223 = scmp.ne.s32.totalorder %s214, %s215
    %p224 = scmp.eq.s32.totalorder %s21, 0
    %p225 = por %p223, %p224
    %p226 = scmp.ne.s32.totalorder %s214, %s215
    %p227 = scmp.eq.s32.totalorder %s22, 1
    %p228 = por %p226, %p227
    %p230 = scmp.ne.s32.totalorder %s215, %s229
    %p231 = scmp.eq.s32.totalorder %s22, 0
    %p232 = por %p230, %p231
    %s233 = ssub.s32 %s23, %s35
    %s234 = ssub.s32 %s24, %s31
    %s235 = sor.u32 %s233, %s234
    %p236 = scmp.eq.s32.totalorder %s235, 0
    %s238 = sadd.s32 %s237, 1
    %s239 = scalar_select %p236, %s237, %s238
    %p242 = pneg %p236
    %p243 = scmp.eq.s32.totalorder %s16, 1
    %p244 = por %p242, %p243
    %p245 = scmp.ne.s32.totalorder %s237, %s240
    %p246 = scmp.eq.s32.totalorder %s16, 0
    %p247 = por %p245, %p246
    %p248 = scmp.ne.s32.totalorder %s237, %s240
    %p249 = scmp.eq.s32.totalorder %s21, 1
    %p250 = por %p248, %p249
    %p251 = scmp.ne.s32.totalorder %s240, %s241
    %p252 = scmp.eq.s32.totalorder %s21, 0
    %p253 = por %p251, %p252
    %p254 = scmp.ne.s32.totalorder %s240, %s241
    %p255 = scmp.eq.s32.totalorder %s22, 1
    %p256 = por %p254, %p255
    %p258 = scmp.ne.s32.totalorder %s241, %s257
    %p259 = scmp.eq.s32.totalorder %s22, 0
    %p260 = por %p258, %p259
    %s261 = ssub.s32 %s23, %s35
    %p262 = scmp.eq.s32.totalorder %s261, 0
    %s264 = sadd.s32 %s263, 1
    %s265 = scalar_select %p262, %s263, %s264
    %p268 = pneg %p262
    %p269 = scmp.eq.s32.totalorder %s16, 1
    %p270 = por %p268, %p269
    %p271 = scmp.ne.s32.totalorder %s263, %s266
    %p272 = scmp.eq.s32.totalorder %s16, 0
    %p273 = por %p271, %p272
    %p274 = scmp.ne.s32.totalorder %s263, %s266
    %p275 = scmp.eq.s32.totalorder %s21, 1
    %p276 = por %p274, %p275
    %p277 = scmp.ne.s32.totalorder %s266, %s267
    %p278 = scmp.eq.s32.totalorder %s21, 0
    %p279 = por %p277, %p278
    %p280 = scmp.ne.s32.totalorder %s266, %s267
    %p281 = scmp.eq.s32.totalorder %s22, 1
    %p282 = por %p280, %p281
    %p284 = scmp.ne.s32.totalorder %s267, %s283
    %p285 = scmp.eq.s32.totalorder %s22, 0
    %p286 = por %p284, %p285
    %p287 = scmp.le.s32.totalorder 1, %s16
    %p288 = scmp.lt.s32.totalorder %s16, 3
    %p289 = pnand %p287, %p288
    %p290 = pneg %p289
    // Predicated region
    $region9: #{block_forward.6} parent=5 // pred_check
      _
    $region10: #{block_forward.6} parent=5 // pred_check_branch
      %292 = sbr.rel (%p289) target = $region12
    $region11: #{block_forward.6} parent=5 // pred_region
      %s293 = ssub.s32 %s16, 1
      // Predicated region
      $region13: #{block_forward.6} parent=11 // pred_check
        %p294 = pneg %p136
      $region14: #{block_forward.6} parent=11 // pred_check_branch
        %296 = sbr.rel (%p294) target = $region16
      $region15: #{block_forward.6} parent=11 // pred_region
        %s297 = smul.u32 2, %s26
        %p298 = scmp.lt.s32.totalorder %s297, 1
        %s299 = scalar_select %p298, %s297, 1
        %s300 = scalar_lea.vmem %s3, %s299
        %s301 = smul.u32 2, %s26
      $region16: #{block_forward.6} parent=11 // pred_fallthru
        _
      // Predicated region
      $region17: #{block_forward.6} parent=11 // pred_check
        %p302 = pneg %p162
      $region18: #{block_forward.6} parent=11 // pred_check_branch
        %304 = sbr.rel (%p302) target = $region20
      $region19: #{block_forward.6} parent=11 // pred_region
        %s305 = smul.u32 2, %s26
        %p306 = scmp.lt.s32.totalorder %s305, 1
        %s307 = scalar_select %p306, %s305, 1
        %s308 = scalar_lea.vmem %s4, %s307
        %s309 = smul.u32 2, %s26
      $region20: #{block_forward.6} parent=11 // pred_fallthru
        _
      // Predicated region
      $region21: #{block_forward.6} parent=11 // pred_check
        %p310 = pneg %p183
      $region22: #{block_forward.6} parent=11 // pred_check_branch
        %312 = sbr.rel (%p310) target = $region24
      $region23: #{block_forward.6} parent=11 // pred_region
        _
      $region24: #{block_forward.6} parent=11 // pred_fallthru
        _
      // Predicated region
      $region25: #{block_forward.6} parent=11 // pred_check
        %p313 = pneg %p204
      $region26: #{block_forward.6} parent=11 // pred_check_branch
        %315 = sbr.rel (%p313) target = $region28
      $region27: #{block_forward.6} parent=11 // pred_region
        _
      $region28: #{block_forward.6} parent=11 // pred_fallthru
        _
      // Predicated region
      $region29: #{block_forward.6} parent=11 // pred_check
        %p316 = pneg %p225
      $region30: #{block_forward.6} parent=11 // pred_check_branch
        %318 = sbr.rel (%p316) target = $region32
      $region31: #{block_forward.6} parent=11 // pred_region
        _
      $region32: #{block_forward.6} parent=11 // pred_fallthru
        _
    $region12: #{block_forward.6} parent=5 // pred_fallthru
      _
    %p319 = scmp.lt.s32.totalorder %s16, 2
    // Predicated region
    $region33: #{block_forward.6} parent=5 // pred_check
      %p320 = pneg %p319
    $region34: #{block_forward.6} parent=5 // pred_check_branch
      %322 = sbr.rel (%p320) target = $region36
    $region35: #{block_forward.6} parent=5 // pred_region
      // Predicated region
      $region37: #{block_forward.6} parent=35 // pred_check
        %p323 = pneg %p50
      $region38: #{block_forward.6} parent=35 // pred_check_branch
        %325 = sbr.rel (%p323) target = $region40
      $region39: #{block_forward.6} parent=35 // pred_region
        %s326 = smul.u32 2, %s24
        %p327 = scmp.lt.s32.totalorder %s23, 1
        %s328 = scalar_select %p327, %s23, 1
        %p329 = scmp.lt.s32.totalorder %s326, 1
        %s330 = scalar_select %p329, %s326, 1
        %s331 = smul.addr %s328, 8
        %s332 = sadd.s32 %s330, %s331
        %s333 = smul.addr %s332, 8
        %s334 = scalar_lea.vmem %s0, %s333
        %s335 = smul.u32 2, %s24
      $region40: #{block_forward.6} parent=35 // pred_fallthru
        _
      // Predicated region
      $region41: #{block_forward.6} parent=35 // pred_check
        %p336 = pneg %p78
      $region42: #{block_forward.6} parent=35 // pred_check_branch
        %338 = sbr.rel (%p336) target = $region44
      $region43: #{block_forward.6} parent=35 // pred_region
        %s339 = smul.u32 2, %s24
        %p340 = scmp.lt.s32.totalorder %s23, 1
        %s341 = scalar_select %p340, %s23, 1
        %p342 = scmp.lt.s32.totalorder %s339, 1
        %s343 = scalar_select %p342, %s339, 1
        %s344 = smul.addr %s341, 8
        %s345 = sadd.s32 %s343, %s344
        %s346 = smul.addr %s345, 8
        %s347 = scalar_lea.vmem %s1, %s346
        %s348 = smul.u32 2, %s24
      $region44: #{block_forward.6} parent=35 // pred_fallthru
        _
      // Predicated region
      $region45: #{block_forward.6} parent=35 // pred_check
        %p349 = pneg %p104
      $region46: #{block_forward.6} parent=35 // pred_check_branch
        %351 = sbr.rel (%p349) target = $region48
      $region47: #{block_forward.6} parent=35 // pred_region
        %p352 = scmp.lt.s32.totalorder %s23, 1
        %s353 = scalar_select %p352, %s23, 1
        %s354 = smul.addr %s353, 4
        %s355 = smul.addr %s354, 8
        %s356 = scalar_lea.vmem %s2, %s355
      $region48: #{block_forward.6} parent=35 // pred_fallthru
        _
    $region36: #{block_forward.6} parent=5 // pred_fallthru
      _
    %p357 = scmp.le.s32.totalorder 1, %s16
    %p358 = scmp.lt.s32.totalorder %s16, 3
    %p359 = pnand %p357, %p358
    %p360 = pneg %p359
    // Predicated region
    $region49: #{block_forward.6} parent=5 // pred_check
      _
    $region50: #{block_forward.6} parent=5 // pred_check_branch
      %362 = sbr.rel (%p359) target = $region52
    $region51: #{block_forward.6} parent=5 // pred_region
      %s363 = ssub.s32 %s16, 1
      %s364 = smul.u32 2, %s26
      %p365 = scmp.lt.s32.totalorder %s25, 1
      %s366 = scalar_select %p365, %s25, 1
      %p367 = scmp.lt.s32.totalorder %s364, 1
      %s368 = scalar_select %p367, %s364, 1
      %s369 = smul.addr %s366, 8
      %s370 = sadd.s32 %s368, %s369
      %s371 = smul.addr %s370, 8
      %s372 = scalar_lea.vmem %s0, %s371
      %p373 = pneg %p56
      %p374 = pneg %p53
      %s375 = smul.u32 2, %s26
      %p376 = scmp.lt.s32.totalorder %s25, 1
      %s377 = scalar_select %p376, %s25, 1
      %p378 = scmp.lt.s32.totalorder %s375, 1
      %s379 = scalar_select %p378, %s375, 1
      %s380 = smul.addr %s377, 8
      %s381 = sadd.s32 %s379, %s380
      %s382 = smul.addr %s381, 8
      %s383 = scalar_lea.vmem %s1, %s382
      %p384 = pneg %p84
      %p385 = pneg %p81
      %p386 = scmp.lt.s32.totalorder %s25, 1
      %s387 = scalar_select %p386, %s25, 1
      %s388 = smul.addr %s387, 4
      %s389 = smul.addr %s388, 8
      %s390 = scalar_lea.vmem %s2, %s389
      %p391 = pneg %p110
      %p392 = pneg %p107
      %s393 = smul.u32 2, %s26
      %p394 = scmp.lt.s32.totalorder %s393, 1
      %s395 = scalar_select %p394, %s393, 1
      %s396 = scalar_lea.vmem %s3, %s395
      %p397 = pneg %p136
      %p398 = pneg %p133
      %s399 = smul.u32 2, %s26
      %p400 = scmp.lt.s32.totalorder %s399, 1
      %s401 = scalar_select %p400, %s399, 1
      %s402 = scalar_lea.vmem %s4, %s401
      %p403 = pneg %p162
      %p404 = pneg %p159
      %p405 = pneg %p183
      %p406 = pneg %p180
      %p407 = pneg %p204
      %p408 = pneg %p201
      %p409 = pneg %p225
      %p410 = pneg %p222
      %p411 = pneg %p253
      %p412 = pneg %p250
      %s413 = smul.u32 2, %s26
      %p414 = scmp.lt.s32.totalorder %s25, 1
      %s415 = scalar_select %p414, %s25, 1
      %p416 = scmp.lt.s32.totalorder %s413, 1
      %s417 = scalar_select %p416, %s413, 1
      %s418 = smul.addr %s415, 8
      %s419 = sadd.s32 %s417, %s418
      %s420 = smul.addr %s419, 4
      %s421 = scalar_lea.vmem %s8, %s420
      %p422 = pneg %p279
      %p423 = pneg %p276
      %p424 = scmp.lt.s32.totalorder %s25, 1
      %s425 = scalar_select %p424, %s25, 1
      %s426 = smul.addr %s425, 4
      %s427 = smul.addr %s426, 8
      %s428 = scalar_lea.vmem %s9, %s427
      %s429 = smul.u32 2, %s26
      %p430 = scmp.lt.s32.totalorder %s25, 1
      %s431 = scalar_select %p430, %s25, 1
      %p432 = scmp.lt.s32.totalorder %s429, 1
      %s433 = scalar_select %p432, %s429, 1
      %s434 = smul.addr %s431, 8
      %s435 = sadd.s32 %s433, %s434
      %s436 = smul.addr %s435, 8
      %s437 = scalar_lea.vmem %s0, %s436
      %s438 = smul.u32 2, %s26
      %s439 = smul.u32 2, %s26
      %p440 = scmp.lt.s32.totalorder %s25, 1
      %s441 = scalar_select %p440, %s25, 1
      %p442 = scmp.lt.s32.totalorder %s439, 1
      %s443 = scalar_select %p442, %s439, 1
      %s444 = smul.addr %s441, 8
      %s445 = sadd.s32 %s443, %s444
      %s446 = smul.addr %s445, 8
      %s447 = scalar_lea.vmem %s1, %s446
      %s448 = smul.u32 2, %s26
      %p449 = scmp.lt.s32.totalorder %s25, 1
      %s450 = scalar_select %p449, %s25, 1
      %s451 = smul.addr %s450, 4
      %s452 = smul.addr %s451, 8
      %s453 = scalar_lea.vmem %s2, %s452
      %s454 = smul.u32 2, %s26
      %p455 = scmp.lt.s32.totalorder %s454, 1
      %s456 = scalar_select %p455, %s454, 1
      %s457 = scalar_lea.vmem %s3, %s456
      %s458 = smul.u32 2, %s26
      %s459 = smul.u32 2, %s26
      %p460 = scmp.lt.s32.totalorder %s459, 1
      %s461 = scalar_select %p460, %s459, 1
      %s462 = scalar_lea.vmem %s4, %s461
      %s463 = smul.u32 2, %s26
      %s464 = smul.u32 2, %s26
      %p465 = scmp.lt.s32.totalorder %s25, 1
      %s466 = scalar_select %p465, %s25, 1
      %p467 = scmp.lt.s32.totalorder %s464, 1
      %s468 = scalar_select %p467, %s464, 1
      %s469 = smul.addr %s466, 8
      %s470 = sadd.s32 %s468, %s469
      %s471 = smul.addr %s470, 4
      %s472 = scalar_lea.vmem %s8, %s471
      %s473 = smul.u32 2, %s26
      %p474 = scmp.lt.s32.totalorder %s25, 1
      %s475 = scalar_select %p474, %s25, 1
      %s476 = smul.addr %s475, 4
      %s477 = smul.addr %s476, 8
      %s478 = scalar_lea.vmem %s9, %s477
      %v480 = vld [vmem:[%s437] sm:$0xff]
      %v481 = vld [vmem:[%s437 + $0x8] sm:$0xff]
      %v482 = vld [vmem:[%s437 + $0x10] sm:$0xff]
      %v483 = vld [vmem:[%s437 + $0x18] sm:$0xff]
      %v484 = vld [vmem:[%s437 + $0x20] sm:$0xff]
      %v485 = vld [vmem:[%s437 + $0x28] sm:$0xff]
      %v486 = vld [vmem:[%s437 + $0x30] sm:$0xff]
      %v487 = vld [vmem:[%s437 + $0x38] sm:$0xff]
      %v488 = vld [vmem:[%s453] sm:$0xff]
      %v489 = vld [vmem:[%s453 + $0x8] sm:$0xff]
      %v490 = vld [vmem:[%s453 + $0x10] sm:$0xff]
      %v491 = vld [vmem:[%s453 + $0x18] sm:$0xff]
      %493 = vset.pattern.permute.xlu0 0
      %494 = vperm.xlu0 %493, %v488
      %v495 = vpop.permute.xlu0 %494
      %498 = vset.pattern.permute.xlu0 0
      %499 = vperm.xlu0 %498, %v489
      %v500 = vpop.permute.xlu0 %499
      %503 = vset.pattern.permute.xlu0 0
      %504 = vperm.xlu0 %503, %v490
      %v505 = vpop.permute.xlu0 %504
      %508 = vset.pattern.permute.xlu0 0
      %509 = vperm.xlu0 %508, %v491
      %v510 = vpop.permute.xlu0 %509
      %v512 = vsub.f32 %v480, %v495
      %v513 = vsub.f32 %v481, %v495
      %v514 = vsub.f32 %v482, %v500
      %v515 = vsub.f32 %v483, %v500
      %v516 = vsub.f32 %v484, %v505
      %v517 = vsub.f32 %v485, %v505
      %v518 = vsub.f32 %v486, %v510
      %v519 = vsub.f32 %v487, %v510
      %520 = vset.pattern.permute.xlu0 1
      %521 = vperm.xlu0 %520, %v488
      %v522 = vpop.permute.xlu0 %521
      %524 = vset.pattern.permute.xlu0 1
      %525 = vperm.xlu0 %524, %v489
      %v526 = vpop.permute.xlu0 %525
      %528 = vset.pattern.permute.xlu0 1
      %529 = vperm.xlu0 %528, %v490
      %v530 = vpop.permute.xlu0 %529
      %532 = vset.pattern.permute.xlu0 1
      %533 = vperm.xlu0 %532, %v491
      %v534 = vpop.permute.xlu0 %533
      %v536 = vmul.f32 %v512, %v522
      %v537 = vmul.f32 %v513, %v522
      %v538 = vmul.f32 %v514, %v526
      %v539 = vmul.f32 %v515, %v526
      %v540 = vmul.f32 %v516, %v530
      %v541 = vmul.f32 %v517, %v530
      %v542 = vmul.f32 %v518, %v534
      %v543 = vmul.f32 %v519, %v534
      %v544 = vld [vmem:[%s457] sm:$0x3]
      %v546 = vlaneseq
      %v547 = vshrl.u32 %v546, 7
      %v548 = vsub.s32 0, %v547
      %v549 = vrot.slane %v544, %v548
      %v550 = vlaneseq
      %v551 = vshrl.u32 %v550, 7
      %v552 = vsub.s32 1, %v551
      %v553 = vrot.slane %v544, %v552
      %v556 = vmul.f32 %v536, %v549
      %v557 = vmul.f32 %v537, %v553
      %v558 = vmul.f32 %v538, %v549
      %v559 = vmul.f32 %v539, %v553
      %v560 = vmul.f32 %v540, %v549
      %v561 = vmul.f32 %v541, %v553
      %v562 = vmul.f32 %v542, %v549
      %v563 = vmul.f32 %v543, %v553
      %v564 = vld [vmem:[%s462] sm:$0x3]
      %v566 = vlaneseq
      %v567 = vshrl.u32 %v566, 7
      %v568 = vsub.s32 0, %v567
      %v569 = vrot.slane %v564, %v568
      %v570 = vlaneseq
      %v571 = vshrl.u32 %v570, 7
      %v572 = vsub.s32 1, %v571
      %v573 = vrot.slane %v564, %v572
      %v576 = vadd.f32 %v556, %v569
      %v577 = vadd.f32 %v557, %v573
      %v578 = vadd.f32 %v558, %v569
      %v579 = vadd.f32 %v559, %v573
      %v580 = vadd.f32 %v560, %v569
      %v581 = vadd.f32 %v561, %v573
      %v582 = vadd.f32 %v562, %v569
      %v583 = vadd.f32 %v563, %v573
      %v584 = vld [vmem:[%s5] sm:$0xf]
      %v585 = vld [vmem:[%s5 + $0x4] sm:$0xf]
      %v586 = vld [vmem:[%s5 + $0x8] sm:$0xf]
      %v587 = vld [vmem:[%s5 + $0xc] sm:$0xf]
      %v588 = vpack.c.bf16 %v482, %v480
      %v589 = vpack.c.bf16 %v483, %v481
      %v590 = vpack.c.bf16 %v486, %v484
      %v591 = vpack.c.bf16 %v487, %v485
      %v596 = vunpack.c.l.b16 %v584
      %v597 = vunpack.c.l.b16 %v585
      %v598 = vunpack.c.l.b16 %v586
      %v599 = vunpack.c.l.b16 %v587
      %v600 = vpack.c.b16 %v597, %v596
      %v601 = vpack.c.b16 %v599, %v598
      %vm602 = vcmask 261120
      %v604 = vsel %vm602, %v600, 0
      %v607 = vsel %vm602, %v601, 0
      %609 = vmatprep.subr.bf16.mxu0 0
      %610 = vmatpush1.bf16.msra.mxu0 0
      %611 = vmatprep.subr.bf16.mxu0 0
      %612 = vmatpush1.bf16.msra.mxu0 0
      %613 = vmatprep.subr.bf16.mxu0 0
      %614 = vmatpush1.bf16.msra.mxu0 0
      %615 = vmatprep.subr.bf16.mxu0 0
      %616 = vmatpush1.bf16.msra.mxu0 0
      %617 = vmatprep.subr.bf16.mxu0 0
      %618 = vmatpush1.bf16.msra.mxu0 0
      %619 = vmatprep.subr.bf16.mxu0 0
      %620 = vmatpush1.bf16.msra.mxu0 0
      %621 = vmatprep.subr.bf16.mxu0 %v591
      %622 = vmatpush1.bf16.msra.mxu0 %v590
      %623 = vmatprep.subr.bf16.mxu0 %v589
      %624 = vmatpush1.bf16.msra.mxu0 %v588
      %625 = vmatprep.subr.bf16.mxu0 0
      %626 = vmatpush2.bf16.msra.mxu0 0
      %627 = vmatprep.subr.bf16.mxu0 0
      %628 = vmatpush2.bf16.msra.mxu0 0
      %629 = vmatprep.subr.bf16.mxu0 0
      %630 = vmatpush2.bf16.msra.mxu0 0
      %631 = vmatprep.subr.bf16.mxu0 0
      %632 = vmatpush2.bf16.msra.mxu0 0
      %633 = vmatprep.subr.bf16.mxu0 0
      %634 = vmatpush2.bf16.msra.mxu0 0
      %635 = vmatprep.subr.bf16.mxu0 0
      %636 = vmatpush2.bf16.msra.mxu0 0
      %637 = vmatprep.subr.bf16.mxu0 0
      %638 = vmatpush2.bf16.msra.mxu0 0
      %639 = vmatprep.subr.bf16.mxu0 0
      %640 = vmatpush2.bf16.msra.mxu0 0
      %641 = vmatprep.mubr.bf16.mxu0 0
      %642 = vmatmul.mubr.bf16.gmra.mxu0 %v604
      %v643 = vpop.f32.mrf.mxu0
      %v644 = vadd.f32 0.0, %v643
      %v645 = vpop.f32.mrf.mxu0
      %v646 = vadd.f32 0.0, %v645
      %v647 = vpop.f32.mrf.mxu0
      %v648 = vadd.f32 0.0, %v647
      %v649 = vpop.f32.mrf.mxu0
      %v650 = vadd.f32 0.0, %v649
      %651 = vmatprep.mubr.bf16.mxu0 0
      %652 = vmatmul.mubr.bf16.gmra.mxu0 %v607
      %v653 = vpop.f32.mrf.mxu0
      %v654 = vadd.f32 0.0, %v653
      %v655 = vpop.f32.mrf.mxu0
      %v656 = vadd.f32 0.0, %v655
      %v657 = vpop.f32.mrf.mxu0
      %v658 = vadd.f32 0.0, %v657
      %v659 = vpop.f32.mrf.mxu0
      %v660 = vadd.f32 0.0, %v659
      %661 = vdwg.mxu0
      %v662 = vld [vmem:[%s447] sm:$0xff]
      %v663 = vld [vmem:[%s447 + $0x8] sm:$0xff]
      %v664 = vld [vmem:[%s447 + $0x10] sm:$0xff]
      %v665 = vld [vmem:[%s447 + $0x18] sm:$0xff]
      %v666 = vld [vmem:[%s447 + $0x20] sm:$0xff]
      %v667 = vld [vmem:[%s447 + $0x28] sm:$0xff]
      %v668 = vld [vmem:[%s447 + $0x30] sm:$0xff]
      %v669 = vld [vmem:[%s447 + $0x38] sm:$0xff]
      %v670 = vld [vmem:[%s7] sm:$0xff]
      %v671 = vld [vmem:[%s7 + $0x8] sm:$0xff]
      %v672 = vld [vmem:[%s7 + $0x10] sm:$0xff]
      %v673 = vld [vmem:[%s7 + $0x18] sm:$0xff]
      %675 = vset.pattern.permute.xlu0 0
      %676 = vperm.xlu0 %675, %v670
      %v677 = vpop.permute.xlu0 %676
      %680 = vset.pattern.permute.xlu0 0
      %681 = vperm.xlu0 %680, %v671
      %v682 = vpop.permute.xlu0 %681
      %685 = vset.pattern.permute.xlu0 0
      %686 = vperm.xlu0 %685, %v672
      %v687 = vpop.permute.xlu0 %686
      %690 = vset.pattern.permute.xlu0 0
      %691 = vperm.xlu0 %690, %v673
      %v692 = vpop.permute.xlu0 %691
      %v694 = vadd.f32 %v662, %v677
      %v695 = vadd.f32 %v663, %v677
      %v696 = vadd.f32 %v664, %v682
      %v697 = vadd.f32 %v665, %v682
      %v698 = vadd.f32 %v666, %v687
      %v699 = vadd.f32 %v667, %v687
      %v700 = vadd.f32 %v668, %v692
      %v701 = vadd.f32 %v669, %v692
      %v702 = vadd.f32 %v694, %v576
      %v703 = vadd.f32 %v695, %v577
      %v704 = vadd.f32 %v696, %v578
      %v705 = vadd.f32 %v697, %v579
      %v706 = vadd.f32 %v698, %v580
      %v707 = vadd.f32 %v699, %v581
      %v708 = vadd.f32 %v700, %v582
      %v709 = vadd.f32 %v701, %v583
      %v710 = vadd.f32 %v702, %v644
      %v711 = vadd.f32 %v703, %v646
      %v712 = vadd.f32 %v704, %v648
      %v713 = vadd.f32 %v705, %v650
      %v714 = vadd.f32 %v706, %v654
      %v715 = vadd.f32 %v707, %v656
      %v716 = vadd.f32 %v708, %v658
      %v717 = vadd.f32 %v709, %v660
      %v718 = vld [vmem:[%s6] sm:$0xff]
      %v719 = vld [vmem:[%s6 + $0x8] sm:$0xff]
      %v720 = vld [vmem:[%s6 + $0x10] sm:$0xff]
      %v721 = vld [vmem:[%s6 + $0x18] sm:$0xff]
      %723 = vset.pattern.permute.xlu0 0
      %724 = vperm.xlu0 %723, %v718
      %v725 = vpop.permute.xlu0 %724
      %728 = vset.pattern.permute.xlu0 0
      %729 = vperm.xlu0 %728, %v719
      %v730 = vpop.permute.xlu0 %729
      %733 = vset.pattern.permute.xlu0 0
      %734 = vperm.xlu0 %733, %v720
      %v735 = vpop.permute.xlu0 %734
      %738 = vset.pattern.permute.xlu0 0
      %739 = vperm.xlu0 %738, %v721
      %v740 = vpop.permute.xlu0 %739
      %v742 = vadd.f32 %v710, %v725
      %v743 = vadd.f32 %v711, %v725
      %v744 = vadd.f32 %v712, %v730
      %v745 = vadd.f32 %v713, %v730
      %v746 = vadd.f32 %v714, %v735
      %v747 = vadd.f32 %v715, %v735
      %v748 = vadd.f32 %v716, %v740
      %v749 = vadd.f32 %v717, %v740
      %v750 = vpack.c.bf16 %v744, %v742
      %v751 = vpack.c.bf16 %v745, %v743
      %v752 = vpack.c.bf16 %v748, %v746
      %v753 = vpack.c.bf16 %v749, %v747
      %v758 = vunpack.c.l.b16 %v750
      %v759 = vunpack.c.l.b16 %v751
      %v760 = vunpack.c.h.b16 %v750
      %v761 = vunpack.c.h.b16 %v751
      %v762 = vunpack.c.l.b16 %v752
      %v763 = vunpack.c.l.b16 %v753
      %v764 = vunpack.c.h.b16 %v752
      %v765 = vunpack.c.h.b16 %v753
      %v766 = vpack.c.b16 %v759, %v758
      %v767 = vpack.c.b16 %v761, %v760
      %v768 = vpack.c.b16 %v763, %v762
      %v769 = vpack.c.b16 %v765, %v764
      %774 = vst [vmem:[%s472] sm:$0xff] %v766
      %775 = vst [vmem:[%s472 + $0x8] sm:$0xff] %v767
      %776 = vst [vmem:[%s472 + $0x10] sm:$0xff] %v768
      %777 = vst [vmem:[%s472 + $0x18] sm:$0xff] %v769
      %s778 = smul.u32 %s26, 256
      %v779 = vlaneseq
      %v780 = vand.u32 %v779, 127
      %v781 = vadd.s32 %v780, 128
      %v782 = vstv %s778
      %v783 = vadd.s32 %v782, %v780
      %v784 = vadd.s32 %v782, %v781
      %vm785 = vcmp.lt.s32.totalorder %v783, 256
      %vm786 = vcmp.lt.s32.totalorder %v784, 256
      %v787 = vsel %vm785, 1, 0
      %v788 = vsel %vm786, 1, 0
      %vm789 = vcmp.eq.s32.totalorder %v787, 1
      %vm790 = vcmp.eq.s32.totalorder %v788, 1
      %v791 = vsel %vm789, %v742, 0.0
      %v792 = vsel %vm790, %v743, 0.0
      %v793 = vsel %vm789, %v744, 0.0
      %v794 = vsel %vm790, %v745, 0.0
      %v795 = vsel %vm789, %v746, 0.0
      %v796 = vsel %vm790, %v747, 0.0
      %v797 = vsel %vm789, %v748, 0.0
      %v798 = vsel %vm790, %v749, 0.0
      %v799 = vadd.f32 %v791, %v792
      %800 = vadd.xlane.f32.xlu0 %v799
      %v801 = vpop.xlane.xlu0 %800
      %v802 = vadd.f32 %v793, %v794
      %803 = vadd.xlane.f32.xlu0 %v802
      %v804 = vpop.xlane.xlu0 %803
      %v805 = vadd.f32 %v795, %v796
      %806 = vadd.xlane.f32.xlu0 %v805
      %v807 = vpop.xlane.xlu0 %806
      %v808 = vadd.f32 %v797, %v798
      %809 = vadd.xlane.f32.xlu0 %v808
      %v810 = vpop.xlane.xlu0 %809
      %v811 = vmul.f32 %v791, %v791
      %v812 = vmul.f32 %v792, %v792
      %v813 = vmul.f32 %v793, %v793
      %v814 = vmul.f32 %v794, %v794
      %v815 = vmul.f32 %v795, %v795
      %v816 = vmul.f32 %v796, %v796
      %v817 = vmul.f32 %v797, %v797
      %v818 = vmul.f32 %v798, %v798
      %v819 = vadd.f32 %v811, %v812
      %820 = vadd.xlane.f32.xlu0 %v819
      %v821 = vpop.xlane.xlu0 %820
      %v822 = vadd.f32 %v813, %v814
      %823 = vadd.xlane.f32.xlu0 %v822
      %v824 = vpop.xlane.xlu0 %823
      %v825 = vadd.f32 %v815, %v816
      %826 = vadd.xlane.f32.xlu0 %v825
      %v827 = vpop.xlane.xlu0 %826
      %v828 = vadd.f32 %v817, %v818
      %829 = vadd.xlane.f32.xlu0 %v828
      %v830 = vpop.xlane.xlu0 %829
      %vm831 = vcmask 7168
      %v832 = vsel %vm831, %v801, %v821
      %v833 = vsel %vm831, %v804, %v824
      %v834 = vsel %vm831, %v807, %v827
      %v835 = vsel %vm831, %v810, %v830
      %p836 = scmp.eq.s32.totalorder %s26, 0
      // Predicated region
      $region53: #{block_forward.6} parent=51 // pred_check
        %p837 = pneg %p836
      $region54: #{block_forward.6} parent=51 // pred_check_branch
        %839 = sbr.rel (%p837) target = $region56
      $region55: #{block_forward.6} parent=51 // pred_region
        %vm840 = vcmask 15360
        %841 = vst.msk [vmem:[%s478] sm:$0xff] %vm840, %v832
        %842 = vst.msk [vmem:[%s478 + $0x8] sm:$0xff] %vm840, %v833
        %843 = vst.msk [vmem:[%s478 + $0x10] sm:$0xff] %vm840, %v834
        %844 = vst.msk [vmem:[%s478 + $0x18] sm:$0xff] %vm840, %v835
      $region56: #{block_forward.6} parent=51 // pred_fallthru
        _
      %p845 = scmp.gt.s32.totalorder %s26, 0
      // Predicated region
      $region57: #{block_forward.6} parent=51 // pred_check
        %p846 = pneg %p845
      $region58: #{block_forward.6} parent=51 // pred_check_branch
        %848 = sbr.rel (%p846) target = $region60
      $region59: #{block_forward.6} parent=51 // pred_region
        %v849 = vld [vmem:[%s478] sm:$0xff]
        %v850 = vld [vmem:[%s478 + $0x8] sm:$0xff]
        %v851 = vld [vmem:[%s478 + $0x10] sm:$0xff]
        %v852 = vld [vmem:[%s478 + $0x18] sm:$0xff]
        %v853 = vadd.f32 %v849, %v832
        %v854 = vadd.f32 %v850, %v833
        %v855 = vadd.f32 %v851, %v834
        %v856 = vadd.f32 %v852, %v835
        %vm857 = vcmask 15360
        %858 = vst.msk [vmem:[%s478] sm:$0xff] %vm857, %v853
        %859 = vst.msk [vmem:[%s478 + $0x8] sm:$0xff] %vm857, %v854
        %860 = vst.msk [vmem:[%s478 + $0x10] sm:$0xff] %vm857, %v855
        %861 = vst.msk [vmem:[%s478 + $0x18] sm:$0xff] %vm857, %v856
      $region60: #{block_forward.6} parent=51 // pred_fallthru
        _
      %s862 = smul.u32 2, %s26
      %p863 = scmp.lt.s32.totalorder %s25, 1
      %s864 = scalar_select %p863, %s25, 1
      %p865 = scmp.lt.s32.totalorder %s862, 1
      %s866 = scalar_select %p865, %s862, 1
      %s867 = smul.addr %s864, 8
      %s868 = sadd.s32 %s866, %s867
      %s869 = smul.addr %s868, 4
      %s870 = scalar_lea.vmem %s8, %s869
      %p871 = scmp.lt.s32.totalorder %s25, 1
      %s872 = scalar_select %p871, %s25, 1
      %s873 = smul.addr %s872, 4
      %s874 = smul.addr %s873, 8
      %s875 = scalar_lea.vmem %s9, %s874
      // Predicated region
      $region61: #{block_forward.6} parent=51 // pred_check
        %p876 = pneg %p250
      $region62: #{block_forward.6} parent=51 // pred_check_branch
        %878 = sbr.rel (%p876) target = $region64
      $region63: #{block_forward.6} parent=51 // pred_region
        %s879 = smul.u32 2, %s26
      $region64: #{block_forward.6} parent=51 // pred_fallthru
        _
      // Predicated region
      $region65: #{block_forward.6} parent=51 // pred_check
        %p880 = pneg %p276
      $region66: #{block_forward.6} parent=51 // pred_check_branch
        %882 = sbr.rel (%p880) target = $region68
      $region67: #{block_forward.6} parent=51 // pred_region
        _
      $region68: #{block_forward.6} parent=51 // pred_fallthru
        _
    $region52: #{block_forward.6} parent=5 // pred_fallthru
      _
    %p883 = scmp.le.s32.totalorder 2, %s16
    // Predicated region
    $region69: #{block_forward.6} parent=5 // pred_check
      %p884 = pneg %p883
    $region70: #{block_forward.6} parent=5 // pred_check_branch
      %886 = sbr.rel (%p884) target = $region72
    $region71: #{block_forward.6} parent=5 // pred_region
      %s887 = ssub.s32 %s16, 2
      // Predicated region
      $region73: #{block_forward.6} parent=71 // pred_check
        %p888 = pneg %p256
      $region74: #{block_forward.6} parent=71 // pred_check_branch
        %890 = sbr.rel (%p888) target = $region76
      $region75: #{block_forward.6} parent=71 // pred_region
        %s891 = smul.u32 2, %s28
        %p892 = scmp.lt.s32.totalorder %s27, 1
        %s893 = scalar_select %p892, %s27, 1
        %p894 = scmp.lt.s32.totalorder %s891, 1
        %s895 = scalar_select %p894, %s891, 1
        %s896 = smul.addr %s893, 8
        %s897 = sadd.s32 %s895, %s896
        %s898 = smul.addr %s897, 4
        %s899 = scalar_lea.vmem %s8, %s898
      $region76: #{block_forward.6} parent=71 // pred_fallthru
        _
      // Predicated region
      $region77: #{block_forward.6} parent=71 // pred_check
        %p900 = pneg %p282
      $region78: #{block_forward.6} parent=71 // pred_check_branch
        %902 = sbr.rel (%p900) target = $region80
      $region79: #{block_forward.6} parent=71 // pred_region
        %p903 = scmp.lt.s32.totalorder %s27, 1
        %s904 = scalar_select %p903, %s27, 1
        %s905 = smul.addr %s904, 4
        %s906 = smul.addr %s905, 8
        %s907 = scalar_lea.vmem %s9, %s906
      $region80: #{block_forward.6} parent=71 // pred_fallthru
        _
    $region72: #{block_forward.6} parent=5 // pred_fallthru
      _
  $region6: #{block_forward.6} parent=0 // loop_footer
    %s20 = sadd.s32 1, %s16
  $region7: #{block_forward.6} parent=0 // loop_footer_branch
    %15 = sbr.rel target = $region3
  $region8: #{block_forward.6} parent=0 // loop_exit
    _

// kernel: block_forward.7
$region0: #{block_forward.7}
  #allocation0 [shape = 'u32[]', space=smem, size = 0x4, offset = 0x4, fixed_abs, tag = 'smem constant byte address 0x4 - core index']
  #allocation1 [shape = 'u32[144,128]{1,0:T(1,128)}', space=vmem, size = 0x12000, scoped, tag = 'internal scratch']
  %s0 = inlined_call_operand.vmem [shape: bf16[2,32,256], index: 0, kind: input, shape index: {}]
  %s1 = inlined_call_operand.vmem [shape: f32[2,32,256], index: 1, kind: input, shape index: {}]
  %s2 = inlined_call_operand.vmem [shape: f32[2,32,2], index: 2, kind: input, shape index: {}]
  %s3 = inlined_call_operand.vmem [shape: f32[1,256], index: 3, kind: input, shape index: {}]
  %s4 = inlined_call_operand.vmem [shape: f32[1,256], index: 4, kind: input, shape index: {}]
  %s5 = inlined_call_operand.vmem [shape: bf16[128,32], index: 5, kind: input, shape index: {}]
  %s6 = inlined_call_operand.vmem [shape: f32[128,1], index: 6, kind: input, shape index: {}]
  %s7 = inlined_call_operand.vmem [shape: bf16[32,128], index: 7, kind: input, shape index: {}]
  %s8 = inlined_call_operand.vmem [shape: f32[32,1], index: 8, kind: input, shape index: {}]
  %s9 = inlined_call_operand.vmem [shape: f32[2,32,256], index: 9, kind: output, shape index: {}]
  %s10 = sld [smem:[#allocation0]]
  $region69: #{block_forward.7} parent=0
    _
  %s12 = ssub.s32 1, %s10
  %s13 = scalar_select 0, %s12, %s10
  loop: start=0, step=1, limit=4
  $region2: #{block_forward.7} parent=0 // loop_pre_header
    _
  $region3: #{block_forward.7} parent=0 // loop_header
    %s15 = sphi 0, %s19
    %p16 = scmp.ge.s32.totalorder %s15, 4
    %s22 = sphi 0, %s34
    %s23 = sphi 0, %s30
    %s24 = sphi 0, %s22
    %s25 = sphi 0, %s23
    %s26 = sphi 0, %s24
    %s27 = sphi 0, %s25
    %s39 = sphi 0, %s41
    %s42 = sphi 0, %s39
    %s43 = sphi 0, %s42
    %s59 = sphi 0, %s43
    %s67 = sphi 0, %s69
    %s70 = sphi 0, %s67
    %s71 = sphi 0, %s70
    %s87 = sphi 0, %s71
    %s93 = sphi 0, %s95
    %s96 = sphi 0, %s93
    %s97 = sphi 0, %s96
    %s113 = sphi 0, %s97
    %s119 = sphi 0, %s121
    %s122 = sphi 0, %s119
    %s123 = sphi 0, %s122
    %s139 = sphi 0, %s123
    %s145 = sphi 0, %s147
    %s148 = sphi 0, %s145
    %s149 = sphi 0, %s148
    %s165 = sphi 0, %s149
    %s169 = sphi 0, %s169
    %s171 = sphi 0, %s169
    %s172 = sphi 0, %s171
    %s186 = sphi 0, %s172
    %s190 = sphi 0, %s190
    %s192 = sphi 0, %s190
    %s193 = sphi 0, %s192
    %s207 = sphi 0, %s193
    %s211 = sphi 0, %s211
    %s213 = sphi 0, %s211
    %s214 = sphi 0, %s213
    %s228 = sphi 0, %s214
    %s232 = sphi 0, %s232
    %s234 = sphi 0, %s232
    %s235 = sphi 0, %s234
    %s249 = sphi 0, %s235
    %s257 = sphi 0, %s259
    %s260 = sphi 0, %s257
    %s261 = sphi 0, %s260
    %s277 = sphi 0, %s261
  $region4: #{block_forward.7} parent=0 // loop_header_branch
    %18 = sbr.rel (%p16) target = $region8
  $region5: #{block_forward.7} parent=0 // loop_body
    %s20 = ssub.s32 %s15, 1
    %s21 = ssub.s32 %s15, 2
    %s28 = sadd.s32 1, %s23
    %p29 = scmp.ge.s32.totalorder %s28, 1
    %s30 = scalar_select %p29, 0, %s28
    %s31 = sadd.s32 1, %s22
    %s32 = scalar_select %p29, %s31, %s22
    %p33 = scmp.ge.s32.totalorder %s32, 2
    %s34 = scalar_select %p33, 0, %s32
    %s35 = ssub.s32 %s22, %s34
    %s36 = ssub.s32 %s23, %s30
    %s37 = sor.u32 %s35, %s36
    %p38 = scmp.eq.s32.totalorder %s37, 0
    %s40 = sadd.s32 %s39, 1
    %s41 = scalar_select %p38, %s39, %s40
    %p44 = pneg %p38
    %p45 = scmp.eq.s32.totalorder %s15, 1
    %p46 = por %p44, %p45
    %p47 = scmp.ne.s32.totalorder %s39, %s42
    %p48 = scmp.eq.s32.totalorder %s15, 0
    %p49 = por %p47, %p48
    %p50 = scmp.ne.s32.totalorder %s39, %s42
    %p51 = scmp.eq.s32.totalorder %s20, 1
    %p52 = por %p50, %p51
    %p53 = scmp.ne.s32.totalorder %s42, %s43
    %p54 = scmp.eq.s32.totalorder %s20, 0
    %p55 = por %p53, %p54
    %p56 = scmp.ne.s32.totalorder %s42, %s43
    %p57 = scmp.eq.s32.totalorder %s21, 1
    %p58 = por %p56, %p57
    %p60 = scmp.ne.s32.totalorder %s43, %s59
    %p61 = scmp.eq.s32.totalorder %s21, 0
    %p62 = por %p60, %p61
    %s63 = ssub.s32 %s22, %s34
    %s64 = ssub.s32 %s23, %s30
    %s65 = sor.u32 %s63, %s64
    %p66 = scmp.eq.s32.totalorder %s65, 0
    %s68 = sadd.s32 %s67, 1
    %s69 = scalar_select %p66, %s67, %s68
    %p72 = pneg %p66
    %p73 = scmp.eq.s32.totalorder %s15, 1
    %p74 = por %p72, %p73
    %p75 = scmp.ne.s32.totalorder %s67, %s70
    %p76 = scmp.eq.s32.totalorder %s15, 0
    %p77 = por %p75, %p76
    %p78 = scmp.ne.s32.totalorder %s67, %s70
    %p79 = scmp.eq.s32.totalorder %s20, 1
    %p80 = por %p78, %p79
    %p81 = scmp.ne.s32.totalorder %s70, %s71
    %p82 = scmp.eq.s32.totalorder %s20, 0
    %p83 = por %p81, %p82
    %p84 = scmp.ne.s32.totalorder %s70, %s71
    %p85 = scmp.eq.s32.totalorder %s21, 1
    %p86 = por %p84, %p85
    %p88 = scmp.ne.s32.totalorder %s71, %s87
    %p89 = scmp.eq.s32.totalorder %s21, 0
    %p90 = por %p88, %p89
    %s91 = ssub.s32 %s22, %s34
    %p92 = scmp.eq.s32.totalorder %s91, 0
    %s94 = sadd.s32 %s93, 1
    %s95 = scalar_select %p92, %s93, %s94
    %p98 = pneg %p92
    %p99 = scmp.eq.s32.totalorder %s15, 1
    %p100 = por %p98, %p99
    %p101 = scmp.ne.s32.totalorder %s93, %s96
    %p102 = scmp.eq.s32.totalorder %s15, 0
    %p103 = por %p101, %p102
    %p104 = scmp.ne.s32.totalorder %s93, %s96
    %p105 = scmp.eq.s32.totalorder %s20, 1
    %p106 = por %p104, %p105
    %p107 = scmp.ne.s32.totalorder %s96, %s97
    %p108 = scmp.eq.s32.totalorder %s20, 0
    %p109 = por %p107, %p108
    %p110 = scmp.ne.s32.totalorder %s96, %s97
    %p111 = scmp.eq.s32.totalorder %s21, 1
    %p112 = por %p110, %p111
    %p114 = scmp.ne.s32.totalorder %s97, %s113
    %p115 = scmp.eq.s32.totalorder %s21, 0
    %p116 = por %p114, %p115
    %s117 = ssub.s32 %s23, %s30
    %p118 = scmp.eq.s32.totalorder %s117, 0
    %s120 = sadd.s32 %s119, 1
    %s121 = scalar_select %p118, %s119, %s120
    %p124 = pneg %p118
    %p125 = scmp.eq.s32.totalorder %s15, 1
    %p126 = por %p124, %p125
    %p127 = scmp.ne.s32.totalorder %s119, %s122
    %p128 = scmp.eq.s32.totalorder %s15, 0
    %p129 = por %p127, %p128
    %p130 = scmp.ne.s32.totalorder %s119, %s122
    %p131 = scmp.eq.s32.totalorder %s20, 1
    %p132 = por %p130, %p131
    %p133 = scmp.ne.s32.totalorder %s122, %s123
    %p134 = scmp.eq.s32.totalorder %s20, 0
    %p135 = por %p133, %p134
    %p136 = scmp.ne.s32.totalorder %s122, %s123
    %p137 = scmp.eq.s32.totalorder %s21, 1
    %p138 = por %p136, %p137
    %p140 = scmp.ne.s32.totalorder %s123, %s139
    %p141 = scmp.eq.s32.totalorder %s21, 0
    %p142 = por %p140, %p141
    %s143 = ssub.s32 %s23, %s30
    %p144 = scmp.eq.s32.totalorder %s143, 0
    %s146 = sadd.s32 %s145, 1
    %s147 = scalar_select %p144, %s145, %s146
    %p150 = pneg %p144
    %p151 = scmp.eq.s32.totalorder %s15, 1
    %p152 = por %p150, %p151
    %p153 = scmp.ne.s32.totalorder %s145, %s148
    %p154 = scmp.eq.s32.totalorder %s15, 0
    %p155 = por %p153, %p154
    %p156 = scmp.ne.s32.totalorder %s145, %s148
    %p157 = scmp.eq.s32.totalorder %s20, 1
    %p158 = por %p156, %p157
    %p159 = scmp.ne.s32.totalorder %s148, %s149
    %p160 = scmp.eq.s32.totalorder %s20, 0
    %p161 = por %p159, %p160
    %p162 = scmp.ne.s32.totalorder %s148, %s149
    %p163 = scmp.eq.s32.totalorder %s21, 1
    %p164 = por %p162, %p163
    %p166 = scmp.ne.s32.totalorder %s149, %s165
    %p167 = scmp.eq.s32.totalorder %s21, 0
    %p168 = por %p166, %p167
    %s170 = sadd.s32 %s169, 1
    %p173 = scmp.eq.s32.totalorder %s15, 1
    %p174 = scmp.ne.s32.totalorder %s169, %s171
    %p175 = scmp.eq.s32.totalorder %s15, 0
    %p176 = por %p174, %p175
    %p177 = scmp.ne.s32.totalorder %s169, %s171
    %p178 = scmp.eq.s32.totalorder %s20, 1
    %p179 = por %p177, %p178
    %p180 = scmp.ne.s32.totalorder %s171, %s172
    %p181 = scmp.eq.s32.totalorder %s20, 0
    %p182 = por %p180, %p181
    %p183 = scmp.ne.s32.totalorder %s171, %s172
    %p184 = scmp.eq.s32.totalorder %s21, 1
    %p185 = por %p183, %p184
    %p187 = scmp.ne.s32.totalorder %s172, %s186
    %p188 = scmp.eq.s32.totalorder %s21, 0
    %p189 = por %p187, %p188
    %s191 = sadd.s32 %s190, 1
    %p194 = scmp.eq.s32.totalorder %s15, 1
    %p195 = scmp.ne.s32.totalorder %s190, %s192
    %p196 = scmp.eq.s32.totalorder %s15, 0
    %p197 = por %p195, %p196
    %p198 = scmp.ne.s32.totalorder %s190, %s192
    %p199 = scmp.eq.s32.totalorder %s20, 1
    %p200 = por %p198, %p199
    %p201 = scmp.ne.s32.totalorder %s192, %s193
    %p202 = scmp.eq.s32.totalorder %s20, 0
    %p203 = por %p201, %p202
    %p204 = scmp.ne.s32.totalorder %s192, %s193
    %p205 = scmp.eq.s32.totalorder %s21, 1
    %p206 = por %p204, %p205
    %p208 = scmp.ne.s32.totalorder %s193, %s207
    %p209 = scmp.eq.s32.totalorder %s21, 0
    %p210 = por %p208, %p209
    %s212 = sadd.s32 %s211, 1
    %p215 = scmp.eq.s32.totalorder %s15, 1
    %p216 = scmp.ne.s32.totalorder %s211, %s213
    %p217 = scmp.eq.s32.totalorder %s15, 0
    %p218 = por %p216, %p217
    %p219 = scmp.ne.s32.totalorder %s211, %s213
    %p220 = scmp.eq.s32.totalorder %s20, 1
    %p221 = por %p219, %p220
    %p222 = scmp.ne.s32.totalorder %s213, %s214
    %p223 = scmp.eq.s32.totalorder %s20, 0
    %p224 = por %p222, %p223
    %p225 = scmp.ne.s32.totalorder %s213, %s214
    %p226 = scmp.eq.s32.totalorder %s21, 1
    %p227 = por %p225, %p226
    %p229 = scmp.ne.s32.totalorder %s214, %s228
    %p230 = scmp.eq.s32.totalorder %s21, 0
    %p231 = por %p229, %p230
    %s233 = sadd.s32 %s232, 1
    %p236 = scmp.eq.s32.totalorder %s15, 1
    %p237 = scmp.ne.s32.totalorder %s232, %s234
    %p238 = scmp.eq.s32.totalorder %s15, 0
    %p239 = por %p237, %p238
    %p240 = scmp.ne.s32.totalorder %s232, %s234
    %p241 = scmp.eq.s32.totalorder %s20, 1
    %p242 = por %p240, %p241
    %p243 = scmp.ne.s32.totalorder %s234, %s235
    %p244 = scmp.eq.s32.totalorder %s20, 0
    %p245 = por %p243, %p244
    %p246 = scmp.ne.s32.totalorder %s234, %s235
    %p247 = scmp.eq.s32.totalorder %s21, 1
    %p248 = por %p246, %p247
    %p250 = scmp.ne.s32.totalorder %s235, %s249
    %p251 = scmp.eq.s32.totalorder %s21, 0
    %p252 = por %p250, %p251
    %s253 = ssub.s32 %s22, %s34
    %s254 = ssub.s32 %s23, %s30
    %s255 = sor.u32 %s253, %s254
    %p256 = scmp.eq.s32.totalorder %s255, 0
    %s258 = sadd.s32 %s257, 1
    %s259 = scalar_select %p256, %s257, %s258
    %p262 = pneg %p256
    %p263 = scmp.eq.s32.totalorder %s15, 1
    %p264 = por %p262, %p263
    %p265 = scmp.ne.s32.totalorder %s257, %s260
    %p266 = scmp.eq.s32.totalorder %s15, 0
    %p267 = por %p265, %p266
    %p268 = scmp.ne.s32.totalorder %s257, %s260
    %p269 = scmp.eq.s32.totalorder %s20, 1
    %p270 = por %p268, %p269
    %p271 = scmp.ne.s32.totalorder %s260, %s261
    %p272 = scmp.eq.s32.totalorder %s20, 0
    %p273 = por %p271, %p272
    %p274 = scmp.ne.s32.totalorder %s260, %s261
    %p275 = scmp.eq.s32.totalorder %s21, 1
    %p276 = por %p274, %p275
    %p278 = scmp.ne.s32.totalorder %s261, %s277
    %p279 = scmp.eq.s32.totalorder %s21, 0
    %p280 = por %p278, %p279
    %p281 = scmp.le.s32.totalorder 1, %s15
    %p282 = scmp.lt.s32.totalorder %s15, 3
    %p283 = pnand %p281, %p282
    %p284 = pneg %p283
    // Predicated region
    $region9: #{block_forward.7} parent=5 // pred_check
      _
    $region10: #{block_forward.7} parent=5 // pred_check_branch
      %286 = sbr.rel (%p283) target = $region12
    $region11: #{block_forward.7} parent=5 // pred_region
      %s287 = ssub.s32 %s15, 1
      // Predicated region
      $region13: #{block_forward.7} parent=11 // pred_check
        %p288 = pneg %p135
      $region14: #{block_forward.7} parent=11 // pred_check_branch
        %290 = sbr.rel (%p288) target = $region16
      $region15: #{block_forward.7} parent=11 // pred_region
        %s291 = smul.u32 2, %s25
        %p292 = scmp.lt.s32.totalorder %s291, 1
        %s293 = scalar_select %p292, %s291, 1
        %s294 = scalar_lea.vmem %s3, %s293
        %s295 = smul.u32 2, %s25
      $region16: #{block_forward.7} parent=11 // pred_fallthru
        _
      // Predicated region
      $region17: #{block_forward.7} parent=11 // pred_check
        %p296 = pneg %p161
      $region18: #{block_forward.7} parent=11 // pred_check_branch
        %298 = sbr.rel (%p296) target = $region20
      $region19: #{block_forward.7} parent=11 // pred_region
        %s299 = smul.u32 2, %s25
        %p300 = scmp.lt.s32.totalorder %s299, 1
        %s301 = scalar_select %p300, %s299, 1
        %s302 = scalar_lea.vmem %s4, %s301
        %s303 = smul.u32 2, %s25
      $region20: #{block_forward.7} parent=11 // pred_fallthru
        _
      // Predicated region
      $region21: #{block_forward.7} parent=11 // pred_check
        %p304 = pneg %p182
      $region22: #{block_forward.7} parent=11 // pred_check_branch
        %306 = sbr.rel (%p304) target = $region24
      $region23: #{block_forward.7} parent=11 // pred_region
        _
      $region24: #{block_forward.7} parent=11 // pred_fallthru
        _
      // Predicated region
      $region25: #{block_forward.7} parent=11 // pred_check
        %p307 = pneg %p203
      $region26: #{block_forward.7} parent=11 // pred_check_branch
        %309 = sbr.rel (%p307) target = $region28
      $region27: #{block_forward.7} parent=11 // pred_region
        _
      $region28: #{block_forward.7} parent=11 // pred_fallthru
        _
      // Predicated region
      $region29: #{block_forward.7} parent=11 // pred_check
        %p310 = pneg %p224
      $region30: #{block_forward.7} parent=11 // pred_check_branch
        %312 = sbr.rel (%p310) target = $region32
      $region31: #{block_forward.7} parent=11 // pred_region
        _
      $region32: #{block_forward.7} parent=11 // pred_fallthru
        _
      // Predicated region
      $region33: #{block_forward.7} parent=11 // pred_check
        %p313 = pneg %p245
      $region34: #{block_forward.7} parent=11 // pred_check_branch
        %315 = sbr.rel (%p313) target = $region36
      $region35: #{block_forward.7} parent=11 // pred_region
        _
      $region36: #{block_forward.7} parent=11 // pred_fallthru
        _
    $region12: #{block_forward.7} parent=5 // pred_fallthru
      _
    %p316 = scmp.lt.s32.totalorder %s15, 2
    // Predicated region
    $region37: #{block_forward.7} parent=5 // pred_check
      %p317 = pneg %p316
    $region38: #{block_forward.7} parent=5 // pred_check_branch
      %319 = sbr.rel (%p317) target = $region40
    $region39: #{block_forward.7} parent=5 // pred_region
      // Predicated region
      $region41: #{block_forward.7} parent=39 // pred_check
        %p320 = pneg %p49
      $region42: #{block_forward.7} parent=39 // pred_check_branch
        %322 = sbr.rel (%p320) target = $region44
      $region43: #{block_forward.7} parent=39 // pred_region
        %s323 = smul.u32 2, %s23
        %p324 = scmp.lt.s32.totalorder %s22, 1
        %s325 = scalar_select %p324, %s22, 1
        %p326 = scmp.lt.s32.totalorder %s323, 1
        %s327 = scalar_select %p326, %s323, 1
        %s328 = smul.addr %s325, 8
        %s329 = sadd.s32 %s327, %s328
        %s330 = smul.addr %s329, 4
        %s331 = scalar_lea.vmem %s0, %s330
        %s332 = smul.u32 2, %s23
      $region44: #{block_forward.7} parent=39 // pred_fallthru
        _
      // Predicated region
      $region45: #{block_forward.7} parent=39 // pred_check
        %p333 = pneg %p77
      $region46: #{block_forward.7} parent=39 // pred_check_branch
        %335 = sbr.rel (%p333) target = $region48
      $region47: #{block_forward.7} parent=39 // pred_region
        %s336 = smul.u32 2, %s23
        %p337 = scmp.lt.s32.totalorder %s22, 1
        %s338 = scalar_select %p337, %s22, 1
        %p339 = scmp.lt.s32.totalorder %s336, 1
        %s340 = scalar_select %p339, %s336, 1
        %s341 = smul.addr %s338, 8
        %s342 = sadd.s32 %s340, %s341
        %s343 = smul.addr %s342, 8
        %s344 = scalar_lea.vmem %s1, %s343
        %s345 = smul.u32 2, %s23
      $region48: #{block_forward.7} parent=39 // pred_fallthru
        _
      // Predicated region
      $region49: #{block_forward.7} parent=39 // pred_check
        %p346 = pneg %p103
      $region50: #{block_forward.7} parent=39 // pred_check_branch
        %348 = sbr.rel (%p346) target = $region52
      $region51: #{block_forward.7} parent=39 // pred_region
        %p349 = scmp.lt.s32.totalorder %s22, 1
        %s350 = scalar_select %p349, %s22, 1
        %s351 = smul.addr %s350, 4
        %s352 = smul.addr %s351, 8
        %s353 = scalar_lea.vmem %s2, %s352
      $region52: #{block_forward.7} parent=39 // pred_fallthru
        _
    $region40: #{block_forward.7} parent=5 // pred_fallthru
      _
    %p354 = scmp.le.s32.totalorder 1, %s15
    %p355 = scmp.lt.s32.totalorder %s15, 3
    %p356 = pnand %p354, %p355
    %p357 = pneg %p356
    // Predicated region
    $region53: #{block_forward.7} parent=5 // pred_check
      _
    $region54: #{block_forward.7} parent=5 // pred_check_branch
      %359 = sbr.rel (%p356) target = $region56
    $region55: #{block_forward.7} parent=5 // pred_region
      %s360 = ssub.s32 %s15, 1
      %s361 = smul.u32 2, %s25
      %p362 = scmp.lt.s32.totalorder %s24, 1
      %s363 = scalar_select %p362, %s24, 1
      %p364 = scmp.lt.s32.totalorder %s361, 1
      %s365 = scalar_select %p364, %s361, 1
      %s366 = smul.addr %s363, 8
      %s367 = sadd.s32 %s365, %s366
      %s368 = smul.addr %s367, 4
      %s369 = scalar_lea.vmem %s0, %s368
      %p370 = pneg %p55
      %p371 = pneg %p52
      %s372 = smul.u32 2, %s25
      %p373 = scmp.lt.s32.totalorder %s24, 1
      %s374 = scalar_select %p373, %s24, 1
      %p375 = scmp.lt.s32.totalorder %s372, 1
      %s376 = scalar_select %p375, %s372, 1
      %s377 = smul.addr %s374, 8
      %s378 = sadd.s32 %s376, %s377
      %s379 = smul.addr %s378, 8
      %s380 = scalar_lea.vmem %s1, %s379
      %p381 = pneg %p83
      %p382 = pneg %p80
      %p383 = scmp.lt.s32.totalorder %s24, 1
      %s384 = scalar_select %p383, %s24, 1
      %s385 = smul.addr %s384, 4
      %s386 = smul.addr %s385, 8
      %s387 = scalar_lea.vmem %s2, %s386
      %p388 = pneg %p109
      %p389 = pneg %p106
      %s390 = smul.u32 2, %s25
      %p391 = scmp.lt.s32.totalorder %s390, 1
      %s392 = scalar_select %p391, %s390, 1
      %s393 = scalar_lea.vmem %s3, %s392
      %p394 = pneg %p135
      %p395 = pneg %p132
      %s396 = smul.u32 2, %s25
      %p397 = scmp.lt.s32.totalorder %s396, 1
      %s398 = scalar_select %p397, %s396, 1
      %s399 = scalar_lea.vmem %s4, %s398
      %p400 = pneg %p161
      %p401 = pneg %p158
      %p402 = pneg %p182
      %p403 = pneg %p179
      %p404 = pneg %p203
      %p405 = pneg %p200
      %p406 = pneg %p224
      %p407 = pneg %p221
      %p408 = pneg %p245
      %p409 = pneg %p242
      %p410 = pneg %p273
      %p411 = pneg %p270
      %s412 = smul.u32 2, %s25
      %p413 = scmp.lt.s32.totalorder %s24, 1
      %s414 = scalar_select %p413, %s24, 1
      %p415 = scmp.lt.s32.totalorder %s412, 1
      %s416 = scalar_select %p415, %s412, 1
      %s417 = smul.addr %s414, 8
      %s418 = sadd.s32 %s416, %s417
      %s419 = smul.addr %s418, 8
      %s420 = scalar_lea.vmem %s9, %s419
      %s421 = smul.u32 2, %s25
      %p422 = scmp.lt.s32.totalorder %s24, 1
      %s423 = scalar_select %p422, %s24, 1
      %p424 = scmp.lt.s32.totalorder %s421, 1
      %s425 = scalar_select %p424, %s421, 1
      %s426 = smul.addr %s423, 8
      %s427 = sadd.s32 %s425, %s426
      %s428 = smul.addr %s427, 4
      %s429 = scalar_lea.vmem %s0, %s428
      %s430 = smul.u32 2, %s25
      %s431 = smul.u32 2, %s25
      %p432 = scmp.lt.s32.totalorder %s24, 1
      %s433 = scalar_select %p432, %s24, 1
      %p434 = scmp.lt.s32.totalorder %s431, 1
      %s435 = scalar_select %p434, %s431, 1
      %s436 = smul.addr %s433, 8
      %s437 = sadd.s32 %s435, %s436
      %s438 = smul.addr %s437, 8
      %s439 = scalar_lea.vmem %s1, %s438
      %s440 = smul.u32 2, %s25
      %p441 = scmp.lt.s32.totalorder %s24, 1
      %s442 = scalar_select %p441, %s24, 1
      %s443 = smul.addr %s442, 4
      %s444 = smul.addr %s443, 8
      %s445 = scalar_lea.vmem %s2, %s444
      %s446 = smul.u32 2, %s25
      %p447 = scmp.lt.s32.totalorder %s446, 1
      %s448 = scalar_select %p447, %s446, 1
      %s449 = scalar_lea.vmem %s3, %s448
      %s450 = smul.u32 2, %s25
      %s451 = smul.u32 2, %s25
      %p452 = scmp.lt.s32.totalorder %s451, 1
      %s453 = scalar_select %p452, %s451, 1
      %s454 = scalar_lea.vmem %s4, %s453
      %s455 = smul.u32 2, %s25
      %s456 = smul.u32 2, %s25
      %p457 = scmp.lt.s32.totalorder %s24, 1
      %s458 = scalar_select %p457, %s24, 1
      %p459 = scmp.lt.s32.totalorder %s456, 1
      %s460 = scalar_select %p459, %s456, 1
      %s461 = smul.addr %s458, 8
      %s462 = sadd.s32 %s460, %s461
      %s463 = smul.addr %s462, 8
      %s464 = scalar_lea.vmem %s9, %s463
      %s465 = smul.u32 2, %s25
      %v467 = vld [vmem:[%s445] sm:$0xff]
      %v468 = vld [vmem:[%s445 + $0x8] sm:$0xff]
      %v469 = vld [vmem:[%s445 + $0x10] sm:$0xff]
      %v470 = vld [vmem:[%s445 + $0x18] sm:$0xff]
      %v471 = vmul.f32 %v467, 0.00390625
      %v472 = vmul.f32 %v468, 0.00390625
      %v473 = vmul.f32 %v469, 0.00390625
      %v474 = vmul.f32 %v470, 0.00390625
      %v475 = vmul.f32 %v471, %v471
      %v476 = vmul.f32 %v472, %v472
      %v477 = vmul.f32 %v473, %v473
      %v478 = vmul.f32 %v474, %v474
      %483 = vrot.lane.b32.xlu0 %v475, 1
      %v484 = vpop.permute.xlu0 %483
      %485 = vrot.lane.b32.xlu0 %v476, 1
      %v486 = vpop.permute.xlu0 %485
      %487 = vrot.lane.b32.xlu0 %v477, 1
      %v488 = vpop.permute.xlu0 %487
      %489 = vrot.lane.b32.xlu0 %v478, 1
      %v490 = vpop.permute.xlu0 %489
      %v495 = vsub.f32 %v471, %v484
      %v496 = vsub.f32 %v472, %v486
      %v497 = vsub.f32 %v473, %v488
      %v498 = vsub.f32 %v474, %v490
      %v499 = vadd.f32 %v495, 1e-06
      %v500 = vadd.f32 %v496, 1e-06
      %v501 = vadd.f32 %v497, 1e-06
      %v502 = vadd.f32 %v498, 1e-06
      %v503 = vrsqrt.pop %v499
      %v504 = vrsqrt.pop %v500
      %v505 = vrsqrt.pop %v501
      %v506 = vrsqrt.pop %v502
      %v507 = vld [vmem:[%s429] sm:$0xff]
      %v508 = vld [vmem:[%s429 + $0x8] sm:$0xff]
      %v509 = vld [vmem:[%s429 + $0x10] sm:$0xff]
      %v510 = vld [vmem:[%s429 + $0x18] sm:$0xff]
      %v511 = vunpack.c.l.bf16 %v507
      %v512 = vunpack.c.h.bf16 %v507
      %v513 = vunpack.c.l.bf16 %v508
      %v514 = vunpack.c.h.bf16 %v508
      %v515 = vunpack.c.l.bf16 %v509
      %v516 = vunpack.c.h.bf16 %v509
      %v517 = vunpack.c.l.bf16 %v510
      %v518 = vunpack.c.h.bf16 %v510
      %520 = vset.pattern.permute.xlu0 0
      %521 = vperm.xlu0 %520, %v471
      %v522 = vpop.permute.xlu0 %521
      %525 = vset.pattern.permute.xlu0 0
      %526 = vperm.xlu0 %525, %v472
      %v527 = vpop.permute.xlu0 %526
      %530 = vset.pattern.permute.xlu0 0
      %531 = vperm.xlu0 %530, %v473
      %v532 = vpop.permute.xlu0 %531
      %535 = vset.pattern.permute.xlu0 0
      %536 = vperm.xlu0 %535, %v474
      %v537 = vpop.permute.xlu0 %536
      %v539 = vsub.f32 %v511, %v522
      %v540 = vsub.f32 %v512, %v522
      %v541 = vsub.f32 %v513, %v527
      %v542 = vsub.f32 %v514, %v527
      %v543 = vsub.f32 %v515, %v532
      %v544 = vsub.f32 %v516, %v532
      %v545 = vsub.f32 %v517, %v537
      %v546 = vsub.f32 %v518, %v537
      %548 = vset.pattern.permute.xlu0 1
      %549 = vperm.xlu0 %548, %v503
      %v550 = vpop.permute.xlu0 %549
      %553 = vset.pattern.permute.xlu0 1
      %554 = vperm.xlu0 %553, %v504
      %v555 = vpop.permute.xlu0 %554
      %558 = vset.pattern.permute.xlu0 1
      %559 = vperm.xlu0 %558, %v505
      %v560 = vpop.permute.xlu0 %559
      %563 = vset.pattern.permute.xlu0 1
      %564 = vperm.xlu0 %563, %v506
      %v565 = vpop.permute.xlu0 %564
      %v567 = vmul.f32 %v539, %v550
      %v568 = vmul.f32 %v540, %v550
      %v569 = vmul.f32 %v541, %v555
      %v570 = vmul.f32 %v542, %v555
      %v571 = vmul.f32 %v543, %v560
      %v572 = vmul.f32 %v544, %v560
      %v573 = vmul.f32 %v545, %v565
      %v574 = vmul.f32 %v546, %v565
      %v575 = vld [vmem:[%s449] sm:$0x3]
      %v577 = vlaneseq
      %v578 = vshrl.u32 %v577, 7
      %v579 = vsub.s32 0, %v578
      %v580 = vrot.slane %v575, %v579
      %v581 = vlaneseq
      %v582 = vshrl.u32 %v581, 7
      %v583 = vsub.s32 1, %v582
      %v584 = vrot.slane %v575, %v583
      %v587 = vmul.f32 %v567, %v580
      %v588 = vmul.f32 %v568, %v584
      %v589 = vmul.f32 %v569, %v580
      %v590 = vmul.f32 %v570, %v584
      %v591 = vmul.f32 %v571, %v580
      %v592 = vmul.f32 %v572, %v584
      %v593 = vmul.f32 %v573, %v580
      %v594 = vmul.f32 %v574, %v584
      %v595 = vld [vmem:[%s454] sm:$0x3]
      %v597 = vlaneseq
      %v598 = vshrl.u32 %v597, 7
      %v599 = vsub.s32 0, %v598
      %v600 = vrot.slane %v595, %v599
      %v601 = vlaneseq
      %v602 = vshrl.u32 %v601, 7
      %v603 = vsub.s32 1, %v602
      %v604 = vrot.slane %v595, %v603
      %v607 = vadd.f32 %v587, %v600
      %v608 = vadd.f32 %v588, %v604
      %v609 = vadd.f32 %v589, %v600
      %v610 = vadd.f32 %v590, %v604
      %v611 = vadd.f32 %v591, %v600
      %v612 = vadd.f32 %v592, %v604
      %v613 = vadd.f32 %v593, %v600
      %v614 = vadd.f32 %v594, %v604
      %v615 = vld [vmem:[%s5] sm:$0xf]
      %v616 = vld [vmem:[%s5 + $0x4] sm:$0xf]
      %v617 = vld [vmem:[%s5 + $0x8] sm:$0xf]
      %v618 = vld [vmem:[%s5 + $0xc] sm:$0xf]
      %v619 = vld [vmem:[%s5 + $0x10] sm:$0xf]
      %v620 = vld [vmem:[%s5 + $0x14] sm:$0xf]
      %v621 = vld [vmem:[%s5 + $0x18] sm:$0xf]
      %v622 = vld [vmem:[%s5 + $0x1c] sm:$0xf]
      %v623 = vld [vmem:[%s5 + $0x20] sm:$0xf]
      %v624 = vld [vmem:[%s5 + $0x24] sm:$0xf]
      %v625 = vld [vmem:[%s5 + $0x28] sm:$0xf]
      %v626 = vld [vmem:[%s5 + $0x2c] sm:$0xf]
      %v627 = vld [vmem:[%s5 + $0x30] sm:$0xf]
      %v628 = vld [vmem:[%s5 + $0x34] sm:$0xf]
      %v629 = vld [vmem:[%s5 + $0x38] sm:$0xf]
      %v630 = vld [vmem:[%s5 + $0x3c] sm:$0xf]
      %v631 = vpack.c.bf16 %v609, %v607
      %v632 = vpack.c.bf16 %v610, %v608
      %v633 = vpack.c.bf16 %v613, %v611
      %v634 = vpack.c.bf16 %v614, %v612
      %v635 = vld [vmem:[%s6] sm:$0xff]
      %v636 = vld [vmem:[%s6 + $0x8] sm:$0xff]
      %v637 = vld [vmem:[%s6 + $0x10] sm:$0xff]
      %v638 = vld [vmem:[%s6 + $0x18] sm:$0xff]
      %v639 = vld [vmem:[%s6 + $0x20] sm:$0xff]
      %v640 = vld [vmem:[%s6 + $0x28] sm:$0xff]
      %v641 = vld [vmem:[%s6 + $0x30] sm:$0xff]
      %v642 = vld [vmem:[%s6 + $0x38] sm:$0xff]
      %v643 = vld [vmem:[%s6 + $0x40] sm:$0xff]
      %v644 = vld [vmem:[%s6 + $0x48] sm:$0xff]
      %v645 = vld [vmem:[%s6 + $0x50] sm:$0xff]
      %v646 = vld [vmem:[%s6 + $0x58] sm:$0xff]
      %v647 = vld [vmem:[%s6 + $0x60] sm:$0xff]
      %v648 = vld [vmem:[%s6 + $0x68] sm:$0xff]
      %v649 = vld [vmem:[%s6 + $0x70] sm:$0xff]
      %v650 = vld [vmem:[%s6 + $0x78] sm:$0xff]
      %652 = vset.pattern.permute.xlu0 0
      %653 = vperm.xlu0 %652, %v635
      %v654 = vpop.permute.xlu0 %653
      %657 = vset.pattern.permute.xlu0 0
      %658 = vperm.xlu0 %657, %v636
      %v659 = vpop.permute.xlu0 %658
      %662 = vset.pattern.permute.xlu0 0
      %663 = vperm.xlu0 %662, %v637
      %v664 = vpop.permute.xlu0 %663
      %667 = vset.pattern.permute.xlu0 0
      %668 = vperm.xlu0 %667, %v638
      %v669 = vpop.permute.xlu0 %668
      %672 = vset.pattern.permute.xlu0 0
      %673 = vperm.xlu0 %672, %v639
      %v674 = vpop.permute.xlu0 %673
      %677 = vset.pattern.permute.xlu0 0
      %678 = vperm.xlu0 %677, %v640
      %v679 = vpop.permute.xlu0 %678
      %682 = vset.pattern.permute.xlu0 0
      %683 = vperm.xlu0 %682, %v641
      %v684 = vpop.permute.xlu0 %683
      %687 = vset.pattern.permute.xlu0 0
      %688 = vperm.xlu0 %687, %v642
      %v689 = vpop.permute.xlu0 %688
      %692 = vset.pattern.permute.xlu0 0
      %693 = vperm.xlu0 %692, %v643
      %v694 = vpop.permute.xlu0 %693
      %697 = vset.pattern.permute.xlu0 0
      %698 = vperm.xlu0 %697, %v644
      %v699 = vpop.permute.xlu0 %698
      %702 = vset.pattern.permute.xlu0 0
      %703 = vperm.xlu0 %702, %v645
      %v704 = vpop.permute.xlu0 %703
      %707 = vset.pattern.permute.xlu0 0
      %708 = vperm.xlu0 %707, %v646
      %v709 = vpop.permute.xlu0 %708
      %712 = vset.pattern.permute.xlu0 0
      %713 = vperm.xlu0 %712, %v647
      %v714 = vpop.permute.xlu0 %713
      %717 = vset.pattern.permute.xlu0 0
      %718 = vperm.xlu0 %717, %v648
      %v719 = vpop.permute.xlu0 %718
      %722 = vset.pattern.permute.xlu0 0
      %723 = vperm.xlu0 %722, %v649
      %v724 = vpop.permute.xlu0 %723
      %727 = vset.pattern.permute.xlu0 0
      %728 = vperm.xlu0 %727, %v650
      %v729 = vpop.permute.xlu0 %728
      %v747 = vunpack.c.l.b16 %v615
      %v748 = vunpack.c.l.b16 %v616
      %v749 = vunpack.c.l.b16 %v617
      %v750 = vunpack.c.l.b16 %v618
      %v751 = vunpack.c.l.b16 %v619
      %v752 = vunpack.c.l.b16 %v620
      %v753 = vunpack.c.l.b16 %v621
      %v754 = vunpack.c.l.b16 %v622
      %v755 = vunpack.c.l.b16 %v623
      %v756 = vunpack.c.l.b16 %v624
      %v757 = vunpack.c.l.b16 %v625
      %v758 = vunpack.c.l.b16 %v626
      %v759 = vunpack.c.l.b16 %v627
      %v760 = vunpack.c.l.b16 %v628
      %v761 = vunpack.c.l.b16 %v629
      %v762 = vunpack.c.l.b16 %v630
      %v763 = vpack.c.b16 %v748, %v747
      %v764 = vpack.c.b16 %v750, %v749
      %v765 = vpack.c.b16 %v752, %v751
      %v766 = vpack.c.b16 %v754, %v753
      %v767 = vpack.c.b16 %v756, %v755
      %v768 = vpack.c.b16 %v758, %v757
      %v769 = vpack.c.b16 %v760, %v759
      %v770 = vpack.c.b16 %v762, %v761
      %vm771 = vcmask 261120
      %v773 = vsel %vm771, %v763, 0
      %v776 = vsel %vm771, %v764, 0
      %v779 = vsel %vm771, %v765, 0
      %v782 = vsel %vm771, %v766, 0
      %v785 = vsel %vm771, %v767, 0
      %v788 = vsel %vm771, %v768, 0
      %v791 = vsel %vm771, %v769, 0
      %v794 = vsel %vm771, %v770, 0
      %796 = vmatprep.subr.bf16.mxu0 0
      %797 = vmatpush1.bf16.msra.mxu0 0
      %798 = vmatprep.subr.bf16.mxu0 0
      %799 = vmatpush1.bf16.msra.mxu0 0
      %800 = vmatprep.subr.bf16.mxu0 0
      %801 = vmatpush1.bf16.msra.mxu0 0
      %802 = vmatprep.subr.bf16.mxu0 0
      %803 = vmatpush1.bf16.msra.mxu0 0
      %804 = vmatprep.subr.bf16.mxu0 0
      %805 = vmatpush1.bf16.msra.mxu0 0
      %806 = vmatprep.subr.bf16.mxu0 0
      %807 = vmatpush1.bf16.msra.mxu0 0
      %808 = vmatprep.subr.bf16.mxu0 %v634
      %809 = vmatpush1.bf16.msra.mxu0 %v633
      %810 = vmatprep.subr.bf16.mxu0 %v632
      %811 = vmatpush1.bf16.msra.mxu0 %v631
      %812 = vmatprep.subr.bf16.mxu0 0
      %813 = vmatpush2.bf16.msra.mxu0 0
      %814 = vmatprep.subr.bf16.mxu0 0
      %815 = vmatpush2.bf16.msra.mxu0 0
      %816 = vmatprep.subr.bf16.mxu0 0
      %817 = vmatpush2.bf16.msra.mxu0 0
      %818 = vmatprep.subr.bf16.mxu0 0
      %819 = vmatpush2.bf16.msra.mxu0 0
      %820 = vmatprep.subr.bf16.mxu0 0
      %821 = vmatpush2.bf16.msra.mxu0 0
      %822 = vmatprep.subr.bf16.mxu0 0
      %823 = vmatpush2.bf16.msra.mxu0 0
      %824 = vmatprep.subr.bf16.mxu0 0
      %825 = vmatpush2.bf16.msra.mxu0 0
      %826 = vmatprep.subr.bf16.mxu0 0
      %827 = vmatpush2.bf16.msra.mxu0 0
      %828 = vmatprep.mubr.bf16.mxu0 0
      %829 = vmatmul.mubr.bf16.gmra.mxu0 %v773
      %v830 = vpop.f32.mrf.mxu0
      %v831 = vadd.f32 %v654, %v830
      %v832 = vpop.f32.mrf.mxu0
      %v833 = vadd.f32 %v654, %v832
      %v834 = vpop.f32.mrf.mxu0
      %v835 = vadd.f32 %v659, %v834
      %v836 = vpop.f32.mrf.mxu0
      %v837 = vadd.f32 %v659, %v836
      %838 = vmatprep.mubr.bf16.mxu0 0
      %839 = vmatmul.mubr.bf16.gmra.mxu0 %v776
      %v840 = vpop.f32.mrf.mxu0
      %v841 = vadd.f32 %v664, %v840
      %v842 = vpop.f32.mrf.mxu0
      %v843 = vadd.f32 %v664, %v842
      %v844 = vpop.f32.mrf.mxu0
      %v845 = vadd.f32 %v669, %v844
      %v846 = vpop.f32.mrf.mxu0
      %v847 = vadd.f32 %v669, %v846
      %848 = vmatprep.mubr.bf16.mxu0 0
      %849 = vmatmul.mubr.bf16.gmra.mxu0 %v779
      %v850 = vpop.f32.mrf.mxu0
      %v851 = vadd.f32 %v674, %v850
      %v852 = vpop.f32.mrf.mxu0
      %v853 = vadd.f32 %v674, %v852
      %v854 = vpop.f32.mrf.mxu0
      %v855 = vadd.f32 %v679, %v854
      %v856 = vpop.f32.mrf.mxu0
      %v857 = vadd.f32 %v679, %v856
      %858 = vmatprep.mubr.bf16.mxu0 0
      %859 = vmatmul.mubr.bf16.gmra.mxu0 %v782
      %v860 = vpop.f32.mrf.mxu0
      %v861 = vadd.f32 %v684, %v860
      %v862 = vpop.f32.mrf.mxu0
      %v863 = vadd.f32 %v684, %v862
      %v864 = vpop.f32.mrf.mxu0
      %v865 = vadd.f32 %v689, %v864
      %v866 = vpop.f32.mrf.mxu0
      %v867 = vadd.f32 %v689, %v866
      %868 = vmatprep.mubr.bf16.mxu0 0
      %869 = vmatmul.mubr.bf16.gmra.mxu0 %v785
      %v870 = vpop.f32.mrf.mxu0
      %v871 = vadd.f32 %v694, %v870
      %v872 = vpop.f32.mrf.mxu0
      %v873 = vadd.f32 %v694, %v872
      %v874 = vpop.f32.mrf.mxu0
      %v875 = vadd.f32 %v699, %v874
      %v876 = vpop.f32.mrf.mxu0
      %v877 = vadd.f32 %v699, %v876
      %878 = vmatprep.mubr.bf16.mxu0 0
      %879 = vmatmul.mubr.bf16.gmra.mxu0 %v788
      %v880 = vpop.f32.mrf.mxu0
      %v881 = vadd.f32 %v704, %v880
      %v882 = vpop.f32.mrf.mxu0
      %v883 = vadd.f32 %v704, %v882
      %v884 = vpop.f32.mrf.mxu0
      %v885 = vadd.f32 %v709, %v884
      %v886 = vpop.f32.mrf.mxu0
      %v887 = vadd.f32 %v709, %v886
      %888 = vmatprep.mubr.bf16.mxu0 0
      %889 = vmatmul.mubr.bf16.gmra.mxu0 %v791
      %v890 = vpop.f32.mrf.mxu0
      %v891 = vadd.f32 %v714, %v890
      %v892 = vpop.f32.mrf.mxu0
      %v893 = vadd.f32 %v714, %v892
      %v894 = vpop.f32.mrf.mxu0
      %v895 = vadd.f32 %v719, %v894
      %v896 = vpop.f32.mrf.mxu0
      %v897 = vadd.f32 %v719, %v896
      %898 = vmatprep.mubr.bf16.mxu0 0
      %899 = vmatmul.mubr.bf16.gmra.mxu0 %v794
      %v900 = vpop.f32.mrf.mxu0
      %v901 = vadd.f32 %v724, %v900
      %v902 = vpop.f32.mrf.mxu0
      %v903 = vadd.f32 %v724, %v902
      %v904 = vpop.f32.mrf.mxu0
      %v905 = vadd.f32 %v729, %v904
      %v906 = vpop.f32.mrf.mxu0
      %v907 = vadd.f32 %v729, %v906
      %908 = vdwg.mxu0
      %v909 = vmul.f32 %v831, 0.5
      %v910 = vmul.f32 %v833, 0.5
      %v911 = vmul.f32 %v835, 0.5
      %v912 = vmul.f32 %v837, 0.5
      %v913 = vmul.f32 %v841, 0.5
      %v914 = vmul.f32 %v843, 0.5
      %v915 = vmul.f32 %v845, 0.5
      %v916 = vmul.f32 %v847, 0.5
      %v917 = vmul.f32 %v851, 0.5
      %v918 = vmul.f32 %v853, 0.5
      %v919 = vmul.f32 %v855, 0.5
      %v920 = vmul.f32 %v857, 0.5
      %v921 = vmul.f32 %v861, 0.5
      %v922 = vmul.f32 %v863, 0.5
      %v923 = vmul.f32 %v865, 0.5
      %v924 = vmul.f32 %v867, 0.5
      %v925 = vmul.f32 %v871, 0.5
      %v926 = vmul.f32 %v873, 0.5
      %v927 = vmul.f32 %v875, 0.5
      %v928 = vmul.f32 %v877, 0.5
      %v929 = vmul.f32 %v881, 0.5
      %v930 = vmul.f32 %v883, 0.5
      %v931 = vmul.f32 %v885, 0.5
      %v932 = vmul.f32 %v887, 0.5
      %v933 = vmul.f32 %v891, 0.5
      %v934 = vmul.f32 %v893, 0.5
      %v935 = vmul.f32 %v895, 0.5
      %v936 = vmul.f32 %v897, 0.5
      %v937 = vmul.f32 %v901, 0.5
      %v938 = vmul.f32 %v903, 0.5
      %v939 = vmul.f32 %v905, 0.5
      %v940 = vmul.f32 %v907, 0.5
      %v941 = vmul.f32 %v831, %v831
      %v942 = vmul.f32 %v833, %v833
      %v943 = vmul.f32 %v835, %v835
      %v944 = vmul.f32 %v837, %v837
      %v945 = vmul.f32 %v841, %v841
      %v946 = vmul.f32 %v843, %v843
      %v947 = vmul.f32 %v845, %v845
      %v948 = vmul.f32 %v847, %v847
      %v949 = vmul.f32 %v851, %v851
      %v950 = vmul.f32 %v853, %v853
      %v951 = vmul.f32 %v855, %v855
      %v952 = vmul.f32 %v857, %v857
      %v953 = vmul.f32 %v861, %v861
      %v954 = vmul.f32 %v863, %v863
      %v955 = vmul.f32 %v865, %v865
      %v956 = vmul.f32 %v867, %v867
      %v957 = vmul.f32 %v871, %v871
      %v958 = vmul.f32 %v873, %v873
      %v959 = vmul.f32 %v875, %v875
      %v960 = vmul.f32 %v877, %v877
      %v961 = vmul.f32 %v881, %v881
      %v962 = vmul.f32 %v883, %v883
      %v963 = vmul.f32 %v885, %v885
      %v964 = vmul.f32 %v887, %v887
      %v965 = vmul.f32 %v891, %v891
      %v966 = vmul.f32 %v893, %v893
      %v967 = vmul.f32 %v895, %v895
      %v968 = vmul.f32 %v897, %v897
      %v969 = vmul.f32 %v901, %v901
      %v970 = vmul.f32 %v903, %v903
      %v971 = vmul.f32 %v905, %v905
      %v972 = vmul.f32 %v907, %v907
      %v973 = vmul.f32 %v941, %v831
      %v974 = vmul.f32 %v942, %v833
      %v975 = vmul.f32 %v943, %v835
      %v976 = vmul.f32 %v944, %v837
      %v977 = vmul.f32 %v945, %v841
      %v978 = vmul.f32 %v946, %v843
      %v979 = vmul.f32 %v947, %v845
      %v980 = vmul.f32 %v948, %v847
      %v981 = vmul.f32 %v949, %v851
      %v982 = vmul.f32 %v950, %v853
      %v983 = vmul.f32 %v951, %v855
      %v984 = vmul.f32 %v952, %v857
      %v985 = vmul.f32 %v953, %v861
      %v986 = vmul.f32 %v954, %v863
      %v987 = vmul.f32 %v955, %v865
      %v988 = vmul.f32 %v956, %v867
      %v989 = vmul.f32 %v957, %v871
      %v990 = vmul.f32 %v958, %v873
      %v991 = vmul.f32 %v959, %v875
      %v992 = vmul.f32 %v960, %v877
      %v993 = vmul.f32 %v961, %v881
      %v994 = vmul.f32 %v962, %v883
      %v995 = vmul.f32 %v963, %v885
      %v996 = vmul.f32 %v964, %v887
      %v997 = vmul.f32 %v965, %v891
      %v998 = vmul.f32 %v966, %v893
      %v999 = vmul.f32 %v967, %v895
      %v1000 = vmul.f32 %v968, %v897
      %v1001 = vmul.f32 %v969, %v901
      %v1002 = vmul.f32 %v970, %v903
      %v1003 = vmul.f32 %v971, %v905
      %v1004 = vmul.f32 %v972, %v907
      %v1005 = vmul.f32 %v973, 0.044715
      %v1006 = vmul.f32 %v974, 0.044715
      %v1007 = vmul.f32 %v975, 0.044715
      %v1008 = vmul.f32 %v976, 0.044715
      %v1009 = vmul.f32 %v977, 0.044715
      %v1010 = vmul.f32 %v978, 0.044715
      %v1011 = vmul.f32 %v979, 0.044715
      %v1012 = vmul.f32 %v980, 0.044715
      %v1013 = vmul.f32 %v981, 0.044715
      %v1014 = vmul.f32 %v982, 0.044715
      %v1015 = vmul.f32 %v983, 0.044715
      %v1016 = vmul.f32 %v984, 0.044715
      %v1017 = vmul.f32 %v985, 0.044715
      %v1018 = vmul.f32 %v986, 0.044715
      %v1019 = vmul.f32 %v987, 0.044715
      %v1020 = vmul.f32 %v988, 0.044715
      %v1021 = vmul.f32 %v989, 0.044715
      %v1022 = vmul.f32 %v990, 0.044715
      %v1023 = vmul.f32 %v991, 0.044715
      %v1024 = vmul.f32 %v992, 0.044715
      %v1025 = vmul.f32 %v993, 0.044715
      %v1026 = vmul.f32 %v994, 0.044715
      %v1027 = vmul.f32 %v995, 0.044715
      %v1028 = vmul.f32 %v996, 0.044715
      %v1029 = vmul.f32 %v997, 0.044715
      %v1030 = vmul.f32 %v998, 0.044715
      %v1031 = vmul.f32 %v999, 0.044715
      %v1032 = vmul.f32 %v1000, 0.044715
      %v1033 = vmul.f32 %v1001, 0.044715
      %v1034 = vmul.f32 %v1002, 0.044715
      %v1035 = vmul.f32 %v1003, 0.044715
      %v1036 = vmul.f32 %v1004, 0.044715
      %v1037 = vadd.f32 %v831, %v1005
      %v1038 = vadd.f32 %v833, %v1006
      %v1039 = vadd.f32 %v835, %v1007
      %v1040 = vadd.f32 %v837, %v1008
      %v1041 = vadd.f32 %v841, %v1009
      %v1042 = vadd.f32 %v843, %v1010
      %v1043 = vadd.f32 %v845, %v1011
      %v1044 = vadd.f32 %v847, %v1012
      %v1045 = vadd.f32 %v851, %v1013
      %v1046 = vadd.f32 %v853, %v1014
      %v1047 = vadd.f32 %v855, %v1015
      %v1048 = vadd.f32 %v857, %v1016
      %v1049 = vadd.f32 %v861, %v1017
      %v1050 = vadd.f32 %v863, %v1018
      %v1051 = vadd.f32 %v865, %v1019
      %v1052 = vadd.f32 %v867, %v1020
      %v1053 = vadd.f32 %v871, %v1021
      %v1054 = vadd.f32 %v873, %v1022
      %v1055 = vadd.f32 %v875, %v1023
      %v1056 = vadd.f32 %v877, %v1024
      %v1057 = vadd.f32 %v881, %v1025
      %v1058 = vadd.f32 %v883, %v1026
      %v1059 = vadd.f32 %v885, %v1027
      %v1060 = vadd.f32 %v887, %v1028
      %v1061 = vadd.f32 %v891, %v1029
      %v1062 = vadd.f32 %v893, %v1030
      %v1063 = vadd.f32 %v895, %v1031
      %v1064 = vadd.f32 %v897, %v1032
      %v1065 = vadd.f32 %v901, %v1033
      %v1066 = vadd.f32 %v903, %v1034
      %v1067 = vadd.f32 %v905, %v1035
      %v1068 = vadd.f32 %v907, %v1036
      %v1069 = vmul.f32 %v1037, 0.7978846
      %v1070 = vmul.f32 %v1038, 0.7978846
      %v1071 = vmul.f32 %v1039, 0.7978846
      %v1072 = vmul.f32 %v1040, 0.7978846
      %v1073 = vmul.f32 %v1041, 0.7978846
      %v1074 = vmul.f32 %v1042, 0.7978846
      %v1075 = vmul.f32 %v1043, 0.7978846
      %v1076 = vmul.f32 %v1044, 0.7978846
      %v1077 = vmul.f32 %v1045, 0.7978846
      %v1078 = vmul.f32 %v1046, 0.7978846
      %v1079 = vmul.f32 %v1047, 0.7978846
      %v1080 = vmul.f32 %v1048, 0.7978846
      %v1081 = vmul.f32 %v1049, 0.7978846
      %v1082 = vmul.f32 %v1050, 0.7978846
      %v1083 = vmul.f32 %v1051, 0.7978846
      %v1084 = vmul.f32 %v1052, 0.7978846
      %v1085 = vmul.f32 %v1053, 0.7978846
      %v1086 = vmul.f32 %v1054, 0.7978846
      %v1087 = vmul.f32 %v1055, 0.7978846
      %v1088 = vmul.f32 %v1056, 0.7978846
      %v1089 = vmul.f32 %v1057, 0.7978846
      %v1090 = vmul.f32 %v1058, 0.7978846
      %v1091 = vmul.f32 %v1059, 0.7978846
      %v1092 = vmul.f32 %v1060, 0.7978846
      %v1093 = vmul.f32 %v1061, 0.7978846
      %v1094 = vmul.f32 %v1062, 0.7978846
      %v1095 = vmul.f32 %v1063, 0.7978846
      %v1096 = vmul.f32 %v1064, 0.7978846
      %v1097 = vmul.f32 %v1065, 0.7978846
      %v1098 = vmul.f32 %v1066, 0.7978846
      %v1099 = vmul.f32 %v1067, 0.7978846
      %v1100 = vmul.f32 %v1068, 0.7978846
      %v1101 = vtanh.pop %v1069
      %v1102 = vtanh.pop %v1070
      %v1103 = vtanh.pop %v1071
      %v1104 = vtanh.pop %v1072
      %v1105 = vtanh.pop %v1073
      %v1106 = vtanh.pop %v1074
      %v1107 = vtanh.pop %v1075
      %v1108 = vtanh.pop %v1076
      %v1109 = vtanh.pop %v1077
      %v1110 = vtanh.pop %v1078
      %v1111 = vtanh.pop %v1079
      %v1112 = vtanh.pop %v1080
      %v1113 = vtanh.pop %v1081
      %v1114 = vtanh.pop %v1082
      %v1115 = vtanh.pop %v1083
      %v1116 = vtanh.pop %v1084
      %v1117 = vtanh.pop %v1085
      %v1118 = vtanh.pop %v1086
      %v1119 = vtanh.pop %v1087
      %v1120 = vtanh.pop %v1088
      %v1121 = vtanh.pop %v1089
      %v1122 = vtanh.pop %v1090
      %v1123 = vtanh.pop %v1091
      %v1124 = vtanh.pop %v1092
      %v1125 = vtanh.pop %v1093
      %v1126 = vtanh.pop %v1094
      %v1127 = vtanh.pop %v1095
      %v1128 = vtanh.pop %v1096
      %v1129 = vtanh.pop %v1097
      %v1130 = vtanh.pop %v1098
      %v1131 = vtanh.pop %v1099
      %v1132 = vtanh.pop %v1100
      %v1133 = vadd.f32 %v1101, 1.0
      %v1134 = vadd.f32 %v1102, 1.0
      %v1135 = vadd.f32 %v1103, 1.0
      %v1136 = vadd.f32 %v1104, 1.0
      %v1137 = vadd.f32 %v1105, 1.0
      %v1138 = vadd.f32 %v1106, 1.0
      %v1139 = vadd.f32 %v1107, 1.0
      %v1140 = vadd.f32 %v1108, 1.0
      %v1141 = vadd.f32 %v1109, 1.0
      %v1142 = vadd.f32 %v1110, 1.0
      %v1143 = vadd.f32 %v1111, 1.0
      %v1144 = vadd.f32 %v1112, 1.0
      %v1145 = vadd.f32 %v1113, 1.0
      %v1146 = vadd.f32 %v1114, 1.0
      %v1147 = vadd.f32 %v1115, 1.0
      %v1148 = vadd.f32 %v1116, 1.0
      %v1149 = vadd.f32 %v1117, 1.0
      %v1150 = vadd.f32 %v1118, 1.0
      %v1151 = vadd.f32 %v1119, 1.0
      %v1152 = vadd.f32 %v1120, 1.0
      %v1153 = vadd.f32 %v1121, 1.0
      %v1154 = vadd.f32 %v1122, 1.0
      %v1155 = vadd.f32 %v1123, 1.0
      %v1156 = vadd.f32 %v1124, 1.0
      %v1157 = vadd.f32 %v1125, 1.0
      %v1158 = vadd.f32 %v1126, 1.0
      %v1159 = vadd.f32 %v1127, 1.0
      %v1160 = vadd.f32 %v1128, 1.0
      %v1161 = vadd.f32 %v1129, 1.0
      %v1162 = vadd.f32 %v1130, 1.0
      %v1163 = vadd.f32 %v1131, 1.0
      %v1164 = vadd.f32 %v1132, 1.0
      %v1165 = vmul.f32 %v909, %v1133
      %v1166 = vmul.f32 %v910, %v1134
      %v1167 = vmul.f32 %v911, %v1135
      %v1168 = vmul.f32 %v912, %v1136
      %v1169 = vmul.f32 %v913, %v1137
      %v1170 = vmul.f32 %v914, %v1138
      %v1171 = vmul.f32 %v915, %v1139
      %v1172 = vmul.f32 %v916, %v1140
      %v1173 = vmul.f32 %v917, %v1141
      %v1174 = vmul.f32 %v918, %v1142
      %v1175 = vmul.f32 %v919, %v1143
      %v1176 = vmul.f32 %v920, %v1144
      %v1177 = vmul.f32 %v921, %v1145
      %v1178 = vmul.f32 %v922, %v1146
      %v1179 = vmul.f32 %v923, %v1147
      %v1180 = vmul.f32 %v924, %v1148
      %v1181 = vmul.f32 %v925, %v1149
      %v1182 = vmul.f32 %v926, %v1150
      %v1183 = vmul.f32 %v927, %v1151
      %v1184 = vmul.f32 %v928, %v1152
      %v1185 = vmul.f32 %v929, %v1153
      %v1186 = vmul.f32 %v930, %v1154
      %v1187 = vmul.f32 %v931, %v1155
      %v1188 = vmul.f32 %v932, %v1156
      %v1189 = vmul.f32 %v933, %v1157
      %v1190 = vmul.f32 %v934, %v1158
      %v1191 = vmul.f32 %v935, %v1159
      %v1192 = vmul.f32 %v936, %v1160
      %v1193 = vmul.f32 %v937, %v1161
      %v1194 = vmul.f32 %v938, %v1162
      %v1195 = vmul.f32 %v939, %v1163
      %v1196 = vmul.f32 %v940, %v1164
      %v1197 = vld [vmem:[%s7] sm:$0xf]
      %v1198 = vld [vmem:[%s7 + $0x4] sm:$0xf]
      %v1199 = vld [vmem:[%s7 + $0x8] sm:$0xf]
      %v1200 = vld [vmem:[%s7 + $0xc] sm:$0xf]
      %v1201 = vpack.c.bf16 %v1167, %v1165
      %v1202 = vpack.c.bf16 %v1168, %v1166
      %v1203 = vpack.c.bf16 %v1171, %v1169
      %v1204 = vpack.c.bf16 %v1172, %v1170
      %v1205 = vpack.c.bf16 %v1175, %v1173
      %v1206 = vpack.c.bf16 %v1176, %v1174
      %v1207 = vpack.c.bf16 %v1179, %v1177
      %v1208 = vpack.c.bf16 %v1180, %v1178
      %v1209 = vpack.c.bf16 %v1183, %v1181
      %v1210 = vpack.c.bf16 %v1184, %v1182
      %v1211 = vpack.c.bf16 %v1187, %v1185
      %v1212 = vpack.c.bf16 %v1188, %v1186
      %v1213 = vpack.c.bf16 %v1191, %v1189
      %v1214 = vpack.c.bf16 %v1192, %v1190
      %v1215 = vpack.c.bf16 %v1195, %v1193
      %v1216 = vpack.c.bf16 %v1196, %v1194
      %v1217 = vld [vmem:[%s8] sm:$0xff]
      %v1218 = vld [vmem:[%s8 + $0x8] sm:$0xff]
      %v1219 = vld [vmem:[%s8 + $0x10] sm:$0xff]
      %v1220 = vld [vmem:[%s8 + $0x18] sm:$0xff]
      %1222 = vset.pattern.permute.xlu0 0
      %1223 = vperm.xlu0 %1222, %v1217
      %v1224 = vpop.permute.xlu0 %1223
      %1227 = vset.pattern.permute.xlu0 0
      %1228 = vperm.xlu0 %1227, %v1218
      %v1229 = vpop.permute.xlu0 %1228
      %1232 = vset.pattern.permute.xlu0 0
      %1233 = vperm.xlu0 %1232, %v1219
      %v1234 = vpop.permute.xlu0 %1233
      %1237 = vset.pattern.permute.xlu0 0
      %1238 = vperm.xlu0 %1237, %v1220
      %v1239 = vpop.permute.xlu0 %1238
      %v1245 = vunpack.c.l.b16 %v1197
      %v1246 = vunpack.c.l.b16 %v1198
      %v1247 = vunpack.c.l.b16 %v1199
      %v1248 = vunpack.c.l.b16 %v1200
      %v1249 = vpack.c.b16 %v1246, %v1245
      %v1250 = vpack.c.b16 %v1248, %v1247
      %1253 = vmatprep.subr.bf16.mxu0 %v1216
      %1254 = vmatpush1.bf16.msra.mxu0 %v1215
      %1255 = vmatprep.subr.bf16.mxu0 %v1214
      %1256 = vmatpush1.bf16.msra.mxu0 %v1213
      %1257 = vmatprep.subr.bf16.mxu0 %v1212
      %1258 = vmatpush1.bf16.msra.mxu0 %v1211
      %1259 = vmatprep.subr.bf16.mxu0 %v1210
      %1260 = vmatpush1.bf16.msra.mxu0 %v1209
      %1261 = vmatprep.subr.bf16.mxu0 %v1208
      %1262 = vmatpush1.bf16.msra.mxu0 %v1207
      %1263 = vmatprep.subr.bf16.mxu0 %v1206
      %1264 = vmatpush1.bf16.msra.mxu0 %v1205
      %1265 = vmatprep.subr.bf16.mxu0 %v1204
      %1266 = vmatpush1.bf16.msra.mxu0 %v1203
      %1267 = vmatprep.subr.bf16.mxu0 %v1202
      %1268 = vmatpush1.bf16.msra.mxu0 %v1201
      %1269 = vmatprep.subr.bf16.mxu0 0
      %1270 = vmatpush2.bf16.msra.mxu0 0
      %1271 = vmatprep.subr.bf16.mxu0 0
      %1272 = vmatpush2.bf16.msra.mxu0 0
      %1273 = vmatprep.subr.bf16.mxu0 0
      %1274 = vmatpush2.bf16.msra.mxu0 0
      %1275 = vmatprep.subr.bf16.mxu0 0
      %1276 = vmatpush2.bf16.msra.mxu0 0
      %1277 = vmatprep.subr.bf16.mxu0 0
      %1278 = vmatpush2.bf16.msra.mxu0 0
      %1279 = vmatprep.subr.bf16.mxu0 0
      %1280 = vmatpush2.bf16.msra.mxu0 0
      %1281 = vmatprep.subr.bf16.mxu0 0
      %1282 = vmatpush2.bf16.msra.mxu0 0
      %1283 = vmatprep.subr.bf16.mxu0 0
      %1284 = vmatpush2.bf16.msra.mxu0 0
      %1285 = vmatprep.mubr.bf16.mxu0 0
      %1286 = vmatmul.mubr.bf16.gmra.mxu0 %v1249
      %v1287 = vpop.f32.mrf.mxu0
      %v1288 = vadd.f32 %v1224, %v1287
      %v1289 = vpop.f32.mrf.mxu0
      %v1290 = vadd.f32 %v1224, %v1289
      %v1291 = vpop.f32.mrf.mxu0
      %v1292 = vadd.f32 %v1229, %v1291
      %v1293 = vpop.f32.mrf.mxu0
      %v1294 = vadd.f32 %v1229, %v1293
      %1295 = vmatprep.mubr.bf16.mxu0 0
      %1296 = vmatmul.mubr.bf16.gmra.mxu0 %v1250
      %v1297 = vpop.f32.mrf.mxu0
      %v1298 = vadd.f32 %v1234, %v1297
      %v1299 = vpop.f32.mrf.mxu0
      %v1300 = vadd.f32 %v1234, %v1299
      %v1301 = vpop.f32.mrf.mxu0
      %v1302 = vadd.f32 %v1239, %v1301
      %v1303 = vpop.f32.mrf.mxu0
      %v1304 = vadd.f32 %v1239, %v1303
      %1305 = vdwg.mxu0
      %v1306 = vld [vmem:[%s439] sm:$0xff]
      %v1307 = vld [vmem:[%s439 + $0x8] sm:$0xff]
      %v1308 = vld [vmem:[%s439 + $0x10] sm:$0xff]
      %v1309 = vld [vmem:[%s439 + $0x18] sm:$0xff]
      %v1310 = vld [vmem:[%s439 + $0x20] sm:$0xff]
      %v1311 = vld [vmem:[%s439 + $0x28] sm:$0xff]
      %v1312 = vld [vmem:[%s439 + $0x30] sm:$0xff]
      %v1313 = vld [vmem:[%s439 + $0x38] sm:$0xff]
      %v1314 = vadd.f32 %v1288, %v1306
      %v1315 = vadd.f32 %v1290, %v1307
      %v1316 = vadd.f32 %v1292, %v1308
      %v1317 = vadd.f32 %v1294, %v1309
      %v1318 = vadd.f32 %v1298, %v1310
      %v1319 = vadd.f32 %v1300, %v1311
      %v1320 = vadd.f32 %v1302, %v1312
      %v1321 = vadd.f32 %v1304, %v1313
      %1322 = vst [vmem:[%s464] sm:$0xff] %v1314
      %1323 = vst [vmem:[%s464 + $0x8] sm:$0xff] %v1315
      %1324 = vst [vmem:[%s464 + $0x10] sm:$0xff] %v1316
      %1325 = vst [vmem:[%s464 + $0x18] sm:$0xff] %v1317
      %1326 = vst [vmem:[%s464 + $0x20] sm:$0xff] %v1318
      %1327 = vst [vmem:[%s464 + $0x28] sm:$0xff] %v1319
      %1328 = vst [vmem:[%s464 + $0x30] sm:$0xff] %v1320
      %1329 = vst [vmem:[%s464 + $0x38] sm:$0xff] %v1321
      %s1330 = smul.u32 2, %s25
      %p1331 = scmp.lt.s32.totalorder %s24, 1
      %s1332 = scalar_select %p1331, %s24, 1
      %p1333 = scmp.lt.s32.totalorder %s1330, 1
      %s1334 = scalar_select %p1333, %s1330, 1
      %s1335 = smul.addr %s1332, 8
      %s1336 = sadd.s32 %s1334, %s1335
      %s1337 = smul.addr %s1336, 8
      %s1338 = scalar_lea.vmem %s9, %s1337
      // Predicated region
      $region57: #{block_forward.7} parent=55 // pred_check
        %p1339 = pneg %p270
      $region58: #{block_forward.7} parent=55 // pred_check_branch
        %1341 = sbr.rel (%p1339) target = $region60
      $region59: #{block_forward.7} parent=55 // pred_region
        %s1342 = smul.u32 2, %s25
      $region60: #{block_forward.7} parent=55 // pred_fallthru
        _
    $region56: #{block_forward.7} parent=5 // pred_fallthru
      _
    %p1343 = scmp.le.s32.totalorder 2, %s15
    // Predicated region
    $region61: #{block_forward.7} parent=5 // pred_check
      %p1344 = pneg %p1343
    $region62: #{block_forward.7} parent=5 // pred_check_branch
      %1346 = sbr.rel (%p1344) target = $region64
    $region63: #{block_forward.7} parent=5 // pred_region
      %s1347 = ssub.s32 %s15, 2
      // Predicated region
      $region65: #{block_forward.7} parent=63 // pred_check
        %p1348 = pneg %p276
      $region66: #{block_forward.7} parent=63 // pred_check_branch
        %1350 = sbr.rel (%p1348) target = $region68
      $region67: #{block_forward.7} parent=63 // pred_region
        %s1351 = smul.u32 2, %s27
        %p1352 = scmp.lt.s32.totalorder %s26, 1
        %s1353 = scalar_select %p1352, %s26, 1
        %p1354 = scmp.lt.s32.totalorder %s1351, 1
        %s1355 = scalar_select %p1354, %s1351, 1
        %s1356 = smul.addr %s1353, 8
        %s1357 = sadd.s32 %s1355, %s1356
        %s1358 = smul.addr %s1357, 8
        %s1359 = scalar_lea.vmem %s9, %s1358
      $region68: #{block_forward.7} parent=63 // pred_fallthru
        _
    $region64: #{block_forward.7} parent=5 // pred_fallthru
      _
  $region6: #{block_forward.7} parent=0 // loop_footer
    %s19 = sadd.s32 1, %s15
  $region7: #{block_forward.7} parent=0 // loop_footer_branch
    %14 = sbr.rel target = $region3
  $region8: #{block_forward.7} parent=0 // loop_exit
    _

</llo_original>
